<compile_context>
chip_gen: v7x
topology: tpu7x:2x2x1
jax: 0.10.0
libtpu: 0.0.40
codegen_flags: <defaults>
</compile_context>

<pallas_src>
import functools
from math import sqrt

import jax
import jax.numpy as jnp
from jax.experimental import pallas as pl
from jax.experimental.pallas import tpu as pltpu

LEAK = 0.2                      # LeakyReLU negative slope used in ConvBlock
HIGH = jax.lax.Precision.HIGHEST

CH = 512                        # conv channel width
NTAP = 16                       # conv2's 4x4 spatial taps
TPS = 4                         # taps per grid step -> 2 MiB bf16 w2 tile
NSTEP = NTAP // TPS             # grid size
KPAD = 32                       # folded conv1 contraction dim (27) padded to 32


def _leaky(v):
    return jnp.where(v >= 0.0, v, LEAK * v)


# ---------------------------------------------------------------------------
# Fused Pallas kernel
# ---------------------------------------------------------------------------
def _encoder_kernel(x_ref, patches_ref, wf_ref, b1_ref, cm_ref, w2_ref,
                    b2_ref, wfc_ref, bfc_ref, out_ref,
                    acc_scr, ms_scr, h_scr):
    p = pl.program_id(0)

    @pl.when(p == 0)
    def _init():
        # minibatch-std scalar: torch input.std(0) (unbiased) .mean()
        x = x_ref[...]                                   # (B, C*H*W) f32 (unpadded)
        nb = x.shape[0]
        mu = jnp.mean(x, axis=0, keepdims=True)
        var = jnp.sum((x - mu) ** 2, axis=0, keepdims=True) / (nb - 1)
        ms_scr[...] = jnp.mean(jnp.sqrt(var), axis=1, keepdims=True)   # (1, 1)
        acc_scr[...] = jnp.zeros_like(acc_scr)

    ms = ms_scr[...]                                     # (1, 1)

    # conv1 (with from_rgb folded in) for this step's TPS taps.  Results are
    # packed into a (BP, TPS*512) bf16 slab so conv2's contribution below is
    # one deep-K matmul against the streamed (TPS*512, 512) w2 tile.
    for t in range(TPS):                                 # static, fully unrolled
        idx = p * TPS + t
        h = jnp.dot(patches_ref[idx], wf_ref[...],
                    preferred_element_type=jnp.float32)  # (BP, 512)
        h = _leaky(h + b1_ref[idx] + ms * cm_ref[idx])
        h_scr[:, t * CH:(t + 1) * CH] = h.astype(jnp.bfloat16)

    acc_scr[...] += jnp.dot(h_scr[...], w2_ref[...],
                            preferred_element_type=jnp.float32)

    @pl.when(p == pl.num_programs(0) - 1)
    def _finalize():
        a = _leaky(acc_scr[...] + b2_ref[...])
        o = jnp.dot(a.astype(jnp.bfloat16), wfc_ref[...],
                    preferred_element_type=jnp.float32)
        out_ref[...] = o + bfc_ref[...]


# ---------------------------------------------------------------------------
# JAX glue: im2col with (spatial, batch) row order (layout only)
# ---------------------------------------------------------------------------
def im2col_pb(x, kh, kw, pad):
    """x: (B, C, H, W) -> (Ho*Wo, B, C*kh*kw); rows in (y, x) row-major order,
    K packed as (c, ky, kx)."""
    B, C, H, W = x.shape
    xp = jnp.pad(x, ((0, 0), (0, 0), (pad, pad), (pad, pad)))
    Ho = H + 2 * pad - kh + 1
    Wo = W + 2 * pad - kw + 1
    cols = []
    for ky in range(kh):
        for kx in range(kw):
            cols.append(xp[:, :, ky:ky + Ho, kx:kx + Wo])    # (B, C, Ho, Wo)
    p = jnp.stack(cols, axis=2)                              # (B, C, kh*kw, Ho, Wo)
    p = p.transpose(3, 4, 0, 1, 2)                           # (Ho, Wo, B, C, kh*kw)
    return p.reshape(Ho * Wo, B, C * kh * kw)


# ---------------------------------------------------------------------------
# Parameter construction (deterministic; mirrors the PyTorch __init__ shapes)
# ---------------------------------------------------------------------------
def init_encoder_params(key, zdim):
    ks = jax.random.split(key, 6)
    p = {}
    # from_rgb[5] = nn.Conv2d(3, 512, 1): default torch init uniform(+-1/sqrt(fan_in))
    bound = 1.0 / sqrt(3.0)
    p["rgb_w"] = jax.random.uniform(ks[0], (512, 3, 1, 1), jnp.float32, -bound, bound)
    p["rgb_b"] = jax.random.uniform(ks[1], (512,), jnp.float32, -bound, bound)
    # progression[5].conv[0] = EqualConv2d(513, 512, 3, padding=1):
    #   weight_orig ~ N(0,1), bias = 0, effective weight = w * sqrt(2 / (513*3*3))
    w1 = jax.random.normal(ks[2], (512, 513, 3, 3), jnp.float32)
    p["c1_w"] = w1 * sqrt(2.0 / (513 * 3 * 3))
    p["c1_b"] = jnp.zeros((512,), jnp.float32)
    # progression[5].conv[2] = EqualConv2d(512, 512, 4, padding=0)
    w2 = jax.random.normal(ks[3], (512, 512, 4, 4), jnp.float32)
    p["c2_w"] = w2 * sqrt(2.0 / (512 * 4 * 4))
    p["c2_b"] = jnp.zeros((512,), jnp.float32)
    # last_layer = nn.Linear(512, (zdim-1)*2)
    out_f = (zdim - 1) * 2
    bound = 1.0 / sqrt(512.0)
    p["fc_w"] = jax.random.uniform(ks[4], (out_f, 512), jnp.float32, -bound, bound)
    p["fc_b"] = jax.random.uniform(ks[5], (out_f,), jnp.float32, -bound, bound)
    return p


def prepare_params(p):
    """Fold from_rgb into conv1, reorder / pad / bf16-cast weights (exact, one-time)."""
    c1 = p["c1_w"]                                   # (512, 513, 3, 3), effective
    rgb_w = p["rgb_w"][:, :, 0, 0]                   # (512, 3)
    rgb_b = p["rgb_b"]                               # (512,)

    # Exact fold of the 1x1 rgb conv into conv1's first 512 input channels.
    wf = jnp.einsum("ocyx,cr->oryx", c1[:, :512], rgb_w, precision=HIGH)  # (512,3,3,3)
    wf_mat = wf.reshape(512, 27).T                                        # (27, 512)
    wf_pad = jnp.zeros((KPAD, 512), jnp.float32).at[:27].set(wf_mat)      # (32, 512)

    # Per-position bias map: conv1 applied to the zero-padded rgb-bias image
    # (handles the border positions where padded taps contribute 0, not rgb_b).
    const_img = jnp.broadcast_to(rgb_b[None, :, None, None], (1, 512, 4, 4))
    cols_b = im2col_pb(const_img, 3, 3, 1)[:, 0, :]                       # (16, 4608)
    bias16 = jnp.dot(cols_b, c1[:, :512].reshape(512, 512 * 9).T,
                     precision=HIGH) + p["c1_b"][None, :]                 # (16, 512)

    # Per-position coefficient of the minibatch-std channel (input channel 512).
    ones_img = jnp.ones((1, 1, 4, 4), jnp.float32)
    cols_1 = im2col_pb(ones_img, 3, 3, 1)[:, 0, :]                        # (16, 9)
    cmap16 = jnp.dot(cols_1, c1[:, 512].reshape(512, 9).T, precision=HIGH)  # (16, 512)

    # conv2 weight reordered to the (y, x, c) packing of the conv1 output rows.
    w2_mat = p["c2_w"].transpose(2, 3, 1, 0).reshape(16 * 512, 512)       # (8192, 512)

    # fc weight/bias zero-padded to a lane-dense 128-wide output.
    nf = p["fc_w"].shape[0]
    assert nf <= 128
    wfc = jnp.zeros((512, 128), jnp.float32).at[:, :nf].set(p["fc_w"].T)
    bfc = jnp.zeros((1, 128), jnp.float32).at[:, :nf].set(p["fc_b"])

    return dict(
        wf=wf_pad.astype(jnp.bfloat16),
        bias1=bias16.reshape(16, 1, 512).astype(jnp.float32),
        cmap=cmap16.reshape(16, 1, 512).astype(jnp.float32),
        w2=w2_mat.astype(jnp.bfloat16),
        b2=p["c2_b"].reshape(1, 512).astype(jnp.float32),
        wfc=wfc.astype(jnp.bfloat16),
        bfc=bfc,
    )


# ---------------------------------------------------------------------------
# Encoder.forward (step=0, alpha=-1): one fused pallas_call
# ---------------------------------------------------------------------------
def encoder_forward(pp, x, *, num_out):
    """x: (B, 3, 4, 4) NCHW float32 -> (B, num_out). Requires B >= 2 (unbiased std)."""
    B, C, H, W = x.shape
    assert (C, H, W) == (3, 4, 4) and B >= 2
    BP = ((B + 7) // 8) * 8                          # sublane-dense batch pad
    NPAD = pp["wfc"].shape[1]                        # 128

    patches = im2col_pb(x, 3, 3, 1)                  # (16, B, 27) f32
    patches = jnp.pad(patches, ((0, 0), (0, BP - B), (0, KPAD - 27)))
    patches = patches.astype(jnp.bfloat16)           # (16, BP, 32)
    x_flat = x.reshape(B, C * H * W)                 # (B, 48) f32, unpadded (for ms)

    itemsize = lambda a: a.size * jnp.dtype(a.dtype).itemsize
    cost = pl.CostEstimate(
        flops=int(2 * BP * (NTAP * KPAD * CH + NTAP * CH * CH + CH * NPAD)),
        transcendentals=0,
        bytes_accessed=int(sum(itemsize(a) for a in (
            pp["w2"], pp["wfc"], pp["wf"], pp["bias1"], pp["cmap"],
            pp["b2"], pp["bfc"], patches, x_flat)) + BP * NPAD * 4),
    )

    out = pl.pallas_call(
        _encoder_kernel,
        out_shape=jax.ShapeDtypeStruct((BP, NPAD), jnp.float32),
        grid_spec=pltpu.PrefetchScalarGridSpec(
            num_scalar_prefetch=0,
            grid=(NSTEP,),                           # conv2 tap-groups (reduction)
            in_specs=[
                pl.BlockSpec((B, C * H * W), lambda p: (0, 0)),      # x_flat (ms)
                pl.BlockSpec((NTAP, BP, KPAD), lambda p: (0, 0, 0)),  # patches (once)
                pl.BlockSpec((KPAD, CH), lambda p: (0, 0)),          # folded conv1 w
                pl.BlockSpec((NTAP, 1, CH), lambda p: (0, 0, 0)),    # conv1 bias map
                pl.BlockSpec((NTAP, 1, CH), lambda p: (0, 0, 0)),    # ms coeff map
                pl.BlockSpec((TPS * CH, CH), lambda p: (p, 0)),      # w2 2 MiB tile
                pl.BlockSpec((1, CH), lambda p: (0, 0)),             # conv2 bias
                pl.BlockSpec((CH, NPAD), lambda p: (0, 0)),          # fc w (padded)
                pl.BlockSpec((1, NPAD), lambda p: (0, 0)),           # fc bias (padded)
            ],
            out_specs=pl.BlockSpec((BP, NPAD), lambda p: (0, 0)),
            scratch_shapes=[
                pltpu.VMEM((BP, CH), jnp.float32),          # conv2 accumulator
                pltpu.VMEM((1, 1), jnp.float32),            # minibatch-std scalar
                pltpu.VMEM((BP, TPS * CH), jnp.bfloat16),   # conv1 activation slab
            ],
        ),
        compiler_params=pltpu.CompilerParams(
            dimension_semantics=("arbitrary",)),      # carried reduction over taps
        cost_estimate=cost,
    )(x_flat, patches, pp["wf"], pp["bias1"], pp["cmap"],
      pp["w2"], pp["b2"], pp["wfc"], pp["bfc"])
    return out[:B, :num_out]


# ---------------------------------------------------------------------------
# Pure-JAX f32 reference (sanity check of the Pallas path)
# ---------------------------------------------------------------------------
def reference_forward(params, x):
    dn = ("NCHW", "OIHW", "NCHW")
    B, _, H, W = x.shape
    out = jax.lax.conv_general_dilated(
        x, params["rgb_w"], (1, 1), "VALID", dimension_numbers=dn,
        precision=HIGH) + params["rgb_b"][None, :, None, None]
    ms = jnp.mean(jnp.std(x, axis=0, ddof=1))
    out = jnp.concatenate([out, jnp.broadcast_to(ms, (B, 1, H, W))], axis=1)
    out = jax.lax.conv_general_dilated(
        out, params["c1_w"], (1, 1), ((1, 1), (1, 1)), dimension_numbers=dn,
        precision=HIGH) + params["c1_b"][None, :, None, None]
    out = jnp.where(out >= 0, out, LEAK * out)
    out = jax.lax.conv_general_dilated(
        out, params["c2_w"], (1, 1), "VALID", dimension_numbers=dn,
        precision=HIGH) + params["c2_b"][None, :, None, None]
    out = jnp.where(out >= 0, out, LEAK * out)
    out = out[:, :, 0, 0]
    return jnp.dot(out, params["fc_w"].T, precision=HIGH) + params["fc_b"][None, :]


if __name__ == "__main__":
    zdim = 16
    batch = 2     # torch's unbiased input.std(0) requires batch >= 2
    key = jax.random.PRNGKey(0)
    k_param, k_input = jax.random.split(key)

    params = init_encoder_params(k_param, zdim)
    # step=0 resolution: 4x4 RGB input, NCHW
    x = jax.random.normal(k_input, (batch, 3, 4, 4), jnp.float32)

    num_out = (zdim - 1) * 2
    prepped = prepare_params(params)

    fwd = jax.jit(functools.partial(encoder_forward, num_out=num_out))
    out = jax.block_until_ready(fwd(prepped, x))

    assert out.shape == (batch, num_out), out.shape
    ref = jax.block_until_ready(reference_forward(params, x))
    assert jnp.all(jnp.isfinite(out))
    err = float(jnp.max(jnp.abs(out - ref)))
    # bf16 weight/activation streaming -> ~0.3-0.5% relative error vs f32 ref
    assert jnp.allclose(out, ref, atol=3e-2, rtol=3e-2), err

    print("KERNEL_OK")
</pallas_src>

<mosaic_0001>
module attributes {stable_mosaic.version = 11 : i64} {
  func.func @_encoder_kernel(%arg0: i32, %arg1: memref<2x48xf32, #tpu.memory_space<vmem>>, %arg2: memref<16x8x32xbf16, #tpu.memory_space<vmem>>, %arg3: memref<32x512xbf16, #tpu.memory_space<vmem>>, %arg4: memref<16x1x512xf32, #tpu.memory_space<vmem>>, %arg5: memref<16x1x512xf32, #tpu.memory_space<vmem>>, %arg6: memref<2048x512xbf16, #tpu.memory_space<vmem>>, %arg7: memref<1x512xf32, #tpu.memory_space<vmem>>, %arg8: memref<512x128xbf16, #tpu.memory_space<vmem>>, %arg9: memref<1x128xf32, #tpu.memory_space<vmem>>, %arg10: memref<8x128xf32, #tpu.memory_space<vmem>>, %arg11: memref<8x512xf32, #tpu.memory_space<vmem>>, %arg12: memref<1x1xf32, #tpu.memory_space<vmem>>, %arg13: memref<8x2048xbf16, #tpu.memory_space<vmem>>) attributes {dimension_semantics = [#tpu.dimension_semantics<arbitrary>], iteration_bounds = array<i64: 4>, scalar_prefetch = 0 : i64, scratch_operands = 3 : i64, tpu.core_type = #tpu.core_type<tc>, window_params = [{pipeline_mode = #tpu.pipeline_mode<synchronous>, transform_indices = @transform_0, window_bounds = array<i64: 2, 48>}, {pipeline_mode = #tpu.pipeline_mode<synchronous>, transform_indices = @transform_1, window_bounds = array<i64: 16, 8, 32>}, {pipeline_mode = #tpu.pipeline_mode<synchronous>, transform_indices = @transform_2, window_bounds = array<i64: 32, 512>}, {pipeline_mode = #tpu.pipeline_mode<synchronous>, transform_indices = @transform_3, window_bounds = array<i64: 16, 1, 512>}, {pipeline_mode = #tpu.pipeline_mode<synchronous>, transform_indices = @transform_4, window_bounds = array<i64: 16, 1, 512>}, {transform_indices = @transform_5, window_bounds = array<i64: 2048, 512>}, {pipeline_mode = #tpu.pipeline_mode<synchronous>, transform_indices = @transform_6, window_bounds = array<i64: 1, 512>}, {pipeline_mode = #tpu.pipeline_mode<synchronous>, transform_indices = @transform_7, window_bounds = array<i64: 512, 128>}, {pipeline_mode = #tpu.pipeline_mode<synchronous>, transform_indices = @transform_8, window_bounds = array<i64: 1, 128>}, {pipeline_mode = #tpu.pipeline_mode<synchronous>, transform_indices = @transform_9, window_bounds = array<i64: 8, 128>}]} {
    %c0_i32 = arith.constant 0 : i32
    %0 = arith.cmpi eq, %arg0, %c0_i32 : i32
    %1 = arith.extui %0 : i1 to i32
    %c0_i32_0 = arith.constant 0 : i32
    %2 = arith.cmpi ne, %1, %c0_i32_0 : i32
    scf.if %2 {
      %c0_65 = arith.constant 0 : index
      %c0_66 = arith.constant 0 : index
      %117 = vector.load %arg1[%c0_65, %c0_66] : memref<2x48xf32, #tpu.memory_space<vmem>>, vector<2x48xf32>
      %cst_67 = arith.constant dense<0.000000e+00> : vector<48xf32>
      %118 = vector.multi_reduction <add>, %117, %cst_67 [0] : vector<2x48xf32> to vector<48xf32>
      %119 = vector.shape_cast %118 : vector<48xf32> to vector<1x48xf32>
      %cst_68 = arith.constant 2.000000e+00 : f32
      %120 = vector.broadcast %cst_68 : f32 to vector<1x48xf32>
      %121 = arith.divf %119, %120 : vector<1x48xf32>
      %122 = vector.broadcast %121 : vector<1x48xf32> to vector<2x48xf32>
      %123 = arith.subf %117, %122 : vector<2x48xf32>
      %124 = arith.mulf %123, %123 : vector<2x48xf32>
      %cst_69 = arith.constant dense<0.000000e+00> : vector<48xf32>
      %125 = vector.multi_reduction <add>, %124, %cst_69 [0] : vector<2x48xf32> to vector<48xf32>
      %126 = vector.shape_cast %125 : vector<48xf32> to vector<1x48xf32>
      %cst_70 = arith.constant 1.000000e+00 : f32
      %127 = vector.broadcast %cst_70 : f32 to vector<1x48xf32>
      %128 = arith.divf %126, %127 : vector<1x48xf32>
      %129 = math.sqrt %128 : vector<1x48xf32>
      %cst_71 = arith.constant dense<0.000000e+00> : vector<1xf32>
      %130 = vector.multi_reduction <add>, %129, %cst_71 [1] : vector<1x48xf32> to vector<1xf32>
      %131 = vector.shape_cast %130 : vector<1xf32> to vector<1x1xf32>
      %cst_72 = arith.constant 4.800000e+01 : f32
      %132 = vector.broadcast %cst_72 : f32 to vector<1x1xf32>
      %133 = arith.divf %131, %132 : vector<1x1xf32>
      %c0_73 = arith.constant 0 : index
      %c0_74 = arith.constant 0 : index
      %134 = vector.load %arg12[%c0_73, %c0_74] : memref<1x1xf32, #tpu.memory_space<vmem>>, vector<1x1xf32>
      tpu.vector_store %arg12[%c0_73, %c0_74], %133 {strides = array<i32>} : memref<1x1xf32, #tpu.memory_space<vmem>>, vector<1x1xf32>,
      %cst_75 = arith.constant 0.000000e+00 : f32
      %135 = vector.broadcast %cst_75 : f32 to vector<8x512xf32>
      %c0_76 = arith.constant 0 : index
      %c0_77 = arith.constant 0 : index
      %136 = vector.load %arg11[%c0_76, %c0_77] : memref<8x512xf32, #tpu.memory_space<vmem>>, vector<8x512xf32>
      tpu.vector_store %arg11[%c0_76, %c0_77], %135 {strides = array<i32>} : memref<8x512xf32, #tpu.memory_space<vmem>>, vector<8x512xf32>,
    } else {
    }
    %c0 = arith.constant 0 : index
    %c0_1 = arith.constant 0 : index
    %3 = vector.load %arg12[%c0, %c0_1] : memref<1x1xf32, #tpu.memory_space<vmem>>, vector<1x1xf32>
    %c4_i32 = arith.constant 4 : i32
    %4 = arith.muli %arg0, %c4_i32 : i32
    %c0_i32_2 = arith.constant 0 : i32
    %5 = arith.addi %4, %c0_i32_2 : i32
    %6 = arith.index_cast %5 : i32 to index
    %c0_3 = arith.constant 0 : index
    %c0_4 = arith.constant 0 : index
    %7 = vector.load %arg2[%6, %c0_3, %c0_4] : memref<16x8x32xbf16, #tpu.memory_space<vmem>>, vector<1x8x32xbf16>
    %8 = vector.shape_cast %7 : vector<1x8x32xbf16> to vector<8x32xbf16>
    %c0_5 = arith.constant 0 : index
    %c0_6 = arith.constant 0 : index
    %9 = vector.load %arg3[%c0_5, %c0_6] : memref<32x512xbf16, #tpu.memory_space<vmem>>, vector<32x512xbf16>
    %cst = arith.constant dense<0.000000e+00> : vector<8x512xf32>
    %10 = tpu.matmul %8, %9, %cst {dimension_numbers = #tpu.dot_dimension_numbers<[1], [0], [0], [1], [0, 0, 1, 1], [], []>} : vector<8x32xbf16>, vector<32x512xbf16>, vector<8x512xf32> -> vector<8x512xf32>
    %11 = arith.index_cast %5 : i32 to index
    %c0_7 = arith.constant 0 : index
    %c0_8 = arith.constant 0 : index
    %12 = vector.load %arg4[%11, %c0_7, %c0_8] : memref<16x1x512xf32, #tpu.memory_space<vmem>>, vector<1x1x512xf32>
    %13 = vector.shape_cast %12 : vector<1x1x512xf32> to vector<1x512xf32>
    %14 = vector.broadcast %13 : vector<1x512xf32> to vector<8x512xf32>
    %15 = arith.addf %10, %14 : vector<8x512xf32>
    %16 = arith.index_cast %5 : i32 to index
    %c0_9 = arith.constant 0 : index
    %c0_10 = arith.constant 0 : index
    %17 = vector.load %arg5[%16, %c0_9, %c0_10] : memref<16x1x512xf32, #tpu.memory_space<vmem>>, vector<1x1x512xf32>
    %18 = vector.shape_cast %17 : vector<1x1x512xf32> to vector<1x512xf32>
    %19 = vector.broadcast %3 : vector<1x1xf32> to vector<1x512xf32>
    %20 = arith.mulf %19, %18 : vector<1x512xf32>
    %21 = vector.broadcast %20 : vector<1x512xf32> to vector<8x512xf32>
    %22 = arith.addf %15, %21 : vector<8x512xf32>
    %cst_11 = arith.constant 0.000000e+00 : f32
    %23 = vector.broadcast %cst_11 : f32 to vector<8x512xf32>
    %24 = arith.cmpf oge, %22, %23 : vector<8x512xf32>
    %cst_12 = arith.constant 2.000000e-01 : f32
    %25 = vector.broadcast %cst_12 : f32 to vector<8x512xf32>
    %26 = arith.mulf %25, %22 : vector<8x512xf32>
    %27 = arith.select %24, %22, %26 : vector<8x512xi1>, vector<8x512xf32>
    %28 = arith.truncf %27 : vector<8x512xf32> to vector<8x512xbf16>
    %c0_13 = arith.constant 0 : index
    %c0_14 = arith.constant 0 : index
    %29 = vector.load %arg13[%c0_13, %c0_14] : memref<8x2048xbf16, #tpu.memory_space<vmem>>, vector<8x512xbf16>
    tpu.vector_store %arg13[%c0_13, %c0_14], %28 {strides = array<i32>} : memref<8x2048xbf16, #tpu.memory_space<vmem>>, vector<8x512xbf16>,
    %c4_i32_15 = arith.constant 4 : i32
    %30 = arith.muli %arg0, %c4_i32_15 : i32
    %c1_i32 = arith.constant 1 : i32
    %31 = arith.addi %30, %c1_i32 : i32
    %32 = arith.index_cast %31 : i32 to index
    %c0_16 = arith.constant 0 : index
    %c0_17 = arith.constant 0 : index
    %33 = vector.load %arg2[%32, %c0_16, %c0_17] : memref<16x8x32xbf16, #tpu.memory_space<vmem>>, vector<1x8x32xbf16>
    %34 = vector.shape_cast %33 : vector<1x8x32xbf16> to vector<8x32xbf16>
    %c0_18 = arith.constant 0 : index
    %c0_19 = arith.constant 0 : index
    %35 = vector.load %arg3[%c0_18, %c0_19] : memref<32x512xbf16, #tpu.memory_space<vmem>>, vector<32x512xbf16>
    %cst_20 = arith.constant dense<0.000000e+00> : vector<8x512xf32>
    %36 = tpu.matmul %34, %35, %cst_20 {dimension_numbers = #tpu.dot_dimension_numbers<[1], [0], [0], [1], [0, 0, 1, 1], [], []>} : vector<8x32xbf16>, vector<32x512xbf16>, vector<8x512xf32> -> vector<8x512xf32>
    %37 = arith.index_cast %31 : i32 to index
    %c0_21 = arith.constant 0 : index
    %c0_22 = arith.constant 0 : index
    %38 = vector.load %arg4[%37, %c0_21, %c0_22] : memref<16x1x512xf32, #tpu.memory_space<vmem>>, vector<1x1x512xf32>
    %39 = vector.shape_cast %38 : vector<1x1x512xf32> to vector<1x512xf32>
    %40 = vector.broadcast %39 : vector<1x512xf32> to vector<8x512xf32>
    %41 = arith.addf %36, %40 : vector<8x512xf32>
    %42 = arith.index_cast %31 : i32 to index
    %c0_23 = arith.constant 0 : index
    %c0_24 = arith.constant 0 : index
    %43 = vector.load %arg5[%42, %c0_23, %c0_24] : memref<16x1x512xf32, #tpu.memory_space<vmem>>, vector<1x1x512xf32>
    %44 = vector.shape_cast %43 : vector<1x1x512xf32> to vector<1x512xf32>
    %45 = vector.broadcast %3 : vector<1x1xf32> to vector<1x512xf32>
    %46 = arith.mulf %45, %44 : vector<1x512xf32>
    %47 = vector.broadcast %46 : vector<1x512xf32> to vector<8x512xf32>
    %48 = arith.addf %41, %47 : vector<8x512xf32>
    %cst_25 = arith.constant 0.000000e+00 : f32
    %49 = vector.broadcast %cst_25 : f32 to vector<8x512xf32>
    %50 = arith.cmpf oge, %48, %49 : vector<8x512xf32>
    %cst_26 = arith.constant 2.000000e-01 : f32
    %51 = vector.broadcast %cst_26 : f32 to vector<8x512xf32>
    %52 = arith.mulf %51, %48 : vector<8x512xf32>
    %53 = arith.select %50, %48, %52 : vector<8x512xi1>, vector<8x512xf32>
    %54 = arith.truncf %53 : vector<8x512xf32> to vector<8x512xbf16>
    %c0_27 = arith.constant 0 : index
    %c512 = arith.constant 512 : index
    %55 = vector.load %arg13[%c0_27, %c512] : memref<8x2048xbf16, #tpu.memory_space<vmem>>, vector<8x512xbf16>
    tpu.vector_store %arg13[%c0_27, %c512], %54 {strides = array<i32>} : memref<8x2048xbf16, #tpu.memory_space<vmem>>, vector<8x512xbf16>,
    %c4_i32_28 = arith.constant 4 : i32
    %56 = arith.muli %arg0, %c4_i32_28 : i32
    %c2_i32 = arith.constant 2 : i32
    %57 = arith.addi %56, %c2_i32 : i32
    %58 = arith.index_cast %57 : i32 to index
    %c0_29 = arith.constant 0 : index
    %c0_30 = arith.constant 0 : index
    %59 = vector.load %arg2[%58, %c0_29, %c0_30] : memref<16x8x32xbf16, #tpu.memory_space<vmem>>, vector<1x8x32xbf16>
    %60 = vector.shape_cast %59 : vector<1x8x32xbf16> to vector<8x32xbf16>
    %c0_31 = arith.constant 0 : index
    %c0_32 = arith.constant 0 : index
    %61 = vector.load %arg3[%c0_31, %c0_32] : memref<32x512xbf16, #tpu.memory_space<vmem>>, vector<32x512xbf16>
    %cst_33 = arith.constant dense<0.000000e+00> : vector<8x512xf32>
    %62 = tpu.matmul %60, %61, %cst_33 {dimension_numbers = #tpu.dot_dimension_numbers<[1], [0], [0], [1], [0, 0, 1, 1], [], []>} : vector<8x32xbf16>, vector<32x512xbf16>, vector<8x512xf32> -> vector<8x512xf32>
    %63 = arith.index_cast %57 : i32 to index
    %c0_34 = arith.constant 0 : index
    %c0_35 = arith.constant 0 : index
    %64 = vector.load %arg4[%63, %c0_34, %c0_35] : memref<16x1x512xf32, #tpu.memory_space<vmem>>, vector<1x1x512xf32>
    %65 = vector.shape_cast %64 : vector<1x1x512xf32> to vector<1x512xf32>
    %66 = vector.broadcast %65 : vector<1x512xf32> to vector<8x512xf32>
    %67 = arith.addf %62, %66 : vector<8x512xf32>
    %68 = arith.index_cast %57 : i32 to index
    %c0_36 = arith.constant 0 : index
    %c0_37 = arith.constant 0 : index
    %69 = vector.load %arg5[%68, %c0_36, %c0_37] : memref<16x1x512xf32, #tpu.memory_space<vmem>>, vector<1x1x512xf32>
    %70 = vector.shape_cast %69 : vector<1x1x512xf32> to vector<1x512xf32>
    %71 = vector.broadcast %3 : vector<1x1xf32> to vector<1x512xf32>
    %72 = arith.mulf %71, %70 : vector<1x512xf32>
    %73 = vector.broadcast %72 : vector<1x512xf32> to vector<8x512xf32>
    %74 = arith.addf %67, %73 : vector<8x512xf32>
    %cst_38 = arith.constant 0.000000e+00 : f32
    %75 = vector.broadcast %cst_38 : f32 to vector<8x512xf32>
    %76 = arith.cmpf oge, %74, %75 : vector<8x512xf32>
    %cst_39 = arith.constant 2.000000e-01 : f32
    %77 = vector.broadcast %cst_39 : f32 to vector<8x512xf32>
    %78 = arith.mulf %77, %74 : vector<8x512xf32>
    %79 = arith.select %76, %74, %78 : vector<8x512xi1>, vector<8x512xf32>
    %80 = arith.truncf %79 : vector<8x512xf32> to vector<8x512xbf16>
    %c0_40 = arith.constant 0 : index
    %c1024 = arith.constant 1024 : index
    %81 = vector.load %arg13[%c0_40, %c1024] : memref<8x2048xbf16, #tpu.memory_space<vmem>>, vector<8x512xbf16>
    tpu.vector_store %arg13[%c0_40, %c1024], %80 {strides = array<i32>} : memref<8x2048xbf16, #tpu.memory_space<vmem>>, vector<8x512xbf16>,
    %c4_i32_41 = arith.constant 4 : i32
    %82 = arith.muli %arg0, %c4_i32_41 : i32
    %c3_i32 = arith.constant 3 : i32
    %83 = arith.addi %82, %c3_i32 : i32
    %84 = arith.index_cast %83 : i32 to index
    %c0_42 = arith.constant 0 : index
    %c0_43 = arith.constant 0 : index
    %85 = vector.load %arg2[%84, %c0_42, %c0_43] : memref<16x8x32xbf16, #tpu.memory_space<vmem>>, vector<1x8x32xbf16>
    %86 = vector.shape_cast %85 : vector<1x8x32xbf16> to vector<8x32xbf16>
    %c0_44 = arith.constant 0 : index
    %c0_45 = arith.constant 0 : index
    %87 = vector.load %arg3[%c0_44, %c0_45] : memref<32x512xbf16, #tpu.memory_space<vmem>>, vector<32x512xbf16>
    %cst_46 = arith.constant dense<0.000000e+00> : vector<8x512xf32>
    %88 = tpu.matmul %86, %87, %cst_46 {dimension_numbers = #tpu.dot_dimension_numbers<[1], [0], [0], [1], [0, 0, 1, 1], [], []>} : vector<8x32xbf16>, vector<32x512xbf16>, vector<8x512xf32> -> vector<8x512xf32>
    %89 = arith.index_cast %83 : i32 to index
    %c0_47 = arith.constant 0 : index
    %c0_48 = arith.constant 0 : index
    %90 = vector.load %arg4[%89, %c0_47, %c0_48] : memref<16x1x512xf32, #tpu.memory_space<vmem>>, vector<1x1x512xf32>
    %91 = vector.shape_cast %90 : vector<1x1x512xf32> to vector<1x512xf32>
    %92 = vector.broadcast %91 : vector<1x512xf32> to vector<8x512xf32>
    %93 = arith.addf %88, %92 : vector<8x512xf32>
    %94 = arith.index_cast %83 : i32 to index
    %c0_49 = arith.constant 0 : index
    %c0_50 = arith.constant 0 : index
    %95 = vector.load %arg5[%94, %c0_49, %c0_50] : memref<16x1x512xf32, #tpu.memory_space<vmem>>, vector<1x1x512xf32>
    %96 = vector.shape_cast %95 : vector<1x1x512xf32> to vector<1x512xf32>
    %97 = vector.broadcast %3 : vector<1x1xf32> to vector<1x512xf32>
    %98 = arith.mulf %97, %96 : vector<1x512xf32>
    %99 = vector.broadcast %98 : vector<1x512xf32> to vector<8x512xf32>
    %100 = arith.addf %93, %99 : vector<8x512xf32>
    %cst_51 = arith.constant 0.000000e+00 : f32
    %101 = vector.broadcast %cst_51 : f32 to vector<8x512xf32>
    %102 = arith.cmpf oge, %100, %101 : vector<8x512xf32>
    %cst_52 = arith.constant 2.000000e-01 : f32
    %103 = vector.broadcast %cst_52 : f32 to vector<8x512xf32>
    %104 = arith.mulf %103, %100 : vector<8x512xf32>
    %105 = arith.select %102, %100, %104 : vector<8x512xi1>, vector<8x512xf32>
    %106 = arith.truncf %105 : vector<8x512xf32> to vector<8x512xbf16>
    %c0_53 = arith.constant 0 : index
    %c1536 = arith.constant 1536 : index
    %107 = vector.load %arg13[%c0_53, %c1536] : memref<8x2048xbf16, #tpu.memory_space<vmem>>, vector<8x512xbf16>
    tpu.vector_store %arg13[%c0_53, %c1536], %106 {strides = array<i32>} : memref<8x2048xbf16, #tpu.memory_space<vmem>>, vector<8x512xbf16>,
    %c0_54 = arith.constant 0 : index
    %c0_55 = arith.constant 0 : index
    %108 = vector.load %arg11[%c0_54, %c0_55] : memref<8x512xf32, #tpu.memory_space<vmem>>, vector<8x512xf32>
    %c0_56 = arith.constant 0 : index
    %c0_57 = arith.constant 0 : index
    %109 = vector.load %arg13[%c0_56, %c0_57] : memref<8x2048xbf16, #tpu.memory_space<vmem>>, vector<8x2048xbf16>
    %c0_58 = arith.constant 0 : index
    %c0_59 = arith.constant 0 : index
    %110 = vector.load %arg6[%c0_58, %c0_59] : memref<2048x512xbf16, #tpu.memory_space<vmem>>, vector<2048x512xbf16>
    %cst_60 = arith.constant dense<0.000000e+00> : vector<8x512xf32>
    %111 = tpu.matmul %109, %110, %cst_60 {dimension_numbers = #tpu.dot_dimension_numbers<[1], [0], [0], [1], [0, 0, 1, 1], [], []>} : vector<8x2048xbf16>, vector<2048x512xbf16>, vector<8x512xf32> -> vector<8x512xf32>
    %112 = arith.addf %108, %111 : vector<8x512xf32>
    %c0_61 = arith.constant 0 : index
    %c0_62 = arith.constant 0 : index
    %113 = vector.load %arg11[%c0_61, %c0_62] : memref<8x512xf32, #tpu.memory_space<vmem>>, vector<8x512xf32>
    tpu.vector_store %arg11[%c0_61, %c0_62], %112 {strides = array<i32>} : memref<8x512xf32, #tpu.memory_space<vmem>>, vector<8x512xf32>,
    %c3_i32_63 = arith.constant 3 : i32
    %114 = arith.cmpi eq, %arg0, %c3_i32_63 : i32
    %115 = arith.extui %114 : i1 to i32
    %c0_i32_64 = arith.constant 0 : i32
    %116 = arith.cmpi ne, %115, %c0_i32_64 : i32
    scf.if %116 {
      %c0_65 = arith.constant 0 : index
      %c0_66 = arith.constant 0 : index
      %117 = vector.load %arg11[%c0_65, %c0_66] : memref<8x512xf32, #tpu.memory_space<vmem>>, vector<8x512xf32>
      %c0_67 = arith.constant 0 : index
      %c0_68 = arith.constant 0 : index
      %118 = vector.load %arg7[%c0_67, %c0_68] : memref<1x512xf32, #tpu.memory_space<vmem>>, vector<1x512xf32>
      %119 = vector.broadcast %118 : vector<1x512xf32> to vector<8x512xf32>
      %120 = arith.addf %117, %119 : vector<8x512xf32>
      %cst_69 = arith.constant 0.000000e+00 : f32
      %121 = vector.broadcast %cst_69 : f32 to vector<8x512xf32>
      %122 = arith.cmpf oge, %120, %121 : vector<8x512xf32>
      %cst_70 = arith.constant 2.000000e-01 : f32
      %123 = vector.broadcast %cst_70 : f32 to vector<8x512xf32>
      %124 = arith.mulf %123, %120 : vector<8x512xf32>
      %125 = arith.select %122, %120, %124 : vector<8x512xi1>, vector<8x512xf32>
      %126 = arith.truncf %125 : vector<8x512xf32> to vector<8x512xbf16>
      %c0_71 = arith.constant 0 : index
      %c0_72 = arith.constant 0 : index
      %127 = vector.load %arg8[%c0_71, %c0_72] : memref<512x128xbf16, #tpu.memory_space<vmem>>, vector<512x128xbf16>
      %cst_73 = arith.constant dense<0.000000e+00> : vector<8x128xf32>
      %128 = tpu.matmul %126, %127, %cst_73 {dimension_numbers = #tpu.dot_dimension_numbers<[1], [0], [0], [1], [0, 0, 1, 1], [], []>} : vector<8x512xbf16>, vector<512x128xbf16>, vector<8x128xf32> -> vector<8x128xf32>
      %c0_74 = arith.constant 0 : index
      %c0_75 = arith.constant 0 : index
      %129 = vector.load %arg9[%c0_74, %c0_75] : memref<1x128xf32, #tpu.memory_space<vmem>>, vector<1x128xf32>
      %130 = vector.broadcast %129 : vector<1x128xf32> to vector<8x128xf32>
      %131 = arith.addf %128, %130 : vector<8x128xf32>
      %c0_76 = arith.constant 0 : index
      %c0_77 = arith.constant 0 : index
      %132 = vector.load %arg10[%c0_76, %c0_77] : memref<8x128xf32, #tpu.memory_space<vmem>>, vector<8x128xf32>
      tpu.vector_store %arg10[%c0_76, %c0_77], %131 {strides = array<i32>} : memref<8x128xf32, #tpu.memory_space<vmem>>, vector<8x128xf32>,
    } else {
    }
    return
  }
  func.func @transform_0(%arg0: i32) -> (i32, i32) {
    %c0_i32 = arith.constant 0 : i32
    %c0_i32_0 = arith.constant 0 : i32
    %c0_i32_1 = arith.constant 0 : i32
    return %c0_i32, %c0_i32_0 : i32, i32
  }
  func.func @transform_1(%arg0: i32) -> (i32, i32, i32) {
    %c0_i32 = arith.constant 0 : i32
    %c0_i32_0 = arith.constant 0 : i32
    %c0_i32_1 = arith.constant 0 : i32
    %c0_i32_2 = arith.constant 0 : i32
    return %c0_i32, %c0_i32_0, %c0_i32_1 : i32, i32, i32
  }
  func.func @transform_2(%arg0: i32) -> (i32, i32) {
    %c0_i32 = arith.constant 0 : i32
    %c0_i32_0 = arith.constant 0 : i32
    %c0_i32_1 = arith.constant 0 : i32
    return %c0_i32, %c0_i32_0 : i32, i32
  }
  func.func @transform_3(%arg0: i32) -> (i32, i32, i32) {
    %c0_i32 = arith.constant 0 : i32
    %c0_i32_0 = arith.constant 0 : i32
    %c0_i32_1 = arith.constant 0 : i32
    %c0_i32_2 = arith.constant 0 : i32
    return %c0_i32, %c0_i32_0, %c0_i32_1 : i32, i32, i32
  }
  func.func @transform_4(%arg0: i32) -> (i32, i32, i32) {
    %c0_i32 = arith.constant 0 : i32
    %c0_i32_0 = arith.constant 0 : i32
    %c0_i32_1 = arith.constant 0 : i32
    %c0_i32_2 = arith.constant 0 : i32
    return %c0_i32, %c0_i32_0, %c0_i32_1 : i32, i32, i32
  }
  func.func @transform_5(%arg0: i32) -> (i32, i32) {
    %c0_i32 = arith.constant 0 : i32
    %c0_i32_0 = arith.constant 0 : i32
    return %arg0, %c0_i32 : i32, i32
  }
  func.func @transform_6(%arg0: i32) -> (i32, i32) {
    %c0_i32 = arith.constant 0 : i32
    %c0_i32_0 = arith.constant 0 : i32
    %c0_i32_1 = arith.constant 0 : i32
    return %c0_i32, %c0_i32_0 : i32, i32
  }
  func.func @transform_7(%arg0: i32) -> (i32, i32) {
    %c0_i32 = arith.constant 0 : i32
    %c0_i32_0 = arith.constant 0 : i32
    %c0_i32_1 = arith.constant 0 : i32
    return %c0_i32, %c0_i32_0 : i32, i32
  }
  func.func @transform_8(%arg0: i32) -> (i32, i32) {
    %c0_i32 = arith.constant 0 : i32
    %c0_i32_0 = arith.constant 0 : i32
    %c0_i32_1 = arith.constant 0 : i32
    return %c0_i32, %c0_i32_0 : i32, i32
  }
  func.func @transform_9(%arg0: i32) -> (i32, i32) {
    %c0_i32 = arith.constant 0 : i32
    %c0_i32_0 = arith.constant 0 : i32
    %c0_i32_1 = arith.constant 0 : i32
    return %c0_i32, %c0_i32_0 : i32, i32
  }
}

</mosaic_0001>

<llo_original>
// kernel: encoder_forward.1
$region0: #{encoder_forward.1}
  #allocation0 [shape = 'u32[]', space=smem, size = 0x4, offset = 0x4, fixed_abs, tag = 'smem constant byte address 0x4 - core index']
  #allocation1 [shape = 'u32[144,128]{1,0:T(1,128)}', space=vmem, size = 0x12000, scoped, tag = 'internal scratch']
  #allocation2 [shape = 'f32[8,512]{1,0:T(8,128)}', space=vmem, size = 0x4000, scoped, tag = 'scratch operand']
  #allocation3 [shape = 'f32[1,1]{1,0:T(1,128)}', space=vmem, size = 0x200, scoped, tag = 'scratch operand']
  #allocation4 [shape = 'bf16[8,2048]{1,0:T(8,128)(2,1)}', space=vmem, size = 0x8000, scoped, tag = 'scratch operand']
  %s0 = inlined_call_operand.vmem [shape: f32[2,48], index: 0, kind: input, shape index: {}]
  %s1 = inlined_call_operand.vmem [shape: bf16[16,8,32], index: 1, kind: input, shape index: {}]
  %s2 = inlined_call_operand.hbm [shape: bf16[32,512], index: 2, kind: input, shape index: {}]
  %s3 = inlined_call_operand.hbm [shape: f32[16,1,512], index: 3, kind: input, shape index: {}]
  %s4 = inlined_call_operand.hbm [shape: f32[16,1,512], index: 4, kind: input, shape index: {}]
  %s5 = inlined_call_operand.hbm [shape: bf16[8192,512], index: 5, kind: input, shape index: {}]
  %s6 = inlined_call_operand.hbm [shape: f32[1,512], index: 6, kind: input, shape index: {}]
  %s7 = inlined_call_operand.hbm [shape: bf16[512,128], index: 7, kind: input, shape index: {}]
  %s8 = inlined_call_operand.hbm [shape: f32[1,128], index: 8, kind: input, shape index: {}]
  %s9 = inlined_call_operand.vmem [shape: f32[8,128], index: 9, kind: output, shape index: {}]
  %s10 = sld [smem:[#allocation0]]
  $region105: #{encoder_forward.1} parent=0
    _
  %s12 = ssub.s32 1, %s10
  %s13 = scalar_select 0, %s12, %s10
  $region1: #{encoder_forward.1} parent=0
    #allocation5 [shape = 'u8[32768]{0}', space=vmem, size = 0x8000, scoped, tag = 'input window, operand 2, single buffered']
    #allocation6 [shape = 's32[2]{0}', space=sflag, size = 0x8, scoped, tag = 'scoped memory for encoder_forward.1']
    #allocation7 [shape = 'u8[32768]{0}', space=vmem, size = 0x8000, scoped, tag = 'input window, operand 3, single buffered']
    #allocation8 [shape = 's32[1]{0}', space=sflag, size = 0x4, scoped, tag = 'scoped memory for encoder_forward.1']
    #allocation9 [shape = 'u8[32768]{0}', space=vmem, size = 0x8000, scoped, tag = 'input window, operand 4, single buffered']
    #allocation10 [shape = 'u8[4194304]{0}', space=vmem, size = 0x400000, scoped, tag = 'input window, operand 5']
    #allocation11 [shape = 's32[2]{0}', space=sflag, size = 0x8, scoped, tag = 'scoped memory for encoder_forward.1']
    #allocation12 [shape = 'u8[2048]{0}', space=vmem, size = 0x800, scoped, tag = 'input window, operand 6, single buffered']
    #allocation13 [shape = 'u8[131072]{0}', space=vmem, size = 0x20000, scoped, tag = 'input window, operand 7, single buffered']
    #allocation14 [shape = 's32[1]{0}', space=sflag, size = 0x4, scoped, tag = 'scoped memory for encoder_forward.1']
    #allocation15 [shape = 'u8[512]{0}', space=vmem, size = 0x400, scoped, tag = 'input window, operand 8, single buffered']
    %14 = vsyncpa [#allocation6], 0
    %15 = vsyncpa [#allocation8], 0
    %16 = vsyncpa [#allocation11], 0
    %s17 = scalar_lea.sflag [#allocation11], 1
    %18 = vsyncpa %s17, 0
    %19 = vsyncpa [#allocation14], 0
    loop: start=0, step=1, limit=6
    $region2: #{encoder_forward.1} parent=1 // loop_pre_header
      _
    $region3: #{encoder_forward.1} parent=1 // loop_header
      %s21 = sphi 0, %s25
      %p22 = scmp.ge.s32.totalorder %s21, 6
      %s29 = sphi 0, %s29
      %s31 = sphi 0, %s29
      %s32 = sphi 0, %s31
      %s46 = sphi 0, %s32
      %s50 = sphi 0, %s50
      %s52 = sphi 0, %s50
      %s53 = sphi 0, %s52
      %s67 = sphi 0, %s53
      %s71 = sphi 0, %s71
      %s73 = sphi 0, %s71
      %s74 = sphi 0, %s73
      %s88 = sphi 0, %s74
      %s92 = sphi 0, %s92
      %s94 = sphi 0, %s92
      %s95 = sphi 0, %s94
      %s109 = sphi 0, %s95
      %s113 = sphi 0, %s113
      %s115 = sphi 0, %s113
      %s116 = sphi 0, %s115
      %s130 = sphi 0, %s116
      %s136 = sphi 0, %s138
      %s139 = sphi 0, %s136
      %s140 = sphi 0, %s139
      %s156 = sphi 0, %s140
      %s160 = sphi 0, %s160
      %s162 = sphi 0, %s160
      %s163 = sphi 0, %s162
      %s177 = sphi 0, %s163
      %s181 = sphi 0, %s181
      %s183 = sphi 0, %s181
      %s184 = sphi 0, %s183
      %s198 = sphi 0, %s184
      %s202 = sphi 0, %s202
      %s204 = sphi 0, %s202
      %s205 = sphi 0, %s204
      %s219 = sphi 0, %s205
      %s223 = sphi 0, %s223
      %s225 = sphi 0, %s223
      %s226 = sphi 0, %s225
      %s240 = sphi 0, %s226
    $region4: #{encoder_forward.1} parent=1 // loop_header_branch
      %24 = sbr.rel (%p22) target = $region8
    $region5: #{encoder_forward.1} parent=1 // loop_body
      %s26 = ssub.s32 %s21, 1
      %s27 = ssub.s32 %s21, 2
      %s28 = sadd.s32 %s21, 1
      %s30 = sadd.s32 %s29, 1
      %p33 = scmp.eq.s32.totalorder %s21, 3
      %p34 = scmp.ne.s32.totalorder %s29, %s31
      %p35 = scmp.eq.s32.totalorder %s21, 0
      %p36 = por %p34, %p35
      %p37 = scmp.ne.s32.totalorder %s29, %s31
      %p38 = scmp.eq.s32.totalorder %s26, 3
      %p39 = por %p37, %p38
      %p40 = scmp.ne.s32.totalorder %s31, %s32
      %p41 = scmp.eq.s32.totalorder %s26, 0
      %p42 = por %p40, %p41
      %p43 = scmp.ne.s32.totalorder %s31, %s32
      %p44 = scmp.eq.s32.totalorder %s27, 3
      %p45 = por %p43, %p44
      %p47 = scmp.ne.s32.totalorder %s32, %s46
      %p48 = scmp.eq.s32.totalorder %s27, 0
      %p49 = por %p47, %p48
      %s51 = sadd.s32 %s50, 1
      %p54 = scmp.eq.s32.totalorder %s21, 3
      %p55 = scmp.ne.s32.totalorder %s50, %s52
      %p56 = scmp.eq.s32.totalorder %s21, 0
      %p57 = por %p55, %p56
      %p58 = scmp.ne.s32.totalorder %s50, %s52
      %p59 = scmp.eq.s32.totalorder %s26, 3
      %p60 = por %p58, %p59
      %p61 = scmp.ne.s32.totalorder %s52, %s53
      %p62 = scmp.eq.s32.totalorder %s26, 0
      %p63 = por %p61, %p62
      %p64 = scmp.ne.s32.totalorder %s52, %s53
      %p65 = scmp.eq.s32.totalorder %s27, 3
      %p66 = por %p64, %p65
      %p68 = scmp.ne.s32.totalorder %s53, %s67
      %p69 = scmp.eq.s32.totalorder %s27, 0
      %p70 = por %p68, %p69
      %s72 = sadd.s32 %s71, 1
      %p75 = scmp.eq.s32.totalorder %s21, 3
      %p76 = scmp.ne.s32.totalorder %s71, %s73
      %p77 = scmp.eq.s32.totalorder %s21, 0
      %p78 = por %p76, %p77
      %p79 = scmp.ne.s32.totalorder %s71, %s73
      %p80 = scmp.eq.s32.totalorder %s26, 3
      %p81 = por %p79, %p80
      %p82 = scmp.ne.s32.totalorder %s73, %s74
      %p83 = scmp.eq.s32.totalorder %s26, 0
      %p84 = por %p82, %p83
      %p85 = scmp.ne.s32.totalorder %s73, %s74
      %p86 = scmp.eq.s32.totalorder %s27, 3
      %p87 = por %p85, %p86
      %p89 = scmp.ne.s32.totalorder %s74, %s88
      %p90 = scmp.eq.s32.totalorder %s27, 0
      %p91 = por %p89, %p90
      %s93 = sadd.s32 %s92, 1
      %p96 = scmp.eq.s32.totalorder %s21, 3
      %p97 = scmp.ne.s32.totalorder %s92, %s94
      %p98 = scmp.eq.s32.totalorder %s21, 0
      %p99 = por %p97, %p98
      %p100 = scmp.ne.s32.totalorder %s92, %s94
      %p101 = scmp.eq.s32.totalorder %s26, 3
      %p102 = por %p100, %p101
      %p103 = scmp.ne.s32.totalorder %s94, %s95
      %p104 = scmp.eq.s32.totalorder %s26, 0
      %p105 = por %p103, %p104
      %p106 = scmp.ne.s32.totalorder %s94, %s95
      %p107 = scmp.eq.s32.totalorder %s27, 3
      %p108 = por %p106, %p107
      %p110 = scmp.ne.s32.totalorder %s95, %s109
      %p111 = scmp.eq.s32.totalorder %s27, 0
      %p112 = por %p110, %p111
      %s114 = sadd.s32 %s113, 1
      %p117 = scmp.eq.s32.totalorder %s21, 3
      %p118 = scmp.ne.s32.totalorder %s113, %s115
      %p119 = scmp.eq.s32.totalorder %s21, 0
      %p120 = por %p118, %p119
      %p121 = scmp.ne.s32.totalorder %s113, %s115
      %p122 = scmp.eq.s32.totalorder %s26, 3
      %p123 = por %p121, %p122
      %p124 = scmp.ne.s32.totalorder %s115, %s116
      %p125 = scmp.eq.s32.totalorder %s26, 0
      %p126 = por %p124, %p125
      %p127 = scmp.ne.s32.totalorder %s115, %s116
      %p128 = scmp.eq.s32.totalorder %s27, 3
      %p129 = por %p127, %p128
      %p131 = scmp.ne.s32.totalorder %s116, %s130
      %p132 = scmp.eq.s32.totalorder %s27, 0
      %p133 = por %p131, %p132
      %s134 = ssub.s32 %s21, %s28
      %p135 = scmp.eq.s32.totalorder %s134, 0
      %s137 = sadd.s32 %s136, 1
      %s138 = scalar_select %p135, %s136, %s137
      %p141 = pneg %p135
      %p142 = scmp.eq.s32.totalorder %s21, 3
      %p143 = por %p141, %p142
      %p144 = scmp.ne.s32.totalorder %s136, %s139
      %p145 = scmp.eq.s32.totalorder %s21, 0
      %p146 = por %p144, %p145
      %p147 = scmp.ne.s32.totalorder %s136, %s139
      %p148 = scmp.eq.s32.totalorder %s26, 3
      %p149 = por %p147, %p148
      %p150 = scmp.ne.s32.totalorder %s139, %s140
      %p151 = scmp.eq.s32.totalorder %s26, 0
      %p152 = por %p150, %p151
      %p153 = scmp.ne.s32.totalorder %s139, %s140
      %p154 = scmp.eq.s32.totalorder %s27, 3
      %p155 = por %p153, %p154
      %p157 = scmp.ne.s32.totalorder %s140, %s156
      %p158 = scmp.eq.s32.totalorder %s27, 0
      %p159 = por %p157, %p158
      %s161 = sadd.s32 %s160, 1
      %p164 = scmp.eq.s32.totalorder %s21, 3
      %p165 = scmp.ne.s32.totalorder %s160, %s162
      %p166 = scmp.eq.s32.totalorder %s21, 0
      %p167 = por %p165, %p166
      %p168 = scmp.ne.s32.totalorder %s160, %s162
      %p169 = scmp.eq.s32.totalorder %s26, 3
      %p170 = por %p168, %p169
      %p171 = scmp.ne.s32.totalorder %s162, %s163
      %p172 = scmp.eq.s32.totalorder %s26, 0
      %p173 = por %p171, %p172
      %p174 = scmp.ne.s32.totalorder %s162, %s163
      %p175 = scmp.eq.s32.totalorder %s27, 3
      %p176 = por %p174, %p175
      %p178 = scmp.ne.s32.totalorder %s163, %s177
      %p179 = scmp.eq.s32.totalorder %s27, 0
      %p180 = por %p178, %p179
      %s182 = sadd.s32 %s181, 1
      %p185 = scmp.eq.s32.totalorder %s21, 3
      %p186 = scmp.ne.s32.totalorder %s181, %s183
      %p187 = scmp.eq.s32.totalorder %s21, 0
      %p188 = por %p186, %p187
      %p189 = scmp.ne.s32.totalorder %s181, %s183
      %p190 = scmp.eq.s32.totalorder %s26, 3
      %p191 = por %p189, %p190
      %p192 = scmp.ne.s32.totalorder %s183, %s184
      %p193 = scmp.eq.s32.totalorder %s26, 0
      %p194 = por %p192, %p193
      %p195 = scmp.ne.s32.totalorder %s183, %s184
      %p196 = scmp.eq.s32.totalorder %s27, 3
      %p197 = por %p195, %p196
      %p199 = scmp.ne.s32.totalorder %s184, %s198
      %p200 = scmp.eq.s32.totalorder %s27, 0
      %p201 = por %p199, %p200
      %s203 = sadd.s32 %s202, 1
      %p206 = scmp.eq.s32.totalorder %s21, 3
      %p207 = scmp.ne.s32.totalorder %s202, %s204
      %p208 = scmp.eq.s32.totalorder %s21, 0
      %p209 = por %p207, %p208
      %p210 = scmp.ne.s32.totalorder %s202, %s204
      %p211 = scmp.eq.s32.totalorder %s26, 3
      %p212 = por %p210, %p211
      %p213 = scmp.ne.s32.totalorder %s204, %s205
      %p214 = scmp.eq.s32.totalorder %s26, 0
      %p215 = por %p213, %p214
      %p216 = scmp.ne.s32.totalorder %s204, %s205
      %p217 = scmp.eq.s32.totalorder %s27, 3
      %p218 = por %p216, %p217
      %p220 = scmp.ne.s32.totalorder %s205, %s219
      %p221 = scmp.eq.s32.totalorder %s27, 0
      %p222 = por %p220, %p221
      %s224 = sadd.s32 %s223, 1
      %p227 = scmp.eq.s32.totalorder %s21, 3
      %p228 = scmp.ne.s32.totalorder %s223, %s225
      %p229 = scmp.eq.s32.totalorder %s21, 0
      %p230 = por %p228, %p229
      %p231 = scmp.ne.s32.totalorder %s223, %s225
      %p232 = scmp.eq.s32.totalorder %s26, 3
      %p233 = por %p231, %p232
      %p234 = scmp.ne.s32.totalorder %s225, %s226
      %p235 = scmp.eq.s32.totalorder %s26, 0
      %p236 = por %p234, %p235
      %p237 = scmp.ne.s32.totalorder %s225, %s226
      %p238 = scmp.eq.s32.totalorder %s27, 3
      %p239 = por %p237, %p238
      %p241 = scmp.ne.s32.totalorder %s226, %s240
      %p242 = scmp.eq.s32.totalorder %s27, 0
      %p243 = por %p241, %p242
      %p244 = scmp.le.s32.totalorder 1, %s21
      %p245 = scmp.lt.s32.totalorder %s21, 5
      %p246 = pnand %p244, %p245
      %p247 = pneg %p246
      // Predicated region
      $region9: #{encoder_forward.1} parent=5 // pred_check
        _
      $region10: #{encoder_forward.1} parent=5 // pred_check_branch
        %249 = sbr.rel (%p246) target = $region12
      $region11: #{encoder_forward.1} parent=5 // pred_region
        %s250 = ssub.s32 %s21, 1
        // Predicated region
        $region13: #{encoder_forward.1} parent=11 // pred_check
          %p251 = pneg %p42
        $region14: #{encoder_forward.1} parent=11 // pred_check_branch
          %253 = sbr.rel (%p251) target = $region16
        $region15: #{encoder_forward.1} parent=11 // pred_region
          _
        $region16: #{encoder_forward.1} parent=11 // pred_fallthru
          _
        // Predicated region
        $region17: #{encoder_forward.1} parent=11 // pred_check
          %p254 = pneg %p63
        $region18: #{encoder_forward.1} parent=11 // pred_check_branch
          %256 = sbr.rel (%p254) target = $region20
        $region19: #{encoder_forward.1} parent=11 // pred_region
          _
        $region20: #{encoder_forward.1} parent=11 // pred_fallthru
          _
        // Predicated region
        $region21: #{encoder_forward.1} parent=11 // pred_check
          %p257 = pneg %p84
        $region22: #{encoder_forward.1} parent=11 // pred_check_branch
          %259 = sbr.rel (%p257) target = $region24
        $region23: #{encoder_forward.1} parent=11 // pred_region
          %s261 = ssub.s32 1024, 1024
          %262 = vsyncadd [#allocation6], %s261
          %s263 = sshll.u32 [#allocation5], 4
          %s264 = int_to_ptr.vmem [resolvable:$true] %s263
          %269 = dma.hbm_to_vmem [thread:$0]  %s2, 1024, %s264, [#allocation6], 256, 256, 16
        $region24: #{encoder_forward.1} parent=11 // pred_fallthru
          _
        // Predicated region
        $region25: #{encoder_forward.1} parent=11 // pred_check
          %p270 = pneg %p105
        $region26: #{encoder_forward.1} parent=11 // pred_check_branch
          %272 = sbr.rel (%p270) target = $region28
        $region27: #{encoder_forward.1} parent=11 // pred_region
          %s274 = ssub.s32 1024, 1024
          %275 = vsyncadd [#allocation8], %s274
          %s276 = sshll.u32 [#allocation7], 4
          %s277 = int_to_ptr.vmem [resolvable:$true] %s276
          %282 = dma.hbm_to_vmem [thread:$0]  %s3, 1024, %s277, [#allocation8], 64, 64, 4
        $region28: #{encoder_forward.1} parent=11 // pred_fallthru
          _
        // Predicated region
        $region29: #{encoder_forward.1} parent=11 // pred_check
          %p283 = pneg %p126
        $region30: #{encoder_forward.1} parent=11 // pred_check_branch
          %285 = sbr.rel (%p283) target = $region32
        $region31: #{encoder_forward.1} parent=11 // pred_region
          %s287 = ssub.s32 1024, 1024
          %288 = vsyncadd [#allocation8], %s287
          %s289 = sshll.u32 [#allocation9], 4
          %s290 = int_to_ptr.vmem [resolvable:$true] %s289
          %295 = dma.hbm_to_vmem [thread:$0]  %s4, 1024, %s290, [#allocation8], 64, 64, 4
        $region32: #{encoder_forward.1} parent=11 // pred_fallthru
          _
        // Predicated region
        $region33: #{encoder_forward.1} parent=11 // pred_check
          %p296 = pneg %p173
        $region34: #{encoder_forward.1} parent=11 // pred_check_branch
          %298 = sbr.rel (%p296) target = $region36
        $region35: #{encoder_forward.1} parent=11 // pred_region
          %s300 = ssub.s32 64, 64
          %301 = vsyncadd [#allocation11], %s300
          %s303 = sshll.u32 [#allocation12], 4
          %s304 = int_to_ptr.vmem [resolvable:$true] %s303
          %306 = dma.hbm_to_vmem [thread:$0]  %s6, 64, %s304, [#allocation11]
        $region36: #{encoder_forward.1} parent=11 // pred_fallthru
          _
        // Predicated region
        $region37: #{encoder_forward.1} parent=11 // pred_check
          %p307 = pneg %p194
        $region38: #{encoder_forward.1} parent=11 // pred_check_branch
          %309 = sbr.rel (%p307) target = $region40
        $region39: #{encoder_forward.1} parent=11 // pred_region
          %s311 = ssub.s32 4096, 4096
          %312 = vsyncadd [#allocation14], %s311
          %s313 = sshll.u32 [#allocation13], 4
          %s314 = int_to_ptr.vmem [resolvable:$true] %s313
          %319 = dma.hbm_to_vmem [thread:$0]  %s7, 4096, %s314, [#allocation14], 64, 64, 4
        $region40: #{encoder_forward.1} parent=11 // pred_fallthru
          _
        // Predicated region
        $region41: #{encoder_forward.1} parent=11 // pred_check
          %p320 = pneg %p215
        $region42: #{encoder_forward.1} parent=11 // pred_check_branch
          %322 = sbr.rel (%p320) target = $region44
        $region43: #{encoder_forward.1} parent=11 // pred_region
          %s324 = ssub.s32 16, 16
          %325 = vsyncadd [#allocation14], %s324
          %s327 = sshll.u32 [#allocation15], 4
          %s328 = int_to_ptr.vmem [resolvable:$true] %s327
          %330 = dma.hbm_to_vmem [thread:$0]  %s8, 16, %s328, [#allocation14]
        $region44: #{encoder_forward.1} parent=11 // pred_fallthru
          _
      $region12: #{encoder_forward.1} parent=5 // pred_fallthru
        _
      %p331 = scmp.lt.s32.totalorder %s21, 4
      // Predicated region
      $region45: #{encoder_forward.1} parent=5 // pred_check
        %p332 = pneg %p331
      $region46: #{encoder_forward.1} parent=5 // pred_check_branch
        %334 = sbr.rel (%p332) target = $region48
      $region47: #{encoder_forward.1} parent=5 // pred_region
        // Predicated region
        $region49: #{encoder_forward.1} parent=47 // pred_check
          %p335 = pneg %p146
        $region50: #{encoder_forward.1} parent=47 // pred_check_branch
          %337 = sbr.rel (%p335) target = $region52
        $region51: #{encoder_forward.1} parent=47 // pred_region
          %s338 = sand.u32 %s21, 1
          %s339 = scalar_lea.sflag [#allocation11], %s338
          %s340 = sand.u32 %s136, 1
          %s341 = smul.addr %s340, 4096
          %s342 = scalar_lea.vmem [#allocation10], %s341
          %s343 = smul.u32 256, %s21
          %s345 = ssub.s32 65536, 65536
          %346 = vsyncadd %s339, %s345
          %s347 = smul.addr %s343, 4
          %s348 = smul.addr %s347, 64
          %s349 = scalar_lea.hbm %s5, %s348
          %s350 = sshll.u32 %s342, 4
          %s351 = int_to_ptr.vmem [resolvable:$true] %s350
          %356 = dma.hbm_to_vmem [thread:$0]  %s349, 65536, %s351, %s339, 256, 256, 16
        $region52: #{encoder_forward.1} parent=47 // pred_fallthru
          _
      $region48: #{encoder_forward.1} parent=5 // pred_fallthru
        _
      %p357 = scmp.le.s32.totalorder 1, %s21
      %p358 = scmp.lt.s32.totalorder %s21, 5
      %p359 = pnand %p357, %p358
      %p360 = pneg %p359
      // Predicated region
      $region53: #{encoder_forward.1} parent=5 // pred_check
        _
      $region54: #{encoder_forward.1} parent=5 // pred_check_branch
        %362 = sbr.rel (%p359) target = $region56
      $region55: #{encoder_forward.1} parent=5 // pred_region
        %s363 = ssub.s32 %s21, 1
        // Predicated region
        $region57: #{encoder_forward.1} parent=55 // pred_check
          %p364 = pneg %p84
        $region58: #{encoder_forward.1} parent=55 // pred_check_branch
          %366 = sbr.rel (%p364) target = $region60
        $region59: #{encoder_forward.1} parent=55 // pred_region
          %367 = dma.done [#allocation6], 1024
        $region60: #{encoder_forward.1} parent=55 // pred_fallthru
          _
        // Predicated region
        $region61: #{encoder_forward.1} parent=55 // pred_check
          %p368 = pneg %p105
        $region62: #{encoder_forward.1} parent=55 // pred_check_branch
          %370 = sbr.rel (%p368) target = $region64
        $region63: #{encoder_forward.1} parent=55 // pred_region
          %371 = dma.done [#allocation8], 1024
        $region64: #{encoder_forward.1} parent=55 // pred_fallthru
          _
        // Predicated region
        $region65: #{encoder_forward.1} parent=55 // pred_check
          %p372 = pneg %p126
        $region66: #{encoder_forward.1} parent=55 // pred_check_branch
          %374 = sbr.rel (%p372) target = $region68
        $region67: #{encoder_forward.1} parent=55 // pred_region
          %375 = dma.done [#allocation8], 1024
        $region68: #{encoder_forward.1} parent=55 // pred_fallthru
          _
        %s376 = sand.u32 %s26, 1
        %s377 = scalar_lea.sflag [#allocation11], %s376
        %s378 = sand.u32 %s139, 1
        %s379 = smul.addr %s378, 4096
        %s380 = scalar_lea.vmem [#allocation10], %s379
        // Predicated region
        $region69: #{encoder_forward.1} parent=55 // pred_check
          %p381 = pneg %p152
        $region70: #{encoder_forward.1} parent=55 // pred_check_branch
          %383 = sbr.rel (%p381) target = $region72
        $region71: #{encoder_forward.1} parent=55 // pred_region
          %384 = dma.done %s377, 65536
        $region72: #{encoder_forward.1} parent=55 // pred_fallthru
          _
        // Predicated region
        $region73: #{encoder_forward.1} parent=55 // pred_check
          %p385 = pneg %p173
        $region74: #{encoder_forward.1} parent=55 // pred_check_branch
          %387 = sbr.rel (%p385) target = $region76
        $region75: #{encoder_forward.1} parent=55 // pred_region
          %388 = dma.done [#allocation11], 64
        $region76: #{encoder_forward.1} parent=55 // pred_fallthru
          _
        // Predicated region
        $region77: #{encoder_forward.1} parent=55 // pred_check
          %p389 = pneg %p194
        $region78: #{encoder_forward.1} parent=55 // pred_check_branch
          %391 = sbr.rel (%p389) target = $region80
        $region79: #{encoder_forward.1} parent=55 // pred_region
          %392 = dma.done [#allocation14], 4096
        $region80: #{encoder_forward.1} parent=55 // pred_fallthru
          _
        // Predicated region
        $region81: #{encoder_forward.1} parent=55 // pred_check
          %p393 = pneg %p215
        $region82: #{encoder_forward.1} parent=55 // pred_check_branch
          %395 = sbr.rel (%p393) target = $region84
        $region83: #{encoder_forward.1} parent=55 // pred_region
          %396 = dma.done [#allocation14], 16
        $region84: #{encoder_forward.1} parent=55 // pred_fallthru
          _
        %p397 = pneg %p42
        %p398 = pneg %p39
        %p399 = pneg %p63
        %p400 = pneg %p60
        %p401 = pneg %p84
        %p402 = pneg %p81
        %p403 = pneg %p105
        %p404 = pneg %p102
        %p405 = pneg %p126
        %p406 = pneg %p123
        %s407 = sand.u32 %s26, 1
        %s408 = scalar_lea.sflag [#allocation11], %s407
        %s409 = sand.u32 %s139, 1
        %s410 = smul.addr %s409, 4096
        %s411 = scalar_lea.vmem [#allocation10], %s410
        %p412 = pneg %p152
        %p413 = pneg %p149
        %p414 = pneg %p173
        %p415 = pneg %p170
        %p416 = pneg %p194
        %p417 = pneg %p191
        %p418 = pneg %p215
        %p419 = pneg %p212
        %p420 = pneg %p236
        %p421 = pneg %p233
        %s422 = smul.u32 256, %s26
        %p424 = scmp.eq.s32.totalorder %s26, 0
        // Predicated region
        $region85: #{encoder_forward.1} parent=55 // pred_check
          %p425 = pneg %p424
        $region86: #{encoder_forward.1} parent=55 // pred_check_branch
          %427 = sbr.rel (%p425) target = $region88
        $region87: #{encoder_forward.1} parent=55 // pred_region
          %v428 = vld [vmem:[%s0] sm:$0x3]
          %vm429 = vcmask 386048
          %v430 = vsel %vm429, %v428, 0.0
          %v431 = vrot.slane %v430, 4
          %v432 = vadd.f32 %v430, %v431
          %v433 = vrot.slane %v432, 2
          %v434 = vadd.f32 %v432, %v433
          %v435 = vrot.slane %v434, 1
          %v436 = vadd.f32 %v434, %v435
          %v437 = vrcp.pop 2.0
          %v438 = vmul.f32 %v436, %v437
          %v439 = vsub.f32 %v428, %v438
          %v440 = vmul.f32 %v439, %v439
          %v441 = vsel %vm429, %v440, 0.0
          %v442 = vrot.slane %v441, 4
          %v443 = vadd.f32 %v441, %v442
          %v444 = vrot.slane %v443, 2
          %v445 = vadd.f32 %v443, %v444
          %v446 = vrot.slane %v445, 1
          %v447 = vadd.f32 %v445, %v446
          %v448 = vrsqrt.pop %v447
          %v449 = vmul.f32 %v447, %v448
          %vm450 = vcmp.eq.f32.partialorder %v447, inf
          %v451 = vsel %vm450, %v447, %v449
          %vm452 = vcmp.eq.f32.partialorder %v447, 0.0
          %v453 = vand.u32 %v447, 2147483648
          %v454 = vsel %vm452, %v453, %v451
          %vm455 = vcmask 392192
          %v456 = vsel %vm455, %v454, 0.0
          %457 = vadd.xlane.f32.xlu0 %v456
          %v458 = vpop.xlane.xlu0 %457
          %v459 = vrcp.pop 48.0
          %v460 = vmul.f32 %v458, %v459
          %vm461 = vcmask 0
          %462 = vst.msk [vmem:[#allocation3] sm:$0x1] %vm461, %v460
          %463 = vst [vmem:[#allocation2] sm:$0xff] 0.0
          %464 = vst [vmem:[#allocation2 + $0x8] sm:$0xff] 0.0
          %465 = vst [vmem:[#allocation2 + $0x10] sm:$0xff] 0.0
          %466 = vst [vmem:[#allocation2 + $0x18] sm:$0xff] 0.0
        $region88: #{encoder_forward.1} parent=55 // pred_fallthru
          _
        %v467 = vld [vmem:[#allocation3] sm:$0x1]
        %s468 = smul.u32 %s26, 4
        %s469 = smul.addr %s468, 4
        %s470 = scalar_lea.vmem %s1, %s469
        %v471 = vld [vmem:[%s470] sm:$0xf]
        %v472 = vld [vmem:[#allocation5] sm:$0xff]
        %v473 = vld [vmem:[#allocation5 + $0x8] sm:$0xff]
        %v474 = vld [vmem:[#allocation5 + $0x10] sm:$0xff]
        %v475 = vld [vmem:[#allocation5 + $0x18] sm:$0xff]
        %v476 = vld [vmem:[#allocation5 + $0x20] sm:$0xff]
        %v477 = vld [vmem:[#allocation5 + $0x28] sm:$0xff]
        %v478 = vld [vmem:[#allocation5 + $0x30] sm:$0xff]
        %v479 = vld [vmem:[#allocation5 + $0x38] sm:$0xff]
        %s480 = smul.u32 %s468, 4
        %s481 = scalar_lea.vmem [#allocation7], %s480
        %v482 = vld [vmem:[%s481] sm:$0xf]
        %v484 = vlaneseq
        %v485 = vshrl.u32 %v484, 7
        %v486 = vsub.s32 0, %v485
        %v487 = vrot.slane %v482, %v486
        %v488 = vlaneseq
        %v489 = vshrl.u32 %v488, 7
        %v490 = vsub.s32 1, %v489
        %v491 = vrot.slane %v482, %v490
        %v492 = vlaneseq
        %v493 = vshrl.u32 %v492, 7
        %v494 = vsub.s32 2, %v493
        %v495 = vrot.slane %v482, %v494
        %v496 = vlaneseq
        %v497 = vshrl.u32 %v496, 7
        %v498 = vsub.s32 3, %v497
        %v499 = vrot.slane %v482, %v498
        %v512 = vunpack.c.l.b16 %v472
        %v513 = vunpack.c.h.b16 %v472
        %v514 = vunpack.c.l.b16 %v473
        %v515 = vunpack.c.h.b16 %v473
        %v516 = vunpack.c.l.b16 %v474
        %v517 = vunpack.c.h.b16 %v474
        %v518 = vunpack.c.l.b16 %v475
        %v519 = vunpack.c.h.b16 %v475
        %v520 = vunpack.c.l.b16 %v476
        %v521 = vunpack.c.h.b16 %v476
        %v522 = vunpack.c.l.b16 %v477
        %v523 = vunpack.c.h.b16 %v477
        %v524 = vunpack.c.l.b16 %v478
        %v525 = vunpack.c.h.b16 %v478
        %v526 = vunpack.c.l.b16 %v479
        %v527 = vunpack.c.h.b16 %v479
        %v528 = vpack.c.b16 %v516, %v512
        %v529 = vpack.c.b16 %v517, %v513
        %v530 = vpack.c.b16 %v518, %v514
        %v531 = vpack.c.b16 %v519, %v515
        %v532 = vpack.c.b16 %v524, %v520
        %v533 = vpack.c.b16 %v525, %v521
        %v534 = vpack.c.b16 %v526, %v522
        %v535 = vpack.c.b16 %v527, %v523
        %vm544 = vcmask 261120
        %v546 = vsel %vm544, %v471, 0
        %548 = vmatprep.subr.bf16.mxu0 %v529
        %549 = vmatpush1.bf16.msra.mxu0 %v528
        %550 = vmatprep.subr.bf16.mxu0 %v533
        %551 = vmatpush1.bf16.msra.mxu0 %v532
        %552 = vmatprep.subr.bf16.mxu0 0
        %553 = vmatpush1.bf16.msra.mxu0 0
        %554 = vmatprep.subr.bf16.mxu0 0
        %555 = vmatpush1.bf16.msra.mxu0 0
        %556 = vmatprep.subr.bf16.mxu0 0
        %557 = vmatpush1.bf16.msra.mxu0 0
        %558 = vmatprep.subr.bf16.mxu0 0
        %559 = vmatpush1.bf16.msra.mxu0 0
        %560 = vmatprep.subr.bf16.mxu0 0
        %561 = vmatpush1.bf16.msra.mxu0 0
        %562 = vmatprep.subr.bf16.mxu0 0
        %563 = vmatpush1.bf16.msra.mxu0 0
        %564 = vmatprep.subr.bf16.mxu0 0
        %565 = vmatpush1.bf16.msra.mxu0 0
        %566 = vmatprep.subr.bf16.mxu0 0
        %567 = vmatpush1.bf16.msra.mxu0 0
        %568 = vmatprep.subr.bf16.mxu0 0
        %569 = vmatpush1.bf16.msra.mxu0 0
        %570 = vmatprep.subr.bf16.mxu0 0
        %571 = vmatpush1.bf16.msra.mxu0 0
        %572 = vmatprep.subr.bf16.mxu0 0
        %573 = vmatpush1.bf16.msra.mxu0 0
        %574 = vmatprep.subr.bf16.mxu0 0
        %575 = vmatpush1.bf16.msra.mxu0 0
        %576 = vmatprep.subr.bf16.mxu0 0
        %577 = vmatpush1.bf16.msra.mxu0 0
        %578 = vmatprep.subr.bf16.mxu0 0
        %579 = vmatpush1.bf16.msra.mxu0 0
        %580 = vmatprep.mubr.bf16.mxu0 0
        %581 = vmatmul.mubr.bf16.gmra.mrb[0].mxu0 %v546
        %v582 = vpop.f32.mrb[0].mxu0
        %v583 = vadd.f32 %v487, %v582
        %v584 = vpop.f32.mrb[0].mxu0
        %v585 = vadd.f32 %v491, %v584
        %v586 = vpop.f32.mrb[0].mxu0
        %v587 = vpop.f32.mrb[0].mxu0
        %588 = vdwg.mxu0
        %589 = vmatprep.subr.bf16.mxu0 %v531
        %590 = vmatpush1.bf16.msra.mxu0 %v530
        %591 = vmatprep.subr.bf16.mxu0 %v535
        %592 = vmatpush1.bf16.msra.mxu0 %v534
        %593 = vmatprep.subr.bf16.mxu0 0
        %594 = vmatpush1.bf16.msra.mxu0 0
        %595 = vmatprep.subr.bf16.mxu0 0
        %596 = vmatpush1.bf16.msra.mxu0 0
        %597 = vmatprep.subr.bf16.mxu0 0
        %598 = vmatpush1.bf16.msra.mxu0 0
        %599 = vmatprep.subr.bf16.mxu0 0
        %600 = vmatpush1.bf16.msra.mxu0 0
        %601 = vmatprep.subr.bf16.mxu0 0
        %602 = vmatpush1.bf16.msra.mxu0 0
        %603 = vmatprep.subr.bf16.mxu0 0
        %604 = vmatpush1.bf16.msra.mxu0 0
        %605 = vmatprep.subr.bf16.mxu0 0
        %606 = vmatpush1.bf16.msra.mxu0 0
        %607 = vmatprep.subr.bf16.mxu0 0
        %608 = vmatpush1.bf16.msra.mxu0 0
        %609 = vmatprep.subr.bf16.mxu0 0
        %610 = vmatpush1.bf16.msra.mxu0 0
        %611 = vmatprep.subr.bf16.mxu0 0
        %612 = vmatpush1.bf16.msra.mxu0 0
        %613 = vmatprep.subr.bf16.mxu0 0
        %614 = vmatpush1.bf16.msra.mxu0 0
        %615 = vmatprep.subr.bf16.mxu0 0
        %616 = vmatpush1.bf16.msra.mxu0 0
        %617 = vmatprep.subr.bf16.mxu0 0
        %618 = vmatpush1.bf16.msra.mxu0 0
        %619 = vmatprep.subr.bf16.mxu0 0
        %620 = vmatpush1.bf16.msra.mxu0 0
        %621 = vmatprep.mubr.bf16.mxu0 0
        %622 = vmatmul.mubr.bf16.gmra.mrb[0].mxu0 %v546
        %v623 = vpop.f32.mrb[0].mxu0
        %v624 = vadd.f32 %v495, %v623
        %v625 = vpop.f32.mrb[0].mxu0
        %v626 = vadd.f32 %v499, %v625
        %v627 = vpop.f32.mrb[0].mxu0
        %v628 = vpop.f32.mrb[0].mxu0
        %629 = vdwg.mxu0
        %s630 = scalar_lea.vmem [#allocation9], %s480
        %v631 = vld [vmem:[%s630] sm:$0xf]
        %633 = vset.pattern.permute.xlu0 0
        %634 = vperm.xlu0 %633, %v467
        %v635 = vpop.permute.xlu0 %634
        %v637 = vlaneseq
        %v638 = vshrl.u32 %v637, 7
        %v639 = vsub.s32 0, %v638
        %v640 = vrot.slane %v635, %v639
        %v641 = vmul.f32 %v640, %v631
        %v643 = vlaneseq
        %v644 = vshrl.u32 %v643, 7
        %v645 = vsub.s32 0, %v644
        %v646 = vrot.slane %v641, %v645
        %v647 = vlaneseq
        %v648 = vshrl.u32 %v647, 7
        %v649 = vsub.s32 1, %v648
        %v650 = vrot.slane %v641, %v649
        %v651 = vlaneseq
        %v652 = vshrl.u32 %v651, 7
        %v653 = vsub.s32 2, %v652
        %v654 = vrot.slane %v641, %v653
        %v655 = vlaneseq
        %v656 = vshrl.u32 %v655, 7
        %v657 = vsub.s32 3, %v656
        %v658 = vrot.slane %v641, %v657
        %v663 = vadd.f32 %v583, %v646
        %v664 = vadd.f32 %v585, %v650
        %v665 = vadd.f32 %v624, %v654
        %v666 = vadd.f32 %v626, %v658
        %vm667 = vcmp.ge.f32.partialorder %v663, 0.0
        %vm668 = vcmp.ge.f32.partialorder %v664, 0.0
        %vm669 = vcmp.ge.f32.partialorder %v665, 0.0
        %vm670 = vcmp.ge.f32.partialorder %v666, 0.0
        %v671 = vmul.f32 %v663, 0.2
        %v672 = vmul.f32 %v664, 0.2
        %v673 = vmul.f32 %v665, 0.2
        %v674 = vmul.f32 %v666, 0.2
        %v675 = vsel %vm667, %v663, %v671
        %v676 = vsel %vm668, %v664, %v672
        %v677 = vsel %vm669, %v665, %v673
        %v678 = vsel %vm670, %v666, %v674
        %v679 = vpack.c.bf16 %v675, %v675
        %v680 = vpack.c.bf16 %v676, %v676
        %v681 = vpack.c.bf16 %v677, %v677
        %v682 = vpack.c.bf16 %v678, %v678
        %v687 = vunpack.c.l.b16 %v679
        %v688 = vunpack.c.l.b16 %v680
        %v689 = vunpack.c.l.b16 %v681
        %v690 = vunpack.c.l.b16 %v682
        %v691 = vpack.c.b16 %v688, %v687
        %v692 = vpack.c.b16 %v690, %v689
        %695 = vst [vmem:[#allocation4] sm:$0xff] %v691
        %696 = vst [vmem:[#allocation4 + $0x8] sm:$0xff] %v692
        %s697 = sadd.s32 %s468, 1
        %s698 = smul.addr %s697, 4
        %s699 = scalar_lea.vmem %s1, %s698
        %v700 = vld [vmem:[%s699] sm:$0xf]
        %v701 = vld [vmem:[#allocation5] sm:$0xff]
        %v702 = vld [vmem:[#allocation5 + $0x8] sm:$0xff]
        %v703 = vld [vmem:[#allocation5 + $0x10] sm:$0xff]
        %v704 = vld [vmem:[#allocation5 + $0x18] sm:$0xff]
        %v705 = vld [vmem:[#allocation5 + $0x20] sm:$0xff]
        %v706 = vld [vmem:[#allocation5 + $0x28] sm:$0xff]
        %v707 = vld [vmem:[#allocation5 + $0x30] sm:$0xff]
        %v708 = vld [vmem:[#allocation5 + $0x38] sm:$0xff]
        %s709 = smul.u32 %s697, 4
        %s710 = scalar_lea.vmem [#allocation7], %s709
        %v711 = vld [vmem:[%s710] sm:$0xf]
        %v713 = vlaneseq
        %v714 = vshrl.u32 %v713, 7
        %v715 = vsub.s32 0, %v714
        %v716 = vrot.slane %v711, %v715
        %v717 = vlaneseq
        %v718 = vshrl.u32 %v717, 7
        %v719 = vsub.s32 1, %v718
        %v720 = vrot.slane %v711, %v719
        %v721 = vlaneseq
        %v722 = vshrl.u32 %v721, 7
        %v723 = vsub.s32 2, %v722
        %v724 = vrot.slane %v711, %v723
        %v725 = vlaneseq
        %v726 = vshrl.u32 %v725, 7
        %v727 = vsub.s32 3, %v726
        %v728 = vrot.slane %v711, %v727
        %v741 = vunpack.c.l.b16 %v701
        %v742 = vunpack.c.h.b16 %v701
        %v743 = vunpack.c.l.b16 %v702
        %v744 = vunpack.c.h.b16 %v702
        %v745 = vunpack.c.l.b16 %v703
        %v746 = vunpack.c.h.b16 %v703
        %v747 = vunpack.c.l.b16 %v704
        %v748 = vunpack.c.h.b16 %v704
        %v749 = vunpack.c.l.b16 %v705
        %v750 = vunpack.c.h.b16 %v705
        %v751 = vunpack.c.l.b16 %v706
        %v752 = vunpack.c.h.b16 %v706
        %v753 = vunpack.c.l.b16 %v707
        %v754 = vunpack.c.h.b16 %v707
        %v755 = vunpack.c.l.b16 %v708
        %v756 = vunpack.c.h.b16 %v708
        %v757 = vpack.c.b16 %v745, %v741
        %v758 = vpack.c.b16 %v746, %v742
        %v759 = vpack.c.b16 %v747, %v743
        %v760 = vpack.c.b16 %v748, %v744
        %v761 = vpack.c.b16 %v753, %v749
        %v762 = vpack.c.b16 %v754, %v750
        %v763 = vpack.c.b16 %v755, %v751
        %v764 = vpack.c.b16 %v756, %v752
        %v774 = vsel %vm544, %v700, 0
        %776 = vmatprep.subr.bf16.mxu0 %v758
        %777 = vmatpush1.bf16.msra.mxu0 %v757
        %778 = vmatprep.subr.bf16.mxu0 %v762
        %779 = vmatpush1.bf16.msra.mxu0 %v761
        %780 = vmatprep.subr.bf16.mxu0 0
        %781 = vmatpush1.bf16.msra.mxu0 0
        %782 = vmatprep.subr.bf16.mxu0 0
        %783 = vmatpush1.bf16.msra.mxu0 0
        %784 = vmatprep.subr.bf16.mxu0 0
        %785 = vmatpush1.bf16.msra.mxu0 0
        %786 = vmatprep.subr.bf16.mxu0 0
        %787 = vmatpush1.bf16.msra.mxu0 0
        %788 = vmatprep.subr.bf16.mxu0 0
        %789 = vmatpush1.bf16.msra.mxu0 0
        %790 = vmatprep.subr.bf16.mxu0 0
        %791 = vmatpush1.bf16.msra.mxu0 0
        %792 = vmatprep.subr.bf16.mxu0 0
        %793 = vmatpush1.bf16.msra.mxu0 0
        %794 = vmatprep.subr.bf16.mxu0 0
        %795 = vmatpush1.bf16.msra.mxu0 0
        %796 = vmatprep.subr.bf16.mxu0 0
        %797 = vmatpush1.bf16.msra.mxu0 0
        %798 = vmatprep.subr.bf16.mxu0 0
        %799 = vmatpush1.bf16.msra.mxu0 0
        %800 = vmatprep.subr.bf16.mxu0 0
        %801 = vmatpush1.bf16.msra.mxu0 0
        %802 = vmatprep.subr.bf16.mxu0 0
        %803 = vmatpush1.bf16.msra.mxu0 0
        %804 = vmatprep.subr.bf16.mxu0 0
        %805 = vmatpush1.bf16.msra.mxu0 0
        %806 = vmatprep.subr.bf16.mxu0 0
        %807 = vmatpush1.bf16.msra.mxu0 0
        %808 = vmatprep.mubr.bf16.mxu0 0
        %809 = vmatmul.mubr.bf16.gmra.mrb[0].mxu0 %v774
        %v810 = vpop.f32.mrb[0].mxu0
        %v811 = vadd.f32 %v716, %v810
        %v812 = vpop.f32.mrb[0].mxu0
        %v813 = vadd.f32 %v720, %v812
        %v814 = vpop.f32.mrb[0].mxu0
        %v815 = vpop.f32.mrb[0].mxu0
        %816 = vdwg.mxu0
        %817 = vmatprep.subr.bf16.mxu0 %v760
        %818 = vmatpush1.bf16.msra.mxu0 %v759
        %819 = vmatprep.subr.bf16.mxu0 %v764
        %820 = vmatpush1.bf16.msra.mxu0 %v763
        %821 = vmatprep.subr.bf16.mxu0 0
        %822 = vmatpush1.bf16.msra.mxu0 0
        %823 = vmatprep.subr.bf16.mxu0 0
        %824 = vmatpush1.bf16.msra.mxu0 0
        %825 = vmatprep.subr.bf16.mxu0 0
        %826 = vmatpush1.bf16.msra.mxu0 0
        %827 = vmatprep.subr.bf16.mxu0 0
        %828 = vmatpush1.bf16.msra.mxu0 0
        %829 = vmatprep.subr.bf16.mxu0 0
        %830 = vmatpush1.bf16.msra.mxu0 0
        %831 = vmatprep.subr.bf16.mxu0 0
        %832 = vmatpush1.bf16.msra.mxu0 0
        %833 = vmatprep.subr.bf16.mxu0 0
        %834 = vmatpush1.bf16.msra.mxu0 0
        %835 = vmatprep.subr.bf16.mxu0 0
        %836 = vmatpush1.bf16.msra.mxu0 0
        %837 = vmatprep.subr.bf16.mxu0 0
        %838 = vmatpush1.bf16.msra.mxu0 0
        %839 = vmatprep.subr.bf16.mxu0 0
        %840 = vmatpush1.bf16.msra.mxu0 0
        %841 = vmatprep.subr.bf16.mxu0 0
        %842 = vmatpush1.bf16.msra.mxu0 0
        %843 = vmatprep.subr.bf16.mxu0 0
        %844 = vmatpush1.bf16.msra.mxu0 0
        %845 = vmatprep.subr.bf16.mxu0 0
        %846 = vmatpush1.bf16.msra.mxu0 0
        %847 = vmatprep.subr.bf16.mxu0 0
        %848 = vmatpush1.bf16.msra.mxu0 0
        %849 = vmatprep.mubr.bf16.mxu0 0
        %850 = vmatmul.mubr.bf16.gmra.mrb[0].mxu0 %v774
        %v851 = vpop.f32.mrb[0].mxu0
        %v852 = vadd.f32 %v724, %v851
        %v853 = vpop.f32.mrb[0].mxu0
        %v854 = vadd.f32 %v728, %v853
        %v855 = vpop.f32.mrb[0].mxu0
        %v856 = vpop.f32.mrb[0].mxu0
        %857 = vdwg.mxu0
        %s858 = scalar_lea.vmem [#allocation9], %s709
        %v859 = vld [vmem:[%s858] sm:$0xf]
        %v860 = vmul.f32 %v640, %v859
        %v862 = vlaneseq
        %v863 = vshrl.u32 %v862, 7
        %v864 = vsub.s32 0, %v863
        %v865 = vrot.slane %v860, %v864
        %v866 = vlaneseq
        %v867 = vshrl.u32 %v866, 7
        %v868 = vsub.s32 1, %v867
        %v869 = vrot.slane %v860, %v868
        %v870 = vlaneseq
        %v871 = vshrl.u32 %v870, 7
        %v872 = vsub.s32 2, %v871
        %v873 = vrot.slane %v860, %v872
        %v874 = vlaneseq
        %v875 = vshrl.u32 %v874, 7
        %v876 = vsub.s32 3, %v875
        %v877 = vrot.slane %v860, %v876
        %v882 = vadd.f32 %v811, %v865
        %v883 = vadd.f32 %v813, %v869
        %v884 = vadd.f32 %v852, %v873
        %v885 = vadd.f32 %v854, %v877
        %vm886 = vcmp.ge.f32.partialorder %v882, 0.0
        %vm887 = vcmp.ge.f32.partialorder %v883, 0.0
        %vm888 = vcmp.ge.f32.partialorder %v884, 0.0
        %vm889 = vcmp.ge.f32.partialorder %v885, 0.0
        %v890 = vmul.f32 %v882, 0.2
        %v891 = vmul.f32 %v883, 0.2
        %v892 = vmul.f32 %v884, 0.2
        %v893 = vmul.f32 %v885, 0.2
        %v894 = vsel %vm886, %v882, %v890
        %v895 = vsel %vm887, %v883, %v891
        %v896 = vsel %vm888, %v884, %v892
        %v897 = vsel %vm889, %v885, %v893
        %v898 = vpack.c.bf16 %v894, %v894
        %v899 = vpack.c.bf16 %v895, %v895
        %v900 = vpack.c.bf16 %v896, %v896
        %v901 = vpack.c.bf16 %v897, %v897
        %v906 = vunpack.c.l.b16 %v898
        %v907 = vunpack.c.l.b16 %v899
        %v908 = vunpack.c.l.b16 %v900
        %v909 = vunpack.c.l.b16 %v901
        %v910 = vpack.c.b16 %v907, %v906
        %v911 = vpack.c.b16 %v909, %v908
        %914 = vst [vmem:[#allocation4 + $0x10] sm:$0xff] %v910
        %915 = vst [vmem:[#allocation4 + $0x18] sm:$0xff] %v911
        %s916 = sadd.s32 %s468, 2
        %s917 = smul.addr %s916, 4
        %s918 = scalar_lea.vmem %s1, %s917
        %v919 = vld [vmem:[%s918] sm:$0xf]
        %v920 = vld [vmem:[#allocation5] sm:$0xff]
        %v921 = vld [vmem:[#allocation5 + $0x8] sm:$0xff]
        %v922 = vld [vmem:[#allocation5 + $0x10] sm:$0xff]
        %v923 = vld [vmem:[#allocation5 + $0x18] sm:$0xff]
        %v924 = vld [vmem:[#allocation5 + $0x20] sm:$0xff]
        %v925 = vld [vmem:[#allocation5 + $0x28] sm:$0xff]
        %v926 = vld [vmem:[#allocation5 + $0x30] sm:$0xff]
        %v927 = vld [vmem:[#allocation5 + $0x38] sm:$0xff]
        %s928 = smul.u32 %s916, 4
        %s929 = scalar_lea.vmem [#allocation7], %s928
        %v930 = vld [vmem:[%s929] sm:$0xf]
        %v932 = vlaneseq
        %v933 = vshrl.u32 %v932, 7
        %v934 = vsub.s32 0, %v933
        %v935 = vrot.slane %v930, %v934
        %v936 = vlaneseq
        %v937 = vshrl.u32 %v936, 7
        %v938 = vsub.s32 1, %v937
        %v939 = vrot.slane %v930, %v938
        %v940 = vlaneseq
        %v941 = vshrl.u32 %v940, 7
        %v942 = vsub.s32 2, %v941
        %v943 = vrot.slane %v930, %v942
        %v944 = vlaneseq
        %v945 = vshrl.u32 %v944, 7
        %v946 = vsub.s32 3, %v945
        %v947 = vrot.slane %v930, %v946
        %v960 = vunpack.c.l.b16 %v920
        %v961 = vunpack.c.h.b16 %v920
        %v962 = vunpack.c.l.b16 %v921
        %v963 = vunpack.c.h.b16 %v921
        %v964 = vunpack.c.l.b16 %v922
        %v965 = vunpack.c.h.b16 %v922
        %v966 = vunpack.c.l.b16 %v923
        %v967 = vunpack.c.h.b16 %v923
        %v968 = vunpack.c.l.b16 %v924
        %v969 = vunpack.c.h.b16 %v924
        %v970 = vunpack.c.l.b16 %v925
        %v971 = vunpack.c.h.b16 %v925
        %v972 = vunpack.c.l.b16 %v926
        %v973 = vunpack.c.h.b16 %v926
        %v974 = vunpack.c.l.b16 %v927
        %v975 = vunpack.c.h.b16 %v927
        %v976 = vpack.c.b16 %v964, %v960
        %v977 = vpack.c.b16 %v965, %v961
        %v978 = vpack.c.b16 %v966, %v962
        %v979 = vpack.c.b16 %v967, %v963
        %v980 = vpack.c.b16 %v972, %v968
        %v981 = vpack.c.b16 %v973, %v969
        %v982 = vpack.c.b16 %v974, %v970
        %v983 = vpack.c.b16 %v975, %v971
        %v993 = vsel %vm544, %v919, 0
        %995 = vmatprep.subr.bf16.mxu0 %v977
        %996 = vmatpush1.bf16.msra.mxu0 %v976
        %997 = vmatprep.subr.bf16.mxu0 %v981
        %998 = vmatpush1.bf16.msra.mxu0 %v980
        %999 = vmatprep.subr.bf16.mxu0 0
        %1000 = vmatpush1.bf16.msra.mxu0 0
        %1001 = vmatprep.subr.bf16.mxu0 0
        %1002 = vmatpush1.bf16.msra.mxu0 0
        %1003 = vmatprep.subr.bf16.mxu0 0
        %1004 = vmatpush1.bf16.msra.mxu0 0
        %1005 = vmatprep.subr.bf16.mxu0 0
        %1006 = vmatpush1.bf16.msra.mxu0 0
        %1007 = vmatprep.subr.bf16.mxu0 0
        %1008 = vmatpush1.bf16.msra.mxu0 0
        %1009 = vmatprep.subr.bf16.mxu0 0
        %1010 = vmatpush1.bf16.msra.mxu0 0
        %1011 = vmatprep.subr.bf16.mxu0 0
        %1012 = vmatpush1.bf16.msra.mxu0 0
        %1013 = vmatprep.subr.bf16.mxu0 0
        %1014 = vmatpush1.bf16.msra.mxu0 0
        %1015 = vmatprep.subr.bf16.mxu0 0
        %1016 = vmatpush1.bf16.msra.mxu0 0
        %1017 = vmatprep.subr.bf16.mxu0 0
        %1018 = vmatpush1.bf16.msra.mxu0 0
        %1019 = vmatprep.subr.bf16.mxu0 0
        %1020 = vmatpush1.bf16.msra.mxu0 0
        %1021 = vmatprep.subr.bf16.mxu0 0
        %1022 = vmatpush1.bf16.msra.mxu0 0
        %1023 = vmatprep.subr.bf16.mxu0 0
        %1024 = vmatpush1.bf16.msra.mxu0 0
        %1025 = vmatprep.subr.bf16.mxu0 0
        %1026 = vmatpush1.bf16.msra.mxu0 0
        %1027 = vmatprep.mubr.bf16.mxu0 0
        %1028 = vmatmul.mubr.bf16.gmra.mrb[0].mxu0 %v993
        %v1029 = vpop.f32.mrb[0].mxu0
        %v1030 = vadd.f32 %v935, %v1029
        %v1031 = vpop.f32.mrb[0].mxu0
        %v1032 = vadd.f32 %v939, %v1031
        %v1033 = vpop.f32.mrb[0].mxu0
        %v1034 = vpop.f32.mrb[0].mxu0
        %1035 = vdwg.mxu0
        %1036 = vmatprep.subr.bf16.mxu0 %v979
        %1037 = vmatpush1.bf16.msra.mxu0 %v978
        %1038 = vmatprep.subr.bf16.mxu0 %v983
        %1039 = vmatpush1.bf16.msra.mxu0 %v982
        %1040 = vmatprep.subr.bf16.mxu0 0
        %1041 = vmatpush1.bf16.msra.mxu0 0
        %1042 = vmatprep.subr.bf16.mxu0 0
        %1043 = vmatpush1.bf16.msra.mxu0 0
        %1044 = vmatprep.subr.bf16.mxu0 0
        %1045 = vmatpush1.bf16.msra.mxu0 0
        %1046 = vmatprep.subr.bf16.mxu0 0
        %1047 = vmatpush1.bf16.msra.mxu0 0
        %1048 = vmatprep.subr.bf16.mxu0 0
        %1049 = vmatpush1.bf16.msra.mxu0 0
        %1050 = vmatprep.subr.bf16.mxu0 0
        %1051 = vmatpush1.bf16.msra.mxu0 0
        %1052 = vmatprep.subr.bf16.mxu0 0
        %1053 = vmatpush1.bf16.msra.mxu0 0
        %1054 = vmatprep.subr.bf16.mxu0 0
        %1055 = vmatpush1.bf16.msra.mxu0 0
        %1056 = vmatprep.subr.bf16.mxu0 0
        %1057 = vmatpush1.bf16.msra.mxu0 0
        %1058 = vmatprep.subr.bf16.mxu0 0
        %1059 = vmatpush1.bf16.msra.mxu0 0
        %1060 = vmatprep.subr.bf16.mxu0 0
        %1061 = vmatpush1.bf16.msra.mxu0 0
        %1062 = vmatprep.subr.bf16.mxu0 0
        %1063 = vmatpush1.bf16.msra.mxu0 0
        %1064 = vmatprep.subr.bf16.mxu0 0
        %1065 = vmatpush1.bf16.msra.mxu0 0
        %1066 = vmatprep.subr.bf16.mxu0 0
        %1067 = vmatpush1.bf16.msra.mxu0 0
        %1068 = vmatprep.mubr.bf16.mxu0 0
        %1069 = vmatmul.mubr.bf16.gmra.mrb[0].mxu0 %v993
        %v1070 = vpop.f32.mrb[0].mxu0
        %v1071 = vadd.f32 %v943, %v1070
        %v1072 = vpop.f32.mrb[0].mxu0
        %v1073 = vadd.f32 %v947, %v1072
        %v1074 = vpop.f32.mrb[0].mxu0
        %v1075 = vpop.f32.mrb[0].mxu0
        %1076 = vdwg.mxu0
        %s1077 = scalar_lea.vmem [#allocation9], %s928
        %v1078 = vld [vmem:[%s1077] sm:$0xf]
        %v1079 = vmul.f32 %v640, %v1078
        %v1081 = vlaneseq
        %v1082 = vshrl.u32 %v1081, 7
        %v1083 = vsub.s32 0, %v1082
        %v1084 = vrot.slane %v1079, %v1083
        %v1085 = vlaneseq
        %v1086 = vshrl.u32 %v1085, 7
        %v1087 = vsub.s32 1, %v1086
        %v1088 = vrot.slane %v1079, %v1087
        %v1089 = vlaneseq
        %v1090 = vshrl.u32 %v1089, 7
        %v1091 = vsub.s32 2, %v1090
        %v1092 = vrot.slane %v1079, %v1091
        %v1093 = vlaneseq
        %v1094 = vshrl.u32 %v1093, 7
        %v1095 = vsub.s32 3, %v1094
        %v1096 = vrot.slane %v1079, %v1095
        %v1101 = vadd.f32 %v1030, %v1084
        %v1102 = vadd.f32 %v1032, %v1088
        %v1103 = vadd.f32 %v1071, %v1092
        %v1104 = vadd.f32 %v1073, %v1096
        %vm1105 = vcmp.ge.f32.partialorder %v1101, 0.0
        %vm1106 = vcmp.ge.f32.partialorder %v1102, 0.0
        %vm1107 = vcmp.ge.f32.partialorder %v1103, 0.0
        %vm1108 = vcmp.ge.f32.partialorder %v1104, 0.0
        %v1109 = vmul.f32 %v1101, 0.2
        %v1110 = vmul.f32 %v1102, 0.2
        %v1111 = vmul.f32 %v1103, 0.2
        %v1112 = vmul.f32 %v1104, 0.2
        %v1113 = vsel %vm1105, %v1101, %v1109
        %v1114 = vsel %vm1106, %v1102, %v1110
        %v1115 = vsel %vm1107, %v1103, %v1111
        %v1116 = vsel %vm1108, %v1104, %v1112
        %v1117 = vpack.c.bf16 %v1113, %v1113
        %v1118 = vpack.c.bf16 %v1114, %v1114
        %v1119 = vpack.c.bf16 %v1115, %v1115
        %v1120 = vpack.c.bf16 %v1116, %v1116
        %v1125 = vunpack.c.l.b16 %v1117
        %v1126 = vunpack.c.l.b16 %v1118
        %v1127 = vunpack.c.l.b16 %v1119
        %v1128 = vunpack.c.l.b16 %v1120
        %v1129 = vpack.c.b16 %v1126, %v1125
        %v1130 = vpack.c.b16 %v1128, %v1127
        %1133 = vst [vmem:[#allocation4 + $0x20] sm:$0xff] %v1129
        %1134 = vst [vmem:[#allocation4 + $0x28] sm:$0xff] %v1130
        %s1135 = sadd.s32 %s468, 3
        %s1136 = smul.addr %s1135, 4
        %s1137 = scalar_lea.vmem %s1, %s1136
        %v1138 = vld [vmem:[%s1137] sm:$0xf]
        %v1139 = vld [vmem:[#allocation5] sm:$0xff]
        %v1140 = vld [vmem:[#allocation5 + $0x8] sm:$0xff]
        %v1141 = vld [vmem:[#allocation5 + $0x10] sm:$0xff]
        %v1142 = vld [vmem:[#allocation5 + $0x18] sm:$0xff]
        %v1143 = vld [vmem:[#allocation5 + $0x20] sm:$0xff]
        %v1144 = vld [vmem:[#allocation5 + $0x28] sm:$0xff]
        %v1145 = vld [vmem:[#allocation5 + $0x30] sm:$0xff]
        %v1146 = vld [vmem:[#allocation5 + $0x38] sm:$0xff]
        %s1147 = smul.u32 %s1135, 4
        %s1148 = scalar_lea.vmem [#allocation7], %s1147
        %v1149 = vld [vmem:[%s1148] sm:$0xf]
        %v1151 = vlaneseq
        %v1152 = vshrl.u32 %v1151, 7
        %v1153 = vsub.s32 0, %v1152
        %v1154 = vrot.slane %v1149, %v1153
        %v1155 = vlaneseq
        %v1156 = vshrl.u32 %v1155, 7
        %v1157 = vsub.s32 1, %v1156
        %v1158 = vrot.slane %v1149, %v1157
        %v1159 = vlaneseq
        %v1160 = vshrl.u32 %v1159, 7
        %v1161 = vsub.s32 2, %v1160
        %v1162 = vrot.slane %v1149, %v1161
        %v1163 = vlaneseq
        %v1164 = vshrl.u32 %v1163, 7
        %v1165 = vsub.s32 3, %v1164
        %v1166 = vrot.slane %v1149, %v1165
        %v1179 = vunpack.c.l.b16 %v1139
        %v1180 = vunpack.c.h.b16 %v1139
        %v1181 = vunpack.c.l.b16 %v1140
        %v1182 = vunpack.c.h.b16 %v1140
        %v1183 = vunpack.c.l.b16 %v1141
        %v1184 = vunpack.c.h.b16 %v1141
        %v1185 = vunpack.c.l.b16 %v1142
        %v1186 = vunpack.c.h.b16 %v1142
        %v1187 = vunpack.c.l.b16 %v1143
        %v1188 = vunpack.c.h.b16 %v1143
        %v1189 = vunpack.c.l.b16 %v1144
        %v1190 = vunpack.c.h.b16 %v1144
        %v1191 = vunpack.c.l.b16 %v1145
        %v1192 = vunpack.c.h.b16 %v1145
        %v1193 = vunpack.c.l.b16 %v1146
        %v1194 = vunpack.c.h.b16 %v1146
        %v1195 = vpack.c.b16 %v1183, %v1179
        %v1196 = vpack.c.b16 %v1184, %v1180
        %v1197 = vpack.c.b16 %v1185, %v1181
        %v1198 = vpack.c.b16 %v1186, %v1182
        %v1199 = vpack.c.b16 %v1191, %v1187
        %v1200 = vpack.c.b16 %v1192, %v1188
        %v1201 = vpack.c.b16 %v1193, %v1189
        %v1202 = vpack.c.b16 %v1194, %v1190
        %v1212 = vsel %vm544, %v1138, 0
        %1214 = vmatprep.subr.bf16.mxu0 %v1196
        %1215 = vmatpush1.bf16.msra.mxu0 %v1195
        %1216 = vmatprep.subr.bf16.mxu0 %v1200
        %1217 = vmatpush1.bf16.msra.mxu0 %v1199
        %1218 = vmatprep.subr.bf16.mxu0 0
        %1219 = vmatpush1.bf16.msra.mxu0 0
        %1220 = vmatprep.subr.bf16.mxu0 0
        %1221 = vmatpush1.bf16.msra.mxu0 0
        %1222 = vmatprep.subr.bf16.mxu0 0
        %1223 = vmatpush1.bf16.msra.mxu0 0
        %1224 = vmatprep.subr.bf16.mxu0 0
        %1225 = vmatpush1.bf16.msra.mxu0 0
        %1226 = vmatprep.subr.bf16.mxu0 0
        %1227 = vmatpush1.bf16.msra.mxu0 0
        %1228 = vmatprep.subr.bf16.mxu0 0
        %1229 = vmatpush1.bf16.msra.mxu0 0
        %1230 = vmatprep.subr.bf16.mxu0 0
        %1231 = vmatpush1.bf16.msra.mxu0 0
        %1232 = vmatprep.subr.bf16.mxu0 0
        %1233 = vmatpush1.bf16.msra.mxu0 0
        %1234 = vmatprep.subr.bf16.mxu0 0
        %1235 = vmatpush1.bf16.msra.mxu0 0
        %1236 = vmatprep.subr.bf16.mxu0 0
        %1237 = vmatpush1.bf16.msra.mxu0 0
        %1238 = vmatprep.subr.bf16.mxu0 0
        %1239 = vmatpush1.bf16.msra.mxu0 0
        %1240 = vmatprep.subr.bf16.mxu0 0
        %1241 = vmatpush1.bf16.msra.mxu0 0
        %1242 = vmatprep.subr.bf16.mxu0 0
        %1243 = vmatpush1.bf16.msra.mxu0 0
        %1244 = vmatprep.subr.bf16.mxu0 0
        %1245 = vmatpush1.bf16.msra.mxu0 0
        %1246 = vmatprep.mubr.bf16.mxu0 0
        %1247 = vmatmul.mubr.bf16.gmra.mrb[0].mxu0 %v1212
        %v1248 = vpop.f32.mrb[0].mxu0
        %v1249 = vadd.f32 %v1154, %v1248
        %v1250 = vpop.f32.mrb[0].mxu0
        %v1251 = vadd.f32 %v1158, %v1250
        %v1252 = vpop.f32.mrb[0].mxu0
        %v1253 = vpop.f32.mrb[0].mxu0
        %1254 = vdwg.mxu0
        %1255 = vmatprep.subr.bf16.mxu0 %v1198
        %1256 = vmatpush1.bf16.msra.mxu0 %v1197
        %1257 = vmatprep.subr.bf16.mxu0 %v1202
        %1258 = vmatpush1.bf16.msra.mxu0 %v1201
        %1259 = vmatprep.subr.bf16.mxu0 0
        %1260 = vmatpush1.bf16.msra.mxu0 0
        %1261 = vmatprep.subr.bf16.mxu0 0
        %1262 = vmatpush1.bf16.msra.mxu0 0
        %1263 = vmatprep.subr.bf16.mxu0 0
        %1264 = vmatpush1.bf16.msra.mxu0 0
        %1265 = vmatprep.subr.bf16.mxu0 0
        %1266 = vmatpush1.bf16.msra.mxu0 0
        %1267 = vmatprep.subr.bf16.mxu0 0
        %1268 = vmatpush1.bf16.msra.mxu0 0
        %1269 = vmatprep.subr.bf16.mxu0 0
        %1270 = vmatpush1.bf16.msra.mxu0 0
        %1271 = vmatprep.subr.bf16.mxu0 0
        %1272 = vmatpush1.bf16.msra.mxu0 0
        %1273 = vmatprep.subr.bf16.mxu0 0
        %1274 = vmatpush1.bf16.msra.mxu0 0
        %1275 = vmatprep.subr.bf16.mxu0 0
        %1276 = vmatpush1.bf16.msra.mxu0 0
        %1277 = vmatprep.subr.bf16.mxu0 0
        %1278 = vmatpush1.bf16.msra.mxu0 0
        %1279 = vmatprep.subr.bf16.mxu0 0
        %1280 = vmatpush1.bf16.msra.mxu0 0
        %1281 = vmatprep.subr.bf16.mxu0 0
        %1282 = vmatpush1.bf16.msra.mxu0 0
        %1283 = vmatprep.subr.bf16.mxu0 0
        %1284 = vmatpush1.bf16.msra.mxu0 0
        %1285 = vmatprep.subr.bf16.mxu0 0
        %1286 = vmatpush1.bf16.msra.mxu0 0
        %1287 = vmatprep.mubr.bf16.mxu0 0
        %1288 = vmatmul.mubr.bf16.gmra.mrb[0].mxu0 %v1212
        %v1289 = vpop.f32.mrb[0].mxu0
        %v1290 = vadd.f32 %v1162, %v1289
        %v1291 = vpop.f32.mrb[0].mxu0
        %v1292 = vadd.f32 %v1166, %v1291
        %v1293 = vpop.f32.mrb[0].mxu0
        %v1294 = vpop.f32.mrb[0].mxu0
        %1295 = vdwg.mxu0
        %s1296 = scalar_lea.vmem [#allocation9], %s1147
        %v1297 = vld [vmem:[%s1296] sm:$0xf]
        %v1298 = vmul.f32 %v640, %v1297
        %v1300 = vlaneseq
        %v1301 = vshrl.u32 %v1300, 7
        %v1302 = vsub.s32 0, %v1301
        %v1303 = vrot.slane %v1298, %v1302
        %v1304 = vlaneseq
        %v1305 = vshrl.u32 %v1304, 7
        %v1306 = vsub.s32 1, %v1305
        %v1307 = vrot.slane %v1298, %v1306
        %v1308 = vlaneseq
        %v1309 = vshrl.u32 %v1308, 7
        %v1310 = vsub.s32 2, %v1309
        %v1311 = vrot.slane %v1298, %v1310
        %v1312 = vlaneseq
        %v1313 = vshrl.u32 %v1312, 7
        %v1314 = vsub.s32 3, %v1313
        %v1315 = vrot.slane %v1298, %v1314
        %v1320 = vadd.f32 %v1249, %v1303
        %v1321 = vadd.f32 %v1251, %v1307
        %v1322 = vadd.f32 %v1290, %v1311
        %v1323 = vadd.f32 %v1292, %v1315
        %vm1324 = vcmp.ge.f32.partialorder %v1320, 0.0
        %vm1325 = vcmp.ge.f32.partialorder %v1321, 0.0
        %vm1326 = vcmp.ge.f32.partialorder %v1322, 0.0
        %vm1327 = vcmp.ge.f32.partialorder %v1323, 0.0
        %v1328 = vmul.f32 %v1320, 0.2
        %v1329 = vmul.f32 %v1321, 0.2
        %v1330 = vmul.f32 %v1322, 0.2
        %v1331 = vmul.f32 %v1323, 0.2
        %v1332 = vsel %vm1324, %v1320, %v1328
        %v1333 = vsel %vm1325, %v1321, %v1329
        %v1334 = vsel %vm1326, %v1322, %v1330
        %v1335 = vsel %vm1327, %v1323, %v1331
        %v1336 = vpack.c.bf16 %v1332, %v1332
        %v1337 = vpack.c.bf16 %v1333, %v1333
        %v1338 = vpack.c.bf16 %v1334, %v1334
        %v1339 = vpack.c.bf16 %v1335, %v1335
        %v1344 = vunpack.c.l.b16 %v1336
        %v1345 = vunpack.c.l.b16 %v1337
        %v1346 = vunpack.c.l.b16 %v1338
        %v1347 = vunpack.c.l.b16 %v1339
        %v1348 = vpack.c.b16 %v1345, %v1344
        %v1349 = vpack.c.b16 %v1347, %v1346
        %1352 = vst [vmem:[#allocation4 + $0x30] sm:$0xff] %v1348
        %1353 = vst [vmem:[#allocation4 + $0x38] sm:$0xff] %v1349
        %v1354 = vld [vmem:[#allocation2] sm:$0xff]
        %v1355 = vld [vmem:[#allocation2 + $0x8] sm:$0xff]
        %v1356 = vld [vmem:[#allocation2 + $0x10] sm:$0xff]
        %v1357 = vld [vmem:[#allocation2 + $0x18] sm:$0xff]
        %v1358 = vld [vmem:[#allocation4] sm:$0xff]
        %v1359 = vld [vmem:[#allocation4 + $0x8] sm:$0xff]
        %v1360 = vld [vmem:[#allocation4 + $0x10] sm:$0xff]
        %v1361 = vld [vmem:[#allocation4 + $0x18] sm:$0xff]
        %v1362 = vld [vmem:[#allocation4 + $0x20] sm:$0xff]
        %v1363 = vld [vmem:[#allocation4 + $0x28] sm:$0xff]
        %v1364 = vld [vmem:[#allocation4 + $0x30] sm:$0xff]
        %v1365 = vld [vmem:[#allocation4 + $0x38] sm:$0xff]
        %v1366 = vld [vmem:[%s380] sm:$0xff]
        %v1367 = vld [vmem:[%s380 + $0x8] sm:$0xff]
        %v1368 = vld [vmem:[%s380 + $0x10] sm:$0xff]
        %v1369 = vld [vmem:[%s380 + $0x18] sm:$0xff]
        %v1370 = vld [vmem:[%s380 + $0x20] sm:$0xff]
        %v1371 = vld [vmem:[%s380 + $0x28] sm:$0xff]
        %v1372 = vld [vmem:[%s380 + $0x30] sm:$0xff]
        %v1373 = vld [vmem:[%s380 + $0x38] sm:$0xff]
        %v1374 = vld [vmem:[%s380 + $0x40] sm:$0xff]
        %v1375 = vld [vmem:[%s380 + $0x48] sm:$0xff]
        %v1376 = vld [vmem:[%s380 + $0x50] sm:$0xff]
        %v1377 = vld [vmem:[%s380 + $0x58] sm:$0xff]
        %v1378 = vld [vmem:[%s380 + $0x60] sm:$0xff]
        %v1379 = vld [vmem:[%s380 + $0x68] sm:$0xff]
        %v1380 = vld [vmem:[%s380 + $0x70] sm:$0xff]
        %v1381 = vld [vmem:[%s380 + $0x78] sm:$0xff]
        %v1382 = vld [vmem:[%s380 + $0x80] sm:$0xff]
        %v1383 = vld [vmem:[%s380 + $0x88] sm:$0xff]
        %v1384 = vld [vmem:[%s380 + $0x90] sm:$0xff]
        %v1385 = vld [vmem:[%s380 + $0x98] sm:$0xff]
        %v1386 = vld [vmem:[%s380 + $0xa0] sm:$0xff]
        %v1387 = vld [vmem:[%s380 + $0xa8] sm:$0xff]
        %v1388 = vld [vmem:[%s380 + $0xb0] sm:$0xff]
        %v1389 = vld [vmem:[%s380 + $0xb8] sm:$0xff]
        %v1390 = vld [vmem:[%s380 + $0xc0] sm:$0xff]
        %v1391 = vld [vmem:[%s380 + $0xc8] sm:$0xff]
        %v1392 = vld [vmem:[%s380 + $0xd0] sm:$0xff]
        %v1393 = vld [vmem:[%s380 + $0xd8] sm:$0xff]
        %v1394 = vld [vmem:[%s380 + $0xe0] sm:$0xff]
        %v1395 = vld [vmem:[%s380 + $0xe8] sm:$0xff]
        %v1396 = vld [vmem:[%s380 + $0xf0] sm:$0xff]
        %v1397 = vld [vmem:[%s380 + $0xf8] sm:$0xff]
        %v1398 = vld [vmem:[%s380 + $0x100] sm:$0xff]
        %v1399 = vld [vmem:[%s380 + $0x108] sm:$0xff]
        %v1400 = vld [vmem:[%s380 + $0x110] sm:$0xff]
        %v1401 = vld [vmem:[%s380 + $0x118] sm:$0xff]
        %v1402 = vld [vmem:[%s380 + $0x120] sm:$0xff]
        %v1403 = vld [vmem:[%s380 + $0x128] sm:$0xff]
        %v1404 = vld [vmem:[%s380 + $0x130] sm:$0xff]
        %v1405 = vld [vmem:[%s380 + $0x138] sm:$0xff]
        %v1406 = vld [vmem:[%s380 + $0x140] sm:$0xff]
        %v1407 = vld [vmem:[%s380 + $0x148] sm:$0xff]
        %v1408 = vld [vmem:[%s380 + $0x150] sm:$0xff]
        %v1409 = vld [vmem:[%s380 + $0x158] sm:$0xff]
        %v1410 = vld [vmem:[%s380 + $0x160] sm:$0xff]
        %v1411 = vld [vmem:[%s380 + $0x168] sm:$0xff]
        %v1412 = vld [vmem:[%s380 + $0x170] sm:$0xff]
        %v1413 = vld [vmem:[%s380 + $0x178] sm:$0xff]
        %v1414 = vld [vmem:[%s380 + $0x180] sm:$0xff]
        %v1415 = vld [vmem:[%s380 + $0x188] sm:$0xff]
        %v1416 = vld [vmem:[%s380 + $0x190] sm:$0xff]
        %v1417 = vld [vmem:[%s380 + $0x198] sm:$0xff]
        %v1418 = vld [vmem:[%s380 + $0x1a0] sm:$0xff]
        %v1419 = vld [vmem:[%s380 + $0x1a8] sm:$0xff]
        %v1420 = vld [vmem:[%s380 + $0x1b0] sm:$0xff]
        %v1421 = vld [vmem:[%s380 + $0x1b8] sm:$0xff]
        %v1422 = vld [vmem:[%s380 + $0x1c0] sm:$0xff]
        %v1423 = vld [vmem:[%s380 + $0x1c8] sm:$0xff]
        %v1424 = vld [vmem:[%s380 + $0x1d0] sm:$0xff]
        %v1425 = vld [vmem:[%s380 + $0x1d8] sm:$0xff]
        %v1426 = vld [vmem:[%s380 + $0x1e0] sm:$0xff]
        %v1427 = vld [vmem:[%s380 + $0x1e8] sm:$0xff]
        %v1428 = vld [vmem:[%s380 + $0x1f0] sm:$0xff]
        %v1429 = vld [vmem:[%s380 + $0x1f8] sm:$0xff]
        %v1430 = vld [vmem:[%s380 + $0x200] sm:$0xff]
        %v1431 = vld [vmem:[%s380 + $0x208] sm:$0xff]
        %v1432 = vld [vmem:[%s380 + $0x210] sm:$0xff]
        %v1433 = vld [vmem:[%s380 + $0x218] sm:$0xff]
        %v1434 = vld [vmem:[%s380 + $0x220] sm:$0xff]
        %v1435 = vld [vmem:[%s380 + $0x228] sm:$0xff]
        %v1436 = vld [vmem:[%s380 + $0x230] sm:$0xff]
        %v1437 = vld [vmem:[%s380 + $0x238] sm:$0xff]
        %v1438 = vld [vmem:[%s380 + $0x240] sm:$0xff]
        %v1439 = vld [vmem:[%s380 + $0x248] sm:$0xff]
        %v1440 = vld [vmem:[%s380 + $0x250] sm:$0xff]
        %v1441 = vld [vmem:[%s380 + $0x258] sm:$0xff]
        %v1442 = vld [vmem:[%s380 + $0x260] sm:$0xff]
        %v1443 = vld [vmem:[%s380 + $0x268] sm:$0xff]
        %v1444 = vld [vmem:[%s380 + $0x270] sm:$0xff]
        %v1445 = vld [vmem:[%s380 + $0x278] sm:$0xff]
        %v1446 = vld [vmem:[%s380 + $0x280] sm:$0xff]
        %v1447 = vld [vmem:[%s380 + $0x288] sm:$0xff]
        %v1448 = vld [vmem:[%s380 + $0x290] sm:$0xff]
        %v1449 = vld [vmem:[%s380 + $0x298] sm:$0xff]
        %v1450 = vld [vmem:[%s380 + $0x2a0] sm:$0xff]
        %v1451 = vld [vmem:[%s380 + $0x2a8] sm:$0xff]
        %v1452 = vld [vmem:[%s380 + $0x2b0] sm:$0xff]
        %v1453 = vld [vmem:[%s380 + $0x2b8] sm:$0xff]
        %v1454 = vld [vmem:[%s380 + $0x2c0] sm:$0xff]
        %v1455 = vld [vmem:[%s380 + $0x2c8] sm:$0xff]
        %v1456 = vld [vmem:[%s380 + $0x2d0] sm:$0xff]
        %v1457 = vld [vmem:[%s380 + $0x2d8] sm:$0xff]
        %v1458 = vld [vmem:[%s380 + $0x2e0] sm:$0xff]
        %v1459 = vld [vmem:[%s380 + $0x2e8] sm:$0xff]
        %v1460 = vld [vmem:[%s380 + $0x2f0] sm:$0xff]
        %v1461 = vld [vmem:[%s380 + $0x2f8] sm:$0xff]
        %v1462 = vld [vmem:[%s380 + $0x300] sm:$0xff]
        %v1463 = vld [vmem:[%s380 + $0x308] sm:$0xff]
        %v1464 = vld [vmem:[%s380 + $0x310] sm:$0xff]
        %v1465 = vld [vmem:[%s380 + $0x318] sm:$0xff]
        %v1466 = vld [vmem:[%s380 + $0x320] sm:$0xff]
        %v1467 = vld [vmem:[%s380 + $0x328] sm:$0xff]
        %v1468 = vld [vmem:[%s380 + $0x330] sm:$0xff]
        %v1469 = vld [vmem:[%s380 + $0x338] sm:$0xff]
        %v1470 = vld [vmem:[%s380 + $0x340] sm:$0xff]
        %v1471 = vld [vmem:[%s380 + $0x348] sm:$0xff]
        %v1472 = vld [vmem:[%s380 + $0x350] sm:$0xff]
        %v1473 = vld [vmem:[%s380 + $0x358] sm:$0xff]
        %v1474 = vld [vmem:[%s380 + $0x360] sm:$0xff]
        %v1475 = vld [vmem:[%s380 + $0x368] sm:$0xff]
        %v1476 = vld [vmem:[%s380 + $0x370] sm:$0xff]
        %v1477 = vld [vmem:[%s380 + $0x378] sm:$0xff]
        %v1478 = vld [vmem:[%s380 + $0x380] sm:$0xff]
        %v1479 = vld [vmem:[%s380 + $0x388] sm:$0xff]
        %v1480 = vld [vmem:[%s380 + $0x390] sm:$0xff]
        %v1481 = vld [vmem:[%s380 + $0x398] sm:$0xff]
        %v1482 = vld [vmem:[%s380 + $0x3a0] sm:$0xff]
        %v1483 = vld [vmem:[%s380 + $0x3a8] sm:$0xff]
        %v1484 = vld [vmem:[%s380 + $0x3b0] sm:$0xff]
        %v1485 = vld [vmem:[%s380 + $0x3b8] sm:$0xff]
        %v1486 = vld [vmem:[%s380 + $0x3c0] sm:$0xff]
        %v1487 = vld [vmem:[%s380 + $0x3c8] sm:$0xff]
        %v1488 = vld [vmem:[%s380 + $0x3d0] sm:$0xff]
        %v1489 = vld [vmem:[%s380 + $0x3d8] sm:$0xff]
        %v1490 = vld [vmem:[%s380 + $0x3e0] sm:$0xff]
        %v1491 = vld [vmem:[%s380 + $0x3e8] sm:$0xff]
        %v1492 = vld [vmem:[%s380 + $0x3f0] sm:$0xff]
        %v1493 = vld [vmem:[%s380 + $0x3f8] sm:$0xff]
        %v1494 = vld [vmem:[%s380 + $0x400] sm:$0xff]
        %v1495 = vld [vmem:[%s380 + $0x408] sm:$0xff]
        %v1496 = vld [vmem:[%s380 + $0x410] sm:$0xff]
        %v1497 = vld [vmem:[%s380 + $0x418] sm:$0xff]
        %v1498 = vld [vmem:[%s380 + $0x420] sm:$0xff]
        %v1499 = vld [vmem:[%s380 + $0x428] sm:$0xff]
        %v1500 = vld [vmem:[%s380 + $0x430] sm:$0xff]
        %v1501 = vld [vmem:[%s380 + $0x438] sm:$0xff]
        %v1502 = vld [vmem:[%s380 + $0x440] sm:$0xff]
        %v1503 = vld [vmem:[%s380 + $0x448] sm:$0xff]
        %v1504 = vld [vmem:[%s380 + $0x450] sm:$0xff]
        %v1505 = vld [vmem:[%s380 + $0x458] sm:$0xff]
        %v1506 = vld [vmem:[%s380 + $0x460] sm:$0xff]
        %v1507 = vld [vmem:[%s380 + $0x468] sm:$0xff]
        %v1508 = vld [vmem:[%s380 + $0x470] sm:$0xff]
        %v1509 = vld [vmem:[%s380 + $0x478] sm:$0xff]
        %v1510 = vld [vmem:[%s380 + $0x480] sm:$0xff]
        %v1511 = vld [vmem:[%s380 + $0x488] sm:$0xff]
        %v1512 = vld [vmem:[%s380 + $0x490] sm:$0xff]
        %v1513 = vld [vmem:[%s380 + $0x498] sm:$0xff]
        %v1514 = vld [vmem:[%s380 + $0x4a0] sm:$0xff]
        %v1515 = vld [vmem:[%s380 + $0x4a8] sm:$0xff]
        %v1516 = vld [vmem:[%s380 + $0x4b0] sm:$0xff]
        %v1517 = vld [vmem:[%s380 + $0x4b8] sm:$0xff]
        %v1518 = vld [vmem:[%s380 + $0x4c0] sm:$0xff]
        %v1519 = vld [vmem:[%s380 + $0x4c8] sm:$0xff]
        %v1520 = vld [vmem:[%s380 + $0x4d0] sm:$0xff]
        %v1521 = vld [vmem:[%s380 + $0x4d8] sm:$0xff]
        %v1522 = vld [vmem:[%s380 + $0x4e0] sm:$0xff]
        %v1523 = vld [vmem:[%s380 + $0x4e8] sm:$0xff]
        %v1524 = vld [vmem:[%s380 + $0x4f0] sm:$0xff]
        %v1525 = vld [vmem:[%s380 + $0x4f8] sm:$0xff]
        %v1526 = vld [vmem:[%s380 + $0x500] sm:$0xff]
        %v1527 = vld [vmem:[%s380 + $0x508] sm:$0xff]
        %v1528 = vld [vmem:[%s380 + $0x510] sm:$0xff]
        %v1529 = vld [vmem:[%s380 + $0x518] sm:$0xff]
        %v1530 = vld [vmem:[%s380 + $0x520] sm:$0xff]
        %v1531 = vld [vmem:[%s380 + $0x528] sm:$0xff]
        %v1532 = vld [vmem:[%s380 + $0x530] sm:$0xff]
        %v1533 = vld [vmem:[%s380 + $0x538] sm:$0xff]
        %v1534 = vld [vmem:[%s380 + $0x540] sm:$0xff]
        %v1535 = vld [vmem:[%s380 + $0x548] sm:$0xff]
        %v1536 = vld [vmem:[%s380 + $0x550] sm:$0xff]
        %v1537 = vld [vmem:[%s380 + $0x558] sm:$0xff]
        %v1538 = vld [vmem:[%s380 + $0x560] sm:$0xff]
        %v1539 = vld [vmem:[%s380 + $0x568] sm:$0xff]
        %v1540 = vld [vmem:[%s380 + $0x570] sm:$0xff]
        %v1541 = vld [vmem:[%s380 + $0x578] sm:$0xff]
        %v1542 = vld [vmem:[%s380 + $0x580] sm:$0xff]
        %v1543 = vld [vmem:[%s380 + $0x588] sm:$0xff]
        %v1544 = vld [vmem:[%s380 + $0x590] sm:$0xff]
        %v1545 = vld [vmem:[%s380 + $0x598] sm:$0xff]
        %v1546 = vld [vmem:[%s380 + $0x5a0] sm:$0xff]
        %v1547 = vld [vmem:[%s380 + $0x5a8] sm:$0xff]
        %v1548 = vld [vmem:[%s380 + $0x5b0] sm:$0xff]
        %v1549 = vld [vmem:[%s380 + $0x5b8] sm:$0xff]
        %v1550 = vld [vmem:[%s380 + $0x5c0] sm:$0xff]
        %v1551 = vld [vmem:[%s380 + $0x5c8] sm:$0xff]
        %v1552 = vld [vmem:[%s380 + $0x5d0] sm:$0xff]
        %v1553 = vld [vmem:[%s380 + $0x5d8] sm:$0xff]
        %v1554 = vld [vmem:[%s380 + $0x5e0] sm:$0xff]
        %v1555 = vld [vmem:[%s380 + $0x5e8] sm:$0xff]
        %v1556 = vld [vmem:[%s380 + $0x5f0] sm:$0xff]
        %v1557 = vld [vmem:[%s380 + $0x5f8] sm:$0xff]
        %v1558 = vld [vmem:[%s380 + $0x600] sm:$0xff]
        %v1559 = vld [vmem:[%s380 + $0x608] sm:$0xff]
        %v1560 = vld [vmem:[%s380 + $0x610] sm:$0xff]
        %v1561 = vld [vmem:[%s380 + $0x618] sm:$0xff]
        %v1562 = vld [vmem:[%s380 + $0x620] sm:$0xff]
        %v1563 = vld [vmem:[%s380 + $0x628] sm:$0xff]
        %v1564 = vld [vmem:[%s380 + $0x630] sm:$0xff]
        %v1565 = vld [vmem:[%s380 + $0x638] sm:$0xff]
        %v1566 = vld [vmem:[%s380 + $0x640] sm:$0xff]
        %v1567 = vld [vmem:[%s380 + $0x648] sm:$0xff]
        %v1568 = vld [vmem:[%s380 + $0x650] sm:$0xff]
        %v1569 = vld [vmem:[%s380 + $0x658] sm:$0xff]
        %v1570 = vld [vmem:[%s380 + $0x660] sm:$0xff]
        %v1571 = vld [vmem:[%s380 + $0x668] sm:$0xff]
        %v1572 = vld [vmem:[%s380 + $0x670] sm:$0xff]
        %v1573 = vld [vmem:[%s380 + $0x678] sm:$0xff]
        %v1574 = vld [vmem:[%s380 + $0x680] sm:$0xff]
        %v1575 = vld [vmem:[%s380 + $0x688] sm:$0xff]
        %v1576 = vld [vmem:[%s380 + $0x690] sm:$0xff]
        %v1577 = vld [vmem:[%s380 + $0x698] sm:$0xff]
        %v1578 = vld [vmem:[%s380 + $0x6a0] sm:$0xff]
        %v1579 = vld [vmem:[%s380 + $0x6a8] sm:$0xff]
        %v1580 = vld [vmem:[%s380 + $0x6b0] sm:$0xff]
        %v1581 = vld [vmem:[%s380 + $0x6b8] sm:$0xff]
        %v1582 = vld [vmem:[%s380 + $0x6c0] sm:$0xff]
        %v1583 = vld [vmem:[%s380 + $0x6c8] sm:$0xff]
        %v1584 = vld [vmem:[%s380 + $0x6d0] sm:$0xff]
        %v1585 = vld [vmem:[%s380 + $0x6d8] sm:$0xff]
        %v1586 = vld [vmem:[%s380 + $0x6e0] sm:$0xff]
        %v1587 = vld [vmem:[%s380 + $0x6e8] sm:$0xff]
        %v1588 = vld [vmem:[%s380 + $0x6f0] sm:$0xff]
        %v1589 = vld [vmem:[%s380 + $0x6f8] sm:$0xff]
        %v1590 = vld [vmem:[%s380 + $0x700] sm:$0xff]
        %v1591 = vld [vmem:[%s380 + $0x708] sm:$0xff]
        %v1592 = vld [vmem:[%s380 + $0x710] sm:$0xff]
        %v1593 = vld [vmem:[%s380 + $0x718] sm:$0xff]
        %v1594 = vld [vmem:[%s380 + $0x720] sm:$0xff]
        %v1595 = vld [vmem:[%s380 + $0x728] sm:$0xff]
        %v1596 = vld [vmem:[%s380 + $0x730] sm:$0xff]
        %v1597 = vld [vmem:[%s380 + $0x738] sm:$0xff]
        %v1598 = vld [vmem:[%s380 + $0x740] sm:$0xff]
        %v1599 = vld [vmem:[%s380 + $0x748] sm:$0xff]
        %v1600 = vld [vmem:[%s380 + $0x750] sm:$0xff]
        %v1601 = vld [vmem:[%s380 + $0x758] sm:$0xff]
        %v1602 = vld [vmem:[%s380 + $0x760] sm:$0xff]
        %v1603 = vld [vmem:[%s380 + $0x768] sm:$0xff]
        %v1604 = vld [vmem:[%s380 + $0x770] sm:$0xff]
        %v1605 = vld [vmem:[%s380 + $0x778] sm:$0xff]
        %v1606 = vld [vmem:[%s380 + $0x780] sm:$0xff]
        %v1607 = vld [vmem:[%s380 + $0x788] sm:$0xff]
        %v1608 = vld [vmem:[%s380 + $0x790] sm:$0xff]
        %v1609 = vld [vmem:[%s380 + $0x798] sm:$0xff]
        %v1610 = vld [vmem:[%s380 + $0x7a0] sm:$0xff]
        %v1611 = vld [vmem:[%s380 + $0x7a8] sm:$0xff]
        %v1612 = vld [vmem:[%s380 + $0x7b0] sm:$0xff]
        %v1613 = vld [vmem:[%s380 + $0x7b8] sm:$0xff]
        %v1614 = vld [vmem:[%s380 + $0x7c0] sm:$0xff]
        %v1615 = vld [vmem:[%s380 + $0x7c8] sm:$0xff]
        %v1616 = vld [vmem:[%s380 + $0x7d0] sm:$0xff]
        %v1617 = vld [vmem:[%s380 + $0x7d8] sm:$0xff]
        %v1618 = vld [vmem:[%s380 + $0x7e0] sm:$0xff]
        %v1619 = vld [vmem:[%s380 + $0x7e8] sm:$0xff]
        %v1620 = vld [vmem:[%s380 + $0x7f0] sm:$0xff]
        %v1621 = vld [vmem:[%s380 + $0x7f8] sm:$0xff]
        %v1622 = vld [vmem:[%s380 + $0x800] sm:$0xff]
        %v1623 = vld [vmem:[%s380 + $0x808] sm:$0xff]
        %v1624 = vld [vmem:[%s380 + $0x810] sm:$0xff]
        %v1625 = vld [vmem:[%s380 + $0x818] sm:$0xff]
        %v1626 = vld [vmem:[%s380 + $0x820] sm:$0xff]
        %v1627 = vld [vmem:[%s380 + $0x828] sm:$0xff]
        %v1628 = vld [vmem:[%s380 + $0x830] sm:$0xff]
        %v1629 = vld [vmem:[%s380 + $0x838] sm:$0xff]
        %v1630 = vld [vmem:[%s380 + $0x840] sm:$0xff]
        %v1631 = vld [vmem:[%s380 + $0x848] sm:$0xff]
        %v1632 = vld [vmem:[%s380 + $0x850] sm:$0xff]
        %v1633 = vld [vmem:[%s380 + $0x858] sm:$0xff]
        %v1634 = vld [vmem:[%s380 + $0x860] sm:$0xff]
        %v1635 = vld [vmem:[%s380 + $0x868] sm:$0xff]
        %v1636 = vld [vmem:[%s380 + $0x870] sm:$0xff]
        %v1637 = vld [vmem:[%s380 + $0x878] sm:$0xff]
        %v1638 = vld [vmem:[%s380 + $0x880] sm:$0xff]
        %v1639 = vld [vmem:[%s380 + $0x888] sm:$0xff]
        %v1640 = vld [vmem:[%s380 + $0x890] sm:$0xff]
        %v1641 = vld [vmem:[%s380 + $0x898] sm:$0xff]
        %v1642 = vld [vmem:[%s380 + $0x8a0] sm:$0xff]
        %v1643 = vld [vmem:[%s380 + $0x8a8] sm:$0xff]
        %v1644 = vld [vmem:[%s380 + $0x8b0] sm:$0xff]
        %v1645 = vld [vmem:[%s380 + $0x8b8] sm:$0xff]
        %v1646 = vld [vmem:[%s380 + $0x8c0] sm:$0xff]
        %v1647 = vld [vmem:[%s380 + $0x8c8] sm:$0xff]
        %v1648 = vld [vmem:[%s380 + $0x8d0] sm:$0xff]
        %v1649 = vld [vmem:[%s380 + $0x8d8] sm:$0xff]
        %v1650 = vld [vmem:[%s380 + $0x8e0] sm:$0xff]
        %v1651 = vld [vmem:[%s380 + $0x8e8] sm:$0xff]
        %v1652 = vld [vmem:[%s380 + $0x8f0] sm:$0xff]
        %v1653 = vld [vmem:[%s380 + $0x8f8] sm:$0xff]
        %v1654 = vld [vmem:[%s380 + $0x900] sm:$0xff]
        %v1655 = vld [vmem:[%s380 + $0x908] sm:$0xff]
        %v1656 = vld [vmem:[%s380 + $0x910] sm:$0xff]
        %v1657 = vld [vmem:[%s380 + $0x918] sm:$0xff]
        %v1658 = vld [vmem:[%s380 + $0x920] sm:$0xff]
        %v1659 = vld [vmem:[%s380 + $0x928] sm:$0xff]
        %v1660 = vld [vmem:[%s380 + $0x930] sm:$0xff]
        %v1661 = vld [vmem:[%s380 + $0x938] sm:$0xff]
        %v1662 = vld [vmem:[%s380 + $0x940] sm:$0xff]
        %v1663 = vld [vmem:[%s380 + $0x948] sm:$0xff]
        %v1664 = vld [vmem:[%s380 + $0x950] sm:$0xff]
        %v1665 = vld [vmem:[%s380 + $0x958] sm:$0xff]
        %v1666 = vld [vmem:[%s380 + $0x960] sm:$0xff]
        %v1667 = vld [vmem:[%s380 + $0x968] sm:$0xff]
        %v1668 = vld [vmem:[%s380 + $0x970] sm:$0xff]
        %v1669 = vld [vmem:[%s380 + $0x978] sm:$0xff]
        %v1670 = vld [vmem:[%s380 + $0x980] sm:$0xff]
        %v1671 = vld [vmem:[%s380 + $0x988] sm:$0xff]
        %v1672 = vld [vmem:[%s380 + $0x990] sm:$0xff]
        %v1673 = vld [vmem:[%s380 + $0x998] sm:$0xff]
        %v1674 = vld [vmem:[%s380 + $0x9a0] sm:$0xff]
        %v1675 = vld [vmem:[%s380 + $0x9a8] sm:$0xff]
        %v1676 = vld [vmem:[%s380 + $0x9b0] sm:$0xff]
        %v1677 = vld [vmem:[%s380 + $0x9b8] sm:$0xff]
        %v1678 = vld [vmem:[%s380 + $0x9c0] sm:$0xff]
        %v1679 = vld [vmem:[%s380 + $0x9c8] sm:$0xff]
        %v1680 = vld [vmem:[%s380 + $0x9d0] sm:$0xff]
        %v1681 = vld [vmem:[%s380 + $0x9d8] sm:$0xff]
        %v1682 = vld [vmem:[%s380 + $0x9e0] sm:$0xff]
        %v1683 = vld [vmem:[%s380 + $0x9e8] sm:$0xff]
        %v1684 = vld [vmem:[%s380 + $0x9f0] sm:$0xff]
        %v1685 = vld [vmem:[%s380 + $0x9f8] sm:$0xff]
        %v1686 = vld [vmem:[%s380 + $0xa00] sm:$0xff]
        %v1687 = vld [vmem:[%s380 + $0xa08] sm:$0xff]
        %v1688 = vld [vmem:[%s380 + $0xa10] sm:$0xff]
        %v1689 = vld [vmem:[%s380 + $0xa18] sm:$0xff]
        %v1690 = vld [vmem:[%s380 + $0xa20] sm:$0xff]
        %v1691 = vld [vmem:[%s380 + $0xa28] sm:$0xff]
        %v1692 = vld [vmem:[%s380 + $0xa30] sm:$0xff]
        %v1693 = vld [vmem:[%s380 + $0xa38] sm:$0xff]
        %v1694 = vld [vmem:[%s380 + $0xa40] sm:$0xff]
        %v1695 = vld [vmem:[%s380 + $0xa48] sm:$0xff]
        %v1696 = vld [vmem:[%s380 + $0xa50] sm:$0xff]
        %v1697 = vld [vmem:[%s380 + $0xa58] sm:$0xff]
        %v1698 = vld [vmem:[%s380 + $0xa60] sm:$0xff]
        %v1699 = vld [vmem:[%s380 + $0xa68] sm:$0xff]
        %v1700 = vld [vmem:[%s380 + $0xa70] sm:$0xff]
        %v1701 = vld [vmem:[%s380 + $0xa78] sm:$0xff]
        %v1702 = vld [vmem:[%s380 + $0xa80] sm:$0xff]
        %v1703 = vld [vmem:[%s380 + $0xa88] sm:$0xff]
        %v1704 = vld [vmem:[%s380 + $0xa90] sm:$0xff]
        %v1705 = vld [vmem:[%s380 + $0xa98] sm:$0xff]
        %v1706 = vld [vmem:[%s380 + $0xaa0] sm:$0xff]
        %v1707 = vld [vmem:[%s380 + $0xaa8] sm:$0xff]
        %v1708 = vld [vmem:[%s380 + $0xab0] sm:$0xff]
        %v1709 = vld [vmem:[%s380 + $0xab8] sm:$0xff]
        %v1710 = vld [vmem:[%s380 + $0xac0] sm:$0xff]
        %v1711 = vld [vmem:[%s380 + $0xac8] sm:$0xff]
        %v1712 = vld [vmem:[%s380 + $0xad0] sm:$0xff]
        %v1713 = vld [vmem:[%s380 + $0xad8] sm:$0xff]
        %v1714 = vld [vmem:[%s380 + $0xae0] sm:$0xff]
        %v1715 = vld [vmem:[%s380 + $0xae8] sm:$0xff]
        %v1716 = vld [vmem:[%s380 + $0xaf0] sm:$0xff]
        %v1717 = vld [vmem:[%s380 + $0xaf8] sm:$0xff]
        %v1718 = vld [vmem:[%s380 + $0xb00] sm:$0xff]
        %v1719 = vld [vmem:[%s380 + $0xb08] sm:$0xff]
        %v1720 = vld [vmem:[%s380 + $0xb10] sm:$0xff]
        %v1721 = vld [vmem:[%s380 + $0xb18] sm:$0xff]
        %v1722 = vld [vmem:[%s380 + $0xb20] sm:$0xff]
        %v1723 = vld [vmem:[%s380 + $0xb28] sm:$0xff]
        %v1724 = vld [vmem:[%s380 + $0xb30] sm:$0xff]
        %v1725 = vld [vmem:[%s380 + $0xb38] sm:$0xff]
        %v1726 = vld [vmem:[%s380 + $0xb40] sm:$0xff]
        %v1727 = vld [vmem:[%s380 + $0xb48] sm:$0xff]
        %v1728 = vld [vmem:[%s380 + $0xb50] sm:$0xff]
        %v1729 = vld [vmem:[%s380 + $0xb58] sm:$0xff]
        %v1730 = vld [vmem:[%s380 + $0xb60] sm:$0xff]
        %v1731 = vld [vmem:[%s380 + $0xb68] sm:$0xff]
        %v1732 = vld [vmem:[%s380 + $0xb70] sm:$0xff]
        %v1733 = vld [vmem:[%s380 + $0xb78] sm:$0xff]
        %v1734 = vld [vmem:[%s380 + $0xb80] sm:$0xff]
        %v1735 = vld [vmem:[%s380 + $0xb88] sm:$0xff]
        %v1736 = vld [vmem:[%s380 + $0xb90] sm:$0xff]
        %v1737 = vld [vmem:[%s380 + $0xb98] sm:$0xff]
        %v1738 = vld [vmem:[%s380 + $0xba0] sm:$0xff]
        %v1739 = vld [vmem:[%s380 + $0xba8] sm:$0xff]
        %v1740 = vld [vmem:[%s380 + $0xbb0] sm:$0xff]
        %v1741 = vld [vmem:[%s380 + $0xbb8] sm:$0xff]
        %v1742 = vld [vmem:[%s380 + $0xbc0] sm:$0xff]
        %v1743 = vld [vmem:[%s380 + $0xbc8] sm:$0xff]
        %v1744 = vld [vmem:[%s380 + $0xbd0] sm:$0xff]
        %v1745 = vld [vmem:[%s380 + $0xbd8] sm:$0xff]
        %v1746 = vld [vmem:[%s380 + $0xbe0] sm:$0xff]
        %v1747 = vld [vmem:[%s380 + $0xbe8] sm:$0xff]
        %v1748 = vld [vmem:[%s380 + $0xbf0] sm:$0xff]
        %v1749 = vld [vmem:[%s380 + $0xbf8] sm:$0xff]
        %v1750 = vld [vmem:[%s380 + $0xc00] sm:$0xff]
        %v1751 = vld [vmem:[%s380 + $0xc08] sm:$0xff]
        %v1752 = vld [vmem:[%s380 + $0xc10] sm:$0xff]
        %v1753 = vld [vmem:[%s380 + $0xc18] sm:$0xff]
        %v1754 = vld [vmem:[%s380 + $0xc20] sm:$0xff]
        %v1755 = vld [vmem:[%s380 + $0xc28] sm:$0xff]
        %v1756 = vld [vmem:[%s380 + $0xc30] sm:$0xff]
        %v1757 = vld [vmem:[%s380 + $0xc38] sm:$0xff]
        %v1758 = vld [vmem:[%s380 + $0xc40] sm:$0xff]
        %v1759 = vld [vmem:[%s380 + $0xc48] sm:$0xff]
        %v1760 = vld [vmem:[%s380 + $0xc50] sm:$0xff]
        %v1761 = vld [vmem:[%s380 + $0xc58] sm:$0xff]
        %v1762 = vld [vmem:[%s380 + $0xc60] sm:$0xff]
        %v1763 = vld [vmem:[%s380 + $0xc68] sm:$0xff]
        %v1764 = vld [vmem:[%s380 + $0xc70] sm:$0xff]
        %v1765 = vld [vmem:[%s380 + $0xc78] sm:$0xff]
        %v1766 = vld [vmem:[%s380 + $0xc80] sm:$0xff]
        %v1767 = vld [vmem:[%s380 + $0xc88] sm:$0xff]
        %v1768 = vld [vmem:[%s380 + $0xc90] sm:$0xff]
        %v1769 = vld [vmem:[%s380 + $0xc98] sm:$0xff]
        %v1770 = vld [vmem:[%s380 + $0xca0] sm:$0xff]
        %v1771 = vld [vmem:[%s380 + $0xca8] sm:$0xff]
        %v1772 = vld [vmem:[%s380 + $0xcb0] sm:$0xff]
        %v1773 = vld [vmem:[%s380 + $0xcb8] sm:$0xff]
        %v1774 = vld [vmem:[%s380 + $0xcc0] sm:$0xff]
        %v1775 = vld [vmem:[%s380 + $0xcc8] sm:$0xff]
        %v1776 = vld [vmem:[%s380 + $0xcd0] sm:$0xff]
        %v1777 = vld [vmem:[%s380 + $0xcd8] sm:$0xff]
        %v1778 = vld [vmem:[%s380 + $0xce0] sm:$0xff]
        %v1779 = vld [vmem:[%s380 + $0xce8] sm:$0xff]
        %v1780 = vld [vmem:[%s380 + $0xcf0] sm:$0xff]
        %v1781 = vld [vmem:[%s380 + $0xcf8] sm:$0xff]
        %v1782 = vld [vmem:[%s380 + $0xd00] sm:$0xff]
        %v1783 = vld [vmem:[%s380 + $0xd08] sm:$0xff]
        %v1784 = vld [vmem:[%s380 + $0xd10] sm:$0xff]
        %v1785 = vld [vmem:[%s380 + $0xd18] sm:$0xff]
        %v1786 = vld [vmem:[%s380 + $0xd20] sm:$0xff]
        %v1787 = vld [vmem:[%s380 + $0xd28] sm:$0xff]
        %v1788 = vld [vmem:[%s380 + $0xd30] sm:$0xff]
        %v1789 = vld [vmem:[%s380 + $0xd38] sm:$0xff]
        %v1790 = vld [vmem:[%s380 + $0xd40] sm:$0xff]
        %v1791 = vld [vmem:[%s380 + $0xd48] sm:$0xff]
        %v1792 = vld [vmem:[%s380 + $0xd50] sm:$0xff]
        %v1793 = vld [vmem:[%s380 + $0xd58] sm:$0xff]
        %v1794 = vld [vmem:[%s380 + $0xd60] sm:$0xff]
        %v1795 = vld [vmem:[%s380 + $0xd68] sm:$0xff]
        %v1796 = vld [vmem:[%s380 + $0xd70] sm:$0xff]
        %v1797 = vld [vmem:[%s380 + $0xd78] sm:$0xff]
        %v1798 = vld [vmem:[%s380 + $0xd80] sm:$0xff]
        %v1799 = vld [vmem:[%s380 + $0xd88] sm:$0xff]
        %v1800 = vld [vmem:[%s380 + $0xd90] sm:$0xff]
        %v1801 = vld [vmem:[%s380 + $0xd98] sm:$0xff]
        %v1802 = vld [vmem:[%s380 + $0xda0] sm:$0xff]
        %v1803 = vld [vmem:[%s380 + $0xda8] sm:$0xff]
        %v1804 = vld [vmem:[%s380 + $0xdb0] sm:$0xff]
        %v1805 = vld [vmem:[%s380 + $0xdb8] sm:$0xff]
        %v1806 = vld [vmem:[%s380 + $0xdc0] sm:$0xff]
        %v1807 = vld [vmem:[%s380 + $0xdc8] sm:$0xff]
        %v1808 = vld [vmem:[%s380 + $0xdd0] sm:$0xff]
        %v1809 = vld [vmem:[%s380 + $0xdd8] sm:$0xff]
        %v1810 = vld [vmem:[%s380 + $0xde0] sm:$0xff]
        %v1811 = vld [vmem:[%s380 + $0xde8] sm:$0xff]
        %v1812 = vld [vmem:[%s380 + $0xdf0] sm:$0xff]
        %v1813 = vld [vmem:[%s380 + $0xdf8] sm:$0xff]
        %v1814 = vld [vmem:[%s380 + $0xe00] sm:$0xff]
        %v1815 = vld [vmem:[%s380 + $0xe08] sm:$0xff]
        %v1816 = vld [vmem:[%s380 + $0xe10] sm:$0xff]
        %v1817 = vld [vmem:[%s380 + $0xe18] sm:$0xff]
        %v1818 = vld [vmem:[%s380 + $0xe20] sm:$0xff]
        %v1819 = vld [vmem:[%s380 + $0xe28] sm:$0xff]
        %v1820 = vld [vmem:[%s380 + $0xe30] sm:$0xff]
        %v1821 = vld [vmem:[%s380 + $0xe38] sm:$0xff]
        %v1822 = vld [vmem:[%s380 + $0xe40] sm:$0xff]
        %v1823 = vld [vmem:[%s380 + $0xe48] sm:$0xff]
        %v1824 = vld [vmem:[%s380 + $0xe50] sm:$0xff]
        %v1825 = vld [vmem:[%s380 + $0xe58] sm:$0xff]
        %v1826 = vld [vmem:[%s380 + $0xe60] sm:$0xff]
        %v1827 = vld [vmem:[%s380 + $0xe68] sm:$0xff]
        %v1828 = vld [vmem:[%s380 + $0xe70] sm:$0xff]
        %v1829 = vld [vmem:[%s380 + $0xe78] sm:$0xff]
        %v1830 = vld [vmem:[%s380 + $0xe80] sm:$0xff]
        %v1831 = vld [vmem:[%s380 + $0xe88] sm:$0xff]
        %v1832 = vld [vmem:[%s380 + $0xe90] sm:$0xff]
        %v1833 = vld [vmem:[%s380 + $0xe98] sm:$0xff]
        %v1834 = vld [vmem:[%s380 + $0xea0] sm:$0xff]
        %v1835 = vld [vmem:[%s380 + $0xea8] sm:$0xff]
        %v1836 = vld [vmem:[%s380 + $0xeb0] sm:$0xff]
        %v1837 = vld [vmem:[%s380 + $0xeb8] sm:$0xff]
        %v1838 = vld [vmem:[%s380 + $0xec0] sm:$0xff]
        %v1839 = vld [vmem:[%s380 + $0xec8] sm:$0xff]
        %v1840 = vld [vmem:[%s380 + $0xed0] sm:$0xff]
        %v1841 = vld [vmem:[%s380 + $0xed8] sm:$0xff]
        %v1842 = vld [vmem:[%s380 + $0xee0] sm:$0xff]
        %v1843 = vld [vmem:[%s380 + $0xee8] sm:$0xff]
        %v1844 = vld [vmem:[%s380 + $0xef0] sm:$0xff]
        %v1845 = vld [vmem:[%s380 + $0xef8] sm:$0xff]
        %v1846 = vld [vmem:[%s380 + $0xf00] sm:$0xff]
        %v1847 = vld [vmem:[%s380 + $0xf08] sm:$0xff]
        %v1848 = vld [vmem:[%s380 + $0xf10] sm:$0xff]
        %v1849 = vld [vmem:[%s380 + $0xf18] sm:$0xff]
        %v1850 = vld [vmem:[%s380 + $0xf20] sm:$0xff]
        %v1851 = vld [vmem:[%s380 + $0xf28] sm:$0xff]
        %v1852 = vld [vmem:[%s380 + $0xf30] sm:$0xff]
        %v1853 = vld [vmem:[%s380 + $0xf38] sm:$0xff]
        %v1854 = vld [vmem:[%s380 + $0xf40] sm:$0xff]
        %v1855 = vld [vmem:[%s380 + $0xf48] sm:$0xff]
        %v1856 = vld [vmem:[%s380 + $0xf50] sm:$0xff]
        %v1857 = vld [vmem:[%s380 + $0xf58] sm:$0xff]
        %v1858 = vld [vmem:[%s380 + $0xf60] sm:$0xff]
        %v1859 = vld [vmem:[%s380 + $0xf68] sm:$0xff]
        %v1860 = vld [vmem:[%s380 + $0xf70] sm:$0xff]
        %v1861 = vld [vmem:[%s380 + $0xf78] sm:$0xff]
        %v1862 = vld [vmem:[%s380 + $0xf80] sm:$0xff]
        %v1863 = vld [vmem:[%s380 + $0xf88] sm:$0xff]
        %v1864 = vld [vmem:[%s380 + $0xf90] sm:$0xff]
        %v1865 = vld [vmem:[%s380 + $0xf98] sm:$0xff]
        %v1866 = vld [vmem:[%s380 + $0xfa0] sm:$0xff]
        %v1867 = vld [vmem:[%s380 + $0xfa8] sm:$0xff]
        %v1868 = vld [vmem:[%s380 + $0xfb0] sm:$0xff]
        %v1869 = vld [vmem:[%s380 + $0xfb8] sm:$0xff]
        %v1870 = vld [vmem:[%s380 + $0xfc0] sm:$0xff]
        %v1871 = vld [vmem:[%s380 + $0xfc8] sm:$0xff]
        %v1872 = vld [vmem:[%s380 + $0xfd0] sm:$0xff]
        %v1873 = vld [vmem:[%s380 + $0xfd8] sm:$0xff]
        %v1874 = vld [vmem:[%s380 + $0xfe0] sm:$0xff]
        %v1875 = vld [vmem:[%s380 + $0xfe8] sm:$0xff]
        %v1876 = vld [vmem:[%s380 + $0xff0] sm:$0xff]
        %v1877 = vld [vmem:[%s380 + $0xff8] sm:$0xff]
        %v1886 = vunpack.c.l.b16 %v1358
        %v1887 = vunpack.c.h.b16 %v1358
        %v1888 = vunpack.c.l.b16 %v1359
        %v1889 = vunpack.c.h.b16 %v1359
        %v1890 = vunpack.c.l.b16 %v1360
        %v1891 = vunpack.c.h.b16 %v1360
        %v1892 = vunpack.c.l.b16 %v1361
        %v1893 = vunpack.c.h.b16 %v1361
        %v1894 = vunpack.c.l.b16 %v1362
        %v1895 = vunpack.c.h.b16 %v1362
        %v1896 = vunpack.c.l.b16 %v1363
        %v1897 = vunpack.c.h.b16 %v1363
        %v1898 = vunpack.c.l.b16 %v1364
        %v1899 = vunpack.c.h.b16 %v1364
        %v1900 = vunpack.c.l.b16 %v1365
        %v1901 = vunpack.c.h.b16 %v1365
        %v1902 = vpack.c.b16 %v1886, %v1886
        %v1903 = vpack.c.b16 %v1887, %v1887
        %v1904 = vpack.c.b16 %v1888, %v1888
        %v1905 = vpack.c.b16 %v1889, %v1889
        %v1906 = vpack.c.b16 %v1890, %v1890
        %v1907 = vpack.c.b16 %v1891, %v1891
        %v1908 = vpack.c.b16 %v1892, %v1892
        %v1909 = vpack.c.b16 %v1893, %v1893
        %v1910 = vpack.c.b16 %v1894, %v1894
        %v1911 = vpack.c.b16 %v1895, %v1895
        %v1912 = vpack.c.b16 %v1896, %v1896
        %v1913 = vpack.c.b16 %v1897, %v1897
        %v1914 = vpack.c.b16 %v1898, %v1898
        %v1915 = vpack.c.b16 %v1899, %v1899
        %v1916 = vpack.c.b16 %v1900, %v1900
        %v1917 = vpack.c.b16 %v1901, %v1901
        %v2446 = vunpack.c.l.b16 %v1366
        %v2447 = vunpack.c.h.b16 %v1366
        %v2448 = vunpack.c.l.b16 %v1367
        %v2449 = vunpack.c.h.b16 %v1367
        %v2450 = vunpack.c.l.b16 %v1368
        %v2451 = vunpack.c.h.b16 %v1368
        %v2452 = vunpack.c.l.b16 %v1369
        %v2453 = vunpack.c.h.b16 %v1369
        %v2454 = vunpack.c.l.b16 %v1370
        %v2455 = vunpack.c.h.b16 %v1370
        %v2456 = vunpack.c.l.b16 %v1371
        %v2457 = vunpack.c.h.b16 %v1371
        %v2458 = vunpack.c.l.b16 %v1372
        %v2459 = vunpack.c.h.b16 %v1372
        %v2460 = vunpack.c.l.b16 %v1373
        %v2461 = vunpack.c.h.b16 %v1373
        %v2462 = vunpack.c.l.b16 %v1374
        %v2463 = vunpack.c.h.b16 %v1374
        %v2464 = vunpack.c.l.b16 %v1375
        %v2465 = vunpack.c.h.b16 %v1375
        %v2466 = vunpack.c.l.b16 %v1376
        %v2467 = vunpack.c.h.b16 %v1376
        %v2468 = vunpack.c.l.b16 %v1377
        %v2469 = vunpack.c.h.b16 %v1377
        %v2470 = vunpack.c.l.b16 %v1378
        %v2471 = vunpack.c.h.b16 %v1378
        %v2472 = vunpack.c.l.b16 %v1379
        %v2473 = vunpack.c.h.b16 %v1379
        %v2474 = vunpack.c.l.b16 %v1380
        %v2475 = vunpack.c.h.b16 %v1380
        %v2476 = vunpack.c.l.b16 %v1381
        %v2477 = vunpack.c.h.b16 %v1381
        %v2478 = vunpack.c.l.b16 %v1382
        %v2479 = vunpack.c.h.b16 %v1382
        %v2480 = vunpack.c.l.b16 %v1383
        %v2481 = vunpack.c.h.b16 %v1383
        %v2482 = vunpack.c.l.b16 %v1384
        %v2483 = vunpack.c.h.b16 %v1384
        %v2484 = vunpack.c.l.b16 %v1385
        %v2485 = vunpack.c.h.b16 %v1385
        %v2486 = vunpack.c.l.b16 %v1386
        %v2487 = vunpack.c.h.b16 %v1386
        %v2488 = vunpack.c.l.b16 %v1387
        %v2489 = vunpack.c.h.b16 %v1387
        %v2490 = vunpack.c.l.b16 %v1388
        %v2491 = vunpack.c.h.b16 %v1388
        %v2492 = vunpack.c.l.b16 %v1389
        %v2493 = vunpack.c.h.b16 %v1389
        %v2494 = vunpack.c.l.b16 %v1390
        %v2495 = vunpack.c.h.b16 %v1390
        %v2496 = vunpack.c.l.b16 %v1391
        %v2497 = vunpack.c.h.b16 %v1391
        %v2498 = vunpack.c.l.b16 %v1392
        %v2499 = vunpack.c.h.b16 %v1392
        %v2500 = vunpack.c.l.b16 %v1393
        %v2501 = vunpack.c.h.b16 %v1393
        %v2502 = vunpack.c.l.b16 %v1394
        %v2503 = vunpack.c.h.b16 %v1394
        %v2504 = vunpack.c.l.b16 %v1395
        %v2505 = vunpack.c.h.b16 %v1395
        %v2506 = vunpack.c.l.b16 %v1396
        %v2507 = vunpack.c.h.b16 %v1396
        %v2508 = vunpack.c.l.b16 %v1397
        %v2509 = vunpack.c.h.b16 %v1397
        %v2510 = vunpack.c.l.b16 %v1398
        %v2511 = vunpack.c.h.b16 %v1398
        %v2512 = vunpack.c.l.b16 %v1399
        %v2513 = vunpack.c.h.b16 %v1399
        %v2514 = vunpack.c.l.b16 %v1400
        %v2515 = vunpack.c.h.b16 %v1400
        %v2516 = vunpack.c.l.b16 %v1401
        %v2517 = vunpack.c.h.b16 %v1401
        %v2518 = vunpack.c.l.b16 %v1402
        %v2519 = vunpack.c.h.b16 %v1402
        %v2520 = vunpack.c.l.b16 %v1403
        %v2521 = vunpack.c.h.b16 %v1403
        %v2522 = vunpack.c.l.b16 %v1404
        %v2523 = vunpack.c.h.b16 %v1404
        %v2524 = vunpack.c.l.b16 %v1405
        %v2525 = vunpack.c.h.b16 %v1405
        %v2526 = vunpack.c.l.b16 %v1406
        %v2527 = vunpack.c.h.b16 %v1406
        %v2528 = vunpack.c.l.b16 %v1407
        %v2529 = vunpack.c.h.b16 %v1407
        %v2530 = vunpack.c.l.b16 %v1408
        %v2531 = vunpack.c.h.b16 %v1408
        %v2532 = vunpack.c.l.b16 %v1409
        %v2533 = vunpack.c.h.b16 %v1409
        %v2534 = vunpack.c.l.b16 %v1410
        %v2535 = vunpack.c.h.b16 %v1410
        %v2536 = vunpack.c.l.b16 %v1411
        %v2537 = vunpack.c.h.b16 %v1411
        %v2538 = vunpack.c.l.b16 %v1412
        %v2539 = vunpack.c.h.b16 %v1412
        %v2540 = vunpack.c.l.b16 %v1413
        %v2541 = vunpack.c.h.b16 %v1413
        %v2542 = vunpack.c.l.b16 %v1414
        %v2543 = vunpack.c.h.b16 %v1414
        %v2544 = vunpack.c.l.b16 %v1415
        %v2545 = vunpack.c.h.b16 %v1415
        %v2546 = vunpack.c.l.b16 %v1416
        %v2547 = vunpack.c.h.b16 %v1416
        %v2548 = vunpack.c.l.b16 %v1417
        %v2549 = vunpack.c.h.b16 %v1417
        %v2550 = vunpack.c.l.b16 %v1418
        %v2551 = vunpack.c.h.b16 %v1418
        %v2552 = vunpack.c.l.b16 %v1419
        %v2553 = vunpack.c.h.b16 %v1419
        %v2554 = vunpack.c.l.b16 %v1420
        %v2555 = vunpack.c.h.b16 %v1420
        %v2556 = vunpack.c.l.b16 %v1421
        %v2557 = vunpack.c.h.b16 %v1421
        %v2558 = vunpack.c.l.b16 %v1422
        %v2559 = vunpack.c.h.b16 %v1422
        %v2560 = vunpack.c.l.b16 %v1423
        %v2561 = vunpack.c.h.b16 %v1423
        %v2562 = vunpack.c.l.b16 %v1424
        %v2563 = vunpack.c.h.b16 %v1424
        %v2564 = vunpack.c.l.b16 %v1425
        %v2565 = vunpack.c.h.b16 %v1425
        %v2566 = vunpack.c.l.b16 %v1426
        %v2567 = vunpack.c.h.b16 %v1426
        %v2568 = vunpack.c.l.b16 %v1427
        %v2569 = vunpack.c.h.b16 %v1427
        %v2570 = vunpack.c.l.b16 %v1428
        %v2571 = vunpack.c.h.b16 %v1428
        %v2572 = vunpack.c.l.b16 %v1429
        %v2573 = vunpack.c.h.b16 %v1429
        %v2574 = vunpack.c.l.b16 %v1430
        %v2575 = vunpack.c.h.b16 %v1430
        %v2576 = vunpack.c.l.b16 %v1431
        %v2577 = vunpack.c.h.b16 %v1431
        %v2578 = vunpack.c.l.b16 %v1432
        %v2579 = vunpack.c.h.b16 %v1432
        %v2580 = vunpack.c.l.b16 %v1433
        %v2581 = vunpack.c.h.b16 %v1433
        %v2582 = vunpack.c.l.b16 %v1434
        %v2583 = vunpack.c.h.b16 %v1434
        %v2584 = vunpack.c.l.b16 %v1435
        %v2585 = vunpack.c.h.b16 %v1435
        %v2586 = vunpack.c.l.b16 %v1436
        %v2587 = vunpack.c.h.b16 %v1436
        %v2588 = vunpack.c.l.b16 %v1437
        %v2589 = vunpack.c.h.b16 %v1437
        %v2590 = vunpack.c.l.b16 %v1438
        %v2591 = vunpack.c.h.b16 %v1438
        %v2592 = vunpack.c.l.b16 %v1439
        %v2593 = vunpack.c.h.b16 %v1439
        %v2594 = vunpack.c.l.b16 %v1440
        %v2595 = vunpack.c.h.b16 %v1440
        %v2596 = vunpack.c.l.b16 %v1441
        %v2597 = vunpack.c.h.b16 %v1441
        %v2598 = vunpack.c.l.b16 %v1442
        %v2599 = vunpack.c.h.b16 %v1442
        %v2600 = vunpack.c.l.b16 %v1443
        %v2601 = vunpack.c.h.b16 %v1443
        %v2602 = vunpack.c.l.b16 %v1444
        %v2603 = vunpack.c.h.b16 %v1444
        %v2604 = vunpack.c.l.b16 %v1445
        %v2605 = vunpack.c.h.b16 %v1445
        %v2606 = vunpack.c.l.b16 %v1446
        %v2607 = vunpack.c.h.b16 %v1446
        %v2608 = vunpack.c.l.b16 %v1447
        %v2609 = vunpack.c.h.b16 %v1447
        %v2610 = vunpack.c.l.b16 %v1448
        %v2611 = vunpack.c.h.b16 %v1448
        %v2612 = vunpack.c.l.b16 %v1449
        %v2613 = vunpack.c.h.b16 %v1449
        %v2614 = vunpack.c.l.b16 %v1450
        %v2615 = vunpack.c.h.b16 %v1450
        %v2616 = vunpack.c.l.b16 %v1451
        %v2617 = vunpack.c.h.b16 %v1451
        %v2618 = vunpack.c.l.b16 %v1452
        %v2619 = vunpack.c.h.b16 %v1452
        %v2620 = vunpack.c.l.b16 %v1453
        %v2621 = vunpack.c.h.b16 %v1453
        %v2622 = vunpack.c.l.b16 %v1454
        %v2623 = vunpack.c.h.b16 %v1454
        %v2624 = vunpack.c.l.b16 %v1455
        %v2625 = vunpack.c.h.b16 %v1455
        %v2626 = vunpack.c.l.b16 %v1456
        %v2627 = vunpack.c.h.b16 %v1456
        %v2628 = vunpack.c.l.b16 %v1457
        %v2629 = vunpack.c.h.b16 %v1457
        %v2630 = vunpack.c.l.b16 %v1458
        %v2631 = vunpack.c.h.b16 %v1458
        %v2632 = vunpack.c.l.b16 %v1459
        %v2633 = vunpack.c.h.b16 %v1459
        %v2634 = vunpack.c.l.b16 %v1460
        %v2635 = vunpack.c.h.b16 %v1460
        %v2636 = vunpack.c.l.b16 %v1461
        %v2637 = vunpack.c.h.b16 %v1461
        %v2638 = vunpack.c.l.b16 %v1462
        %v2639 = vunpack.c.h.b16 %v1462
        %v2640 = vunpack.c.l.b16 %v1463
        %v2641 = vunpack.c.h.b16 %v1463
        %v2642 = vunpack.c.l.b16 %v1464
        %v2643 = vunpack.c.h.b16 %v1464
        %v2644 = vunpack.c.l.b16 %v1465
        %v2645 = vunpack.c.h.b16 %v1465
        %v2646 = vunpack.c.l.b16 %v1466
        %v2647 = vunpack.c.h.b16 %v1466
        %v2648 = vunpack.c.l.b16 %v1467
        %v2649 = vunpack.c.h.b16 %v1467
        %v2650 = vunpack.c.l.b16 %v1468
        %v2651 = vunpack.c.h.b16 %v1468
        %v2652 = vunpack.c.l.b16 %v1469
        %v2653 = vunpack.c.h.b16 %v1469
        %v2654 = vunpack.c.l.b16 %v1470
        %v2655 = vunpack.c.h.b16 %v1470
        %v2656 = vunpack.c.l.b16 %v1471
        %v2657 = vunpack.c.h.b16 %v1471
        %v2658 = vunpack.c.l.b16 %v1472
        %v2659 = vunpack.c.h.b16 %v1472
        %v2660 = vunpack.c.l.b16 %v1473
        %v2661 = vunpack.c.h.b16 %v1473
        %v2662 = vunpack.c.l.b16 %v1474
        %v2663 = vunpack.c.h.b16 %v1474
        %v2664 = vunpack.c.l.b16 %v1475
        %v2665 = vunpack.c.h.b16 %v1475
        %v2666 = vunpack.c.l.b16 %v1476
        %v2667 = vunpack.c.h.b16 %v1476
        %v2668 = vunpack.c.l.b16 %v1477
        %v2669 = vunpack.c.h.b16 %v1477
        %v2670 = vunpack.c.l.b16 %v1478
        %v2671 = vunpack.c.h.b16 %v1478
        %v2672 = vunpack.c.l.b16 %v1479
        %v2673 = vunpack.c.h.b16 %v1479
        %v2674 = vunpack.c.l.b16 %v1480
        %v2675 = vunpack.c.h.b16 %v1480
        %v2676 = vunpack.c.l.b16 %v1481
        %v2677 = vunpack.c.h.b16 %v1481
        %v2678 = vunpack.c.l.b16 %v1482
        %v2679 = vunpack.c.h.b16 %v1482
        %v2680 = vunpack.c.l.b16 %v1483
        %v2681 = vunpack.c.h.b16 %v1483
        %v2682 = vunpack.c.l.b16 %v1484
        %v2683 = vunpack.c.h.b16 %v1484
        %v2684 = vunpack.c.l.b16 %v1485
        %v2685 = vunpack.c.h.b16 %v1485
        %v2686 = vunpack.c.l.b16 %v1486
        %v2687 = vunpack.c.h.b16 %v1486
        %v2688 = vunpack.c.l.b16 %v1487
        %v2689 = vunpack.c.h.b16 %v1487
        %v2690 = vunpack.c.l.b16 %v1488
        %v2691 = vunpack.c.h.b16 %v1488
        %v2692 = vunpack.c.l.b16 %v1489
        %v2693 = vunpack.c.h.b16 %v1489
        %v2694 = vunpack.c.l.b16 %v1490
        %v2695 = vunpack.c.h.b16 %v1490
        %v2696 = vunpack.c.l.b16 %v1491
        %v2697 = vunpack.c.h.b16 %v1491
        %v2698 = vunpack.c.l.b16 %v1492
        %v2699 = vunpack.c.h.b16 %v1492
        %v2700 = vunpack.c.l.b16 %v1493
        %v2701 = vunpack.c.h.b16 %v1493
        %v2702 = vunpack.c.l.b16 %v1494
        %v2703 = vunpack.c.h.b16 %v1494
        %v2704 = vunpack.c.l.b16 %v1495
        %v2705 = vunpack.c.h.b16 %v1495
        %v2706 = vunpack.c.l.b16 %v1496
        %v2707 = vunpack.c.h.b16 %v1496
        %v2708 = vunpack.c.l.b16 %v1497
        %v2709 = vunpack.c.h.b16 %v1497
        %v2710 = vunpack.c.l.b16 %v1498
        %v2711 = vunpack.c.h.b16 %v1498
        %v2712 = vunpack.c.l.b16 %v1499
        %v2713 = vunpack.c.h.b16 %v1499
        %v2714 = vunpack.c.l.b16 %v1500
        %v2715 = vunpack.c.h.b16 %v1500
        %v2716 = vunpack.c.l.b16 %v1501
        %v2717 = vunpack.c.h.b16 %v1501
        %v2718 = vunpack.c.l.b16 %v1502
        %v2719 = vunpack.c.h.b16 %v1502
        %v2720 = vunpack.c.l.b16 %v1503
        %v2721 = vunpack.c.h.b16 %v1503
        %v2722 = vunpack.c.l.b16 %v1504
        %v2723 = vunpack.c.h.b16 %v1504
        %v2724 = vunpack.c.l.b16 %v1505
        %v2725 = vunpack.c.h.b16 %v1505
        %v2726 = vunpack.c.l.b16 %v1506
        %v2727 = vunpack.c.h.b16 %v1506
        %v2728 = vunpack.c.l.b16 %v1507
        %v2729 = vunpack.c.h.b16 %v1507
        %v2730 = vunpack.c.l.b16 %v1508
        %v2731 = vunpack.c.h.b16 %v1508
        %v2732 = vunpack.c.l.b16 %v1509
        %v2733 = vunpack.c.h.b16 %v1509
        %v2734 = vunpack.c.l.b16 %v1510
        %v2735 = vunpack.c.h.b16 %v1510
        %v2736 = vunpack.c.l.b16 %v1511
        %v2737 = vunpack.c.h.b16 %v1511
        %v2738 = vunpack.c.l.b16 %v1512
        %v2739 = vunpack.c.h.b16 %v1512
        %v2740 = vunpack.c.l.b16 %v1513
        %v2741 = vunpack.c.h.b16 %v1513
        %v2742 = vunpack.c.l.b16 %v1514
        %v2743 = vunpack.c.h.b16 %v1514
        %v2744 = vunpack.c.l.b16 %v1515
        %v2745 = vunpack.c.h.b16 %v1515
        %v2746 = vunpack.c.l.b16 %v1516
        %v2747 = vunpack.c.h.b16 %v1516
        %v2748 = vunpack.c.l.b16 %v1517
        %v2749 = vunpack.c.h.b16 %v1517
        %v2750 = vunpack.c.l.b16 %v1518
        %v2751 = vunpack.c.h.b16 %v1518
        %v2752 = vunpack.c.l.b16 %v1519
        %v2753 = vunpack.c.h.b16 %v1519
        %v2754 = vunpack.c.l.b16 %v1520
        %v2755 = vunpack.c.h.b16 %v1520
        %v2756 = vunpack.c.l.b16 %v1521
        %v2757 = vunpack.c.h.b16 %v1521
        %v2758 = vunpack.c.l.b16 %v1522
        %v2759 = vunpack.c.h.b16 %v1522
        %v2760 = vunpack.c.l.b16 %v1523
        %v2761 = vunpack.c.h.b16 %v1523
        %v2762 = vunpack.c.l.b16 %v1524
        %v2763 = vunpack.c.h.b16 %v1524
        %v2764 = vunpack.c.l.b16 %v1525
        %v2765 = vunpack.c.h.b16 %v1525
        %v2766 = vunpack.c.l.b16 %v1526
        %v2767 = vunpack.c.h.b16 %v1526
        %v2768 = vunpack.c.l.b16 %v1527
        %v2769 = vunpack.c.h.b16 %v1527
        %v2770 = vunpack.c.l.b16 %v1528
        %v2771 = vunpack.c.h.b16 %v1528
        %v2772 = vunpack.c.l.b16 %v1529
        %v2773 = vunpack.c.h.b16 %v1529
        %v2774 = vunpack.c.l.b16 %v1530
        %v2775 = vunpack.c.h.b16 %v1530
        %v2776 = vunpack.c.l.b16 %v1531
        %v2777 = vunpack.c.h.b16 %v1531
        %v2778 = vunpack.c.l.b16 %v1532
        %v2779 = vunpack.c.h.b16 %v1532
        %v2780 = vunpack.c.l.b16 %v1533
        %v2781 = vunpack.c.h.b16 %v1533
        %v2782 = vunpack.c.l.b16 %v1534
        %v2783 = vunpack.c.h.b16 %v1534
        %v2784 = vunpack.c.l.b16 %v1535
        %v2785 = vunpack.c.h.b16 %v1535
        %v2786 = vunpack.c.l.b16 %v1536
        %v2787 = vunpack.c.h.b16 %v1536
        %v2788 = vunpack.c.l.b16 %v1537
        %v2789 = vunpack.c.h.b16 %v1537
        %v2790 = vunpack.c.l.b16 %v1538
        %v2791 = vunpack.c.h.b16 %v1538
        %v2792 = vunpack.c.l.b16 %v1539
        %v2793 = vunpack.c.h.b16 %v1539
        %v2794 = vunpack.c.l.b16 %v1540
        %v2795 = vunpack.c.h.b16 %v1540
        %v2796 = vunpack.c.l.b16 %v1541
        %v2797 = vunpack.c.h.b16 %v1541
        %v2798 = vunpack.c.l.b16 %v1542
        %v2799 = vunpack.c.h.b16 %v1542
        %v2800 = vunpack.c.l.b16 %v1543
        %v2801 = vunpack.c.h.b16 %v1543
        %v2802 = vunpack.c.l.b16 %v1544
        %v2803 = vunpack.c.h.b16 %v1544
        %v2804 = vunpack.c.l.b16 %v1545
        %v2805 = vunpack.c.h.b16 %v1545
        %v2806 = vunpack.c.l.b16 %v1546
        %v2807 = vunpack.c.h.b16 %v1546
        %v2808 = vunpack.c.l.b16 %v1547
        %v2809 = vunpack.c.h.b16 %v1547
        %v2810 = vunpack.c.l.b16 %v1548
        %v2811 = vunpack.c.h.b16 %v1548
        %v2812 = vunpack.c.l.b16 %v1549
        %v2813 = vunpack.c.h.b16 %v1549
        %v2814 = vunpack.c.l.b16 %v1550
        %v2815 = vunpack.c.h.b16 %v1550
        %v2816 = vunpack.c.l.b16 %v1551
        %v2817 = vunpack.c.h.b16 %v1551
        %v2818 = vunpack.c.l.b16 %v1552
        %v2819 = vunpack.c.h.b16 %v1552
        %v2820 = vunpack.c.l.b16 %v1553
        %v2821 = vunpack.c.h.b16 %v1553
        %v2822 = vunpack.c.l.b16 %v1554
        %v2823 = vunpack.c.h.b16 %v1554
        %v2824 = vunpack.c.l.b16 %v1555
        %v2825 = vunpack.c.h.b16 %v1555
        %v2826 = vunpack.c.l.b16 %v1556
        %v2827 = vunpack.c.h.b16 %v1556
        %v2828 = vunpack.c.l.b16 %v1557
        %v2829 = vunpack.c.h.b16 %v1557
        %v2830 = vunpack.c.l.b16 %v1558
        %v2831 = vunpack.c.h.b16 %v1558
        %v2832 = vunpack.c.l.b16 %v1559
        %v2833 = vunpack.c.h.b16 %v1559
        %v2834 = vunpack.c.l.b16 %v1560
        %v2835 = vunpack.c.h.b16 %v1560
        %v2836 = vunpack.c.l.b16 %v1561
        %v2837 = vunpack.c.h.b16 %v1561
        %v2838 = vunpack.c.l.b16 %v1562
        %v2839 = vunpack.c.h.b16 %v1562
        %v2840 = vunpack.c.l.b16 %v1563
        %v2841 = vunpack.c.h.b16 %v1563
        %v2842 = vunpack.c.l.b16 %v1564
        %v2843 = vunpack.c.h.b16 %v1564
        %v2844 = vunpack.c.l.b16 %v1565
        %v2845 = vunpack.c.h.b16 %v1565
        %v2846 = vunpack.c.l.b16 %v1566
        %v2847 = vunpack.c.h.b16 %v1566
        %v2848 = vunpack.c.l.b16 %v1567
        %v2849 = vunpack.c.h.b16 %v1567
        %v2850 = vunpack.c.l.b16 %v1568
        %v2851 = vunpack.c.h.b16 %v1568
        %v2852 = vunpack.c.l.b16 %v1569
        %v2853 = vunpack.c.h.b16 %v1569
        %v2854 = vunpack.c.l.b16 %v1570
        %v2855 = vunpack.c.h.b16 %v1570
        %v2856 = vunpack.c.l.b16 %v1571
        %v2857 = vunpack.c.h.b16 %v1571
        %v2858 = vunpack.c.l.b16 %v1572
        %v2859 = vunpack.c.h.b16 %v1572
        %v2860 = vunpack.c.l.b16 %v1573
        %v2861 = vunpack.c.h.b16 %v1573
        %v2862 = vunpack.c.l.b16 %v1574
        %v2863 = vunpack.c.h.b16 %v1574
        %v2864 = vunpack.c.l.b16 %v1575
        %v2865 = vunpack.c.h.b16 %v1575
        %v2866 = vunpack.c.l.b16 %v1576
        %v2867 = vunpack.c.h.b16 %v1576
        %v2868 = vunpack.c.l.b16 %v1577
        %v2869 = vunpack.c.h.b16 %v1577
        %v2870 = vunpack.c.l.b16 %v1578
        %v2871 = vunpack.c.h.b16 %v1578
        %v2872 = vunpack.c.l.b16 %v1579
        %v2873 = vunpack.c.h.b16 %v1579
        %v2874 = vunpack.c.l.b16 %v1580
        %v2875 = vunpack.c.h.b16 %v1580
        %v2876 = vunpack.c.l.b16 %v1581
        %v2877 = vunpack.c.h.b16 %v1581
        %v2878 = vunpack.c.l.b16 %v1582
        %v2879 = vunpack.c.h.b16 %v1582
        %v2880 = vunpack.c.l.b16 %v1583
        %v2881 = vunpack.c.h.b16 %v1583
        %v2882 = vunpack.c.l.b16 %v1584
        %v2883 = vunpack.c.h.b16 %v1584
        %v2884 = vunpack.c.l.b16 %v1585
        %v2885 = vunpack.c.h.b16 %v1585
        %v2886 = vunpack.c.l.b16 %v1586
        %v2887 = vunpack.c.h.b16 %v1586
        %v2888 = vunpack.c.l.b16 %v1587
        %v2889 = vunpack.c.h.b16 %v1587
        %v2890 = vunpack.c.l.b16 %v1588
        %v2891 = vunpack.c.h.b16 %v1588
        %v2892 = vunpack.c.l.b16 %v1589
        %v2893 = vunpack.c.h.b16 %v1589
        %v2894 = vunpack.c.l.b16 %v1590
        %v2895 = vunpack.c.h.b16 %v1590
        %v2896 = vunpack.c.l.b16 %v1591
        %v2897 = vunpack.c.h.b16 %v1591
        %v2898 = vunpack.c.l.b16 %v1592
        %v2899 = vunpack.c.h.b16 %v1592
        %v2900 = vunpack.c.l.b16 %v1593
        %v2901 = vunpack.c.h.b16 %v1593
        %v2902 = vunpack.c.l.b16 %v1594
        %v2903 = vunpack.c.h.b16 %v1594
        %v2904 = vunpack.c.l.b16 %v1595
        %v2905 = vunpack.c.h.b16 %v1595
        %v2906 = vunpack.c.l.b16 %v1596
        %v2907 = vunpack.c.h.b16 %v1596
        %v2908 = vunpack.c.l.b16 %v1597
        %v2909 = vunpack.c.h.b16 %v1597
        %v2910 = vunpack.c.l.b16 %v1598
        %v2911 = vunpack.c.h.b16 %v1598
        %v2912 = vunpack.c.l.b16 %v1599
        %v2913 = vunpack.c.h.b16 %v1599
        %v2914 = vunpack.c.l.b16 %v1600
        %v2915 = vunpack.c.h.b16 %v1600
        %v2916 = vunpack.c.l.b16 %v1601
        %v2917 = vunpack.c.h.b16 %v1601
        %v2918 = vunpack.c.l.b16 %v1602
        %v2919 = vunpack.c.h.b16 %v1602
        %v2920 = vunpack.c.l.b16 %v1603
        %v2921 = vunpack.c.h.b16 %v1603
        %v2922 = vunpack.c.l.b16 %v1604
        %v2923 = vunpack.c.h.b16 %v1604
        %v2924 = vunpack.c.l.b16 %v1605
        %v2925 = vunpack.c.h.b16 %v1605
        %v2926 = vunpack.c.l.b16 %v1606
        %v2927 = vunpack.c.h.b16 %v1606
        %v2928 = vunpack.c.l.b16 %v1607
        %v2929 = vunpack.c.h.b16 %v1607
        %v2930 = vunpack.c.l.b16 %v1608
        %v2931 = vunpack.c.h.b16 %v1608
        %v2932 = vunpack.c.l.b16 %v1609
        %v2933 = vunpack.c.h.b16 %v1609
        %v2934 = vunpack.c.l.b16 %v1610
        %v2935 = vunpack.c.h.b16 %v1610
        %v2936 = vunpack.c.l.b16 %v1611
        %v2937 = vunpack.c.h.b16 %v1611
        %v2938 = vunpack.c.l.b16 %v1612
        %v2939 = vunpack.c.h.b16 %v1612
        %v2940 = vunpack.c.l.b16 %v1613
        %v2941 = vunpack.c.h.b16 %v1613
        %v2942 = vunpack.c.l.b16 %v1614
        %v2943 = vunpack.c.h.b16 %v1614
        %v2944 = vunpack.c.l.b16 %v1615
        %v2945 = vunpack.c.h.b16 %v1615
        %v2946 = vunpack.c.l.b16 %v1616
        %v2947 = vunpack.c.h.b16 %v1616
        %v2948 = vunpack.c.l.b16 %v1617
        %v2949 = vunpack.c.h.b16 %v1617
        %v2950 = vunpack.c.l.b16 %v1618
        %v2951 = vunpack.c.h.b16 %v1618
        %v2952 = vunpack.c.l.b16 %v1619
        %v2953 = vunpack.c.h.b16 %v1619
        %v2954 = vunpack.c.l.b16 %v1620
        %v2955 = vunpack.c.h.b16 %v1620
        %v2956 = vunpack.c.l.b16 %v1621
        %v2957 = vunpack.c.h.b16 %v1621
        %v2958 = vunpack.c.l.b16 %v1622
        %v2959 = vunpack.c.h.b16 %v1622
        %v2960 = vunpack.c.l.b16 %v1623
        %v2961 = vunpack.c.h.b16 %v1623
        %v2962 = vunpack.c.l.b16 %v1624
        %v2963 = vunpack.c.h.b16 %v1624
        %v2964 = vunpack.c.l.b16 %v1625
        %v2965 = vunpack.c.h.b16 %v1625
        %v2966 = vunpack.c.l.b16 %v1626
        %v2967 = vunpack.c.h.b16 %v1626
        %v2968 = vunpack.c.l.b16 %v1627
        %v2969 = vunpack.c.h.b16 %v1627
        %v2970 = vunpack.c.l.b16 %v1628
        %v2971 = vunpack.c.h.b16 %v1628
        %v2972 = vunpack.c.l.b16 %v1629
        %v2973 = vunpack.c.h.b16 %v1629
        %v2974 = vunpack.c.l.b16 %v1630
        %v2975 = vunpack.c.h.b16 %v1630
        %v2976 = vunpack.c.l.b16 %v1631
        %v2977 = vunpack.c.h.b16 %v1631
        %v2978 = vunpack.c.l.b16 %v1632
        %v2979 = vunpack.c.h.b16 %v1632
        %v2980 = vunpack.c.l.b16 %v1633
        %v2981 = vunpack.c.h.b16 %v1633
        %v2982 = vunpack.c.l.b16 %v1634
        %v2983 = vunpack.c.h.b16 %v1634
        %v2984 = vunpack.c.l.b16 %v1635
        %v2985 = vunpack.c.h.b16 %v1635
        %v2986 = vunpack.c.l.b16 %v1636
        %v2987 = vunpack.c.h.b16 %v1636
        %v2988 = vunpack.c.l.b16 %v1637
        %v2989 = vunpack.c.h.b16 %v1637
        %v2990 = vunpack.c.l.b16 %v1638
        %v2991 = vunpack.c.h.b16 %v1638
        %v2992 = vunpack.c.l.b16 %v1639
        %v2993 = vunpack.c.h.b16 %v1639
        %v2994 = vunpack.c.l.b16 %v1640
        %v2995 = vunpack.c.h.b16 %v1640
        %v2996 = vunpack.c.l.b16 %v1641
        %v2997 = vunpack.c.h.b16 %v1641
        %v2998 = vunpack.c.l.b16 %v1642
        %v2999 = vunpack.c.h.b16 %v1642
        %v3000 = vunpack.c.l.b16 %v1643
        %v3001 = vunpack.c.h.b16 %v1643
        %v3002 = vunpack.c.l.b16 %v1644
        %v3003 = vunpack.c.h.b16 %v1644
        %v3004 = vunpack.c.l.b16 %v1645
        %v3005 = vunpack.c.h.b16 %v1645
        %v3006 = vunpack.c.l.b16 %v1646
        %v3007 = vunpack.c.h.b16 %v1646
        %v3008 = vunpack.c.l.b16 %v1647
        %v3009 = vunpack.c.h.b16 %v1647
        %v3010 = vunpack.c.l.b16 %v1648
        %v3011 = vunpack.c.h.b16 %v1648
        %v3012 = vunpack.c.l.b16 %v1649
        %v3013 = vunpack.c.h.b16 %v1649
        %v3014 = vunpack.c.l.b16 %v1650
        %v3015 = vunpack.c.h.b16 %v1650
        %v3016 = vunpack.c.l.b16 %v1651
        %v3017 = vunpack.c.h.b16 %v1651
        %v3018 = vunpack.c.l.b16 %v1652
        %v3019 = vunpack.c.h.b16 %v1652
        %v3020 = vunpack.c.l.b16 %v1653
        %v3021 = vunpack.c.h.b16 %v1653
        %v3022 = vunpack.c.l.b16 %v1654
        %v3023 = vunpack.c.h.b16 %v1654
        %v3024 = vunpack.c.l.b16 %v1655
        %v3025 = vunpack.c.h.b16 %v1655
        %v3026 = vunpack.c.l.b16 %v1656
        %v3027 = vunpack.c.h.b16 %v1656
        %v3028 = vunpack.c.l.b16 %v1657
        %v3029 = vunpack.c.h.b16 %v1657
        %v3030 = vunpack.c.l.b16 %v1658
        %v3031 = vunpack.c.h.b16 %v1658
        %v3032 = vunpack.c.l.b16 %v1659
        %v3033 = vunpack.c.h.b16 %v1659
        %v3034 = vunpack.c.l.b16 %v1660
        %v3035 = vunpack.c.h.b16 %v1660
        %v3036 = vunpack.c.l.b16 %v1661
        %v3037 = vunpack.c.h.b16 %v1661
        %v3038 = vunpack.c.l.b16 %v1662
        %v3039 = vunpack.c.h.b16 %v1662
        %v3040 = vunpack.c.l.b16 %v1663
        %v3041 = vunpack.c.h.b16 %v1663
        %v3042 = vunpack.c.l.b16 %v1664
        %v3043 = vunpack.c.h.b16 %v1664
        %v3044 = vunpack.c.l.b16 %v1665
        %v3045 = vunpack.c.h.b16 %v1665
        %v3046 = vunpack.c.l.b16 %v1666
        %v3047 = vunpack.c.h.b16 %v1666
        %v3048 = vunpack.c.l.b16 %v1667
        %v3049 = vunpack.c.h.b16 %v1667
        %v3050 = vunpack.c.l.b16 %v1668
        %v3051 = vunpack.c.h.b16 %v1668
        %v3052 = vunpack.c.l.b16 %v1669
        %v3053 = vunpack.c.h.b16 %v1669
        %v3054 = vunpack.c.l.b16 %v1670
        %v3055 = vunpack.c.h.b16 %v1670
        %v3056 = vunpack.c.l.b16 %v1671
        %v3057 = vunpack.c.h.b16 %v1671
        %v3058 = vunpack.c.l.b16 %v1672
        %v3059 = vunpack.c.h.b16 %v1672
        %v3060 = vunpack.c.l.b16 %v1673
        %v3061 = vunpack.c.h.b16 %v1673
        %v3062 = vunpack.c.l.b16 %v1674
        %v3063 = vunpack.c.h.b16 %v1674
        %v3064 = vunpack.c.l.b16 %v1675
        %v3065 = vunpack.c.h.b16 %v1675
        %v3066 = vunpack.c.l.b16 %v1676
        %v3067 = vunpack.c.h.b16 %v1676
        %v3068 = vunpack.c.l.b16 %v1677
        %v3069 = vunpack.c.h.b16 %v1677
        %v3070 = vunpack.c.l.b16 %v1678
        %v3071 = vunpack.c.h.b16 %v1678
        %v3072 = vunpack.c.l.b16 %v1679
        %v3073 = vunpack.c.h.b16 %v1679
        %v3074 = vunpack.c.l.b16 %v1680
        %v3075 = vunpack.c.h.b16 %v1680
        %v3076 = vunpack.c.l.b16 %v1681
        %v3077 = vunpack.c.h.b16 %v1681
        %v3078 = vunpack.c.l.b16 %v1682
        %v3079 = vunpack.c.h.b16 %v1682
        %v3080 = vunpack.c.l.b16 %v1683
        %v3081 = vunpack.c.h.b16 %v1683
        %v3082 = vunpack.c.l.b16 %v1684
        %v3083 = vunpack.c.h.b16 %v1684
        %v3084 = vunpack.c.l.b16 %v1685
        %v3085 = vunpack.c.h.b16 %v1685
        %v3086 = vunpack.c.l.b16 %v1686
        %v3087 = vunpack.c.h.b16 %v1686
        %v3088 = vunpack.c.l.b16 %v1687
        %v3089 = vunpack.c.h.b16 %v1687
        %v3090 = vunpack.c.l.b16 %v1688
        %v3091 = vunpack.c.h.b16 %v1688
        %v3092 = vunpack.c.l.b16 %v1689
        %v3093 = vunpack.c.h.b16 %v1689
        %v3094 = vunpack.c.l.b16 %v1690
        %v3095 = vunpack.c.h.b16 %v1690
        %v3096 = vunpack.c.l.b16 %v1691
        %v3097 = vunpack.c.h.b16 %v1691
        %v3098 = vunpack.c.l.b16 %v1692
        %v3099 = vunpack.c.h.b16 %v1692
        %v3100 = vunpack.c.l.b16 %v1693
        %v3101 = vunpack.c.h.b16 %v1693
        %v3102 = vunpack.c.l.b16 %v1694
        %v3103 = vunpack.c.h.b16 %v1694
        %v3104 = vunpack.c.l.b16 %v1695
        %v3105 = vunpack.c.h.b16 %v1695
        %v3106 = vunpack.c.l.b16 %v1696
        %v3107 = vunpack.c.h.b16 %v1696
        %v3108 = vunpack.c.l.b16 %v1697
        %v3109 = vunpack.c.h.b16 %v1697
        %v3110 = vunpack.c.l.b16 %v1698
        %v3111 = vunpack.c.h.b16 %v1698
        %v3112 = vunpack.c.l.b16 %v1699
        %v3113 = vunpack.c.h.b16 %v1699
        %v3114 = vunpack.c.l.b16 %v1700
        %v3115 = vunpack.c.h.b16 %v1700
        %v3116 = vunpack.c.l.b16 %v1701
        %v3117 = vunpack.c.h.b16 %v1701
        %v3118 = vunpack.c.l.b16 %v1702
        %v3119 = vunpack.c.h.b16 %v1702
        %v3120 = vunpack.c.l.b16 %v1703
        %v3121 = vunpack.c.h.b16 %v1703
        %v3122 = vunpack.c.l.b16 %v1704
        %v3123 = vunpack.c.h.b16 %v1704
        %v3124 = vunpack.c.l.b16 %v1705
        %v3125 = vunpack.c.h.b16 %v1705
        %v3126 = vunpack.c.l.b16 %v1706
        %v3127 = vunpack.c.h.b16 %v1706
        %v3128 = vunpack.c.l.b16 %v1707
        %v3129 = vunpack.c.h.b16 %v1707
        %v3130 = vunpack.c.l.b16 %v1708
        %v3131 = vunpack.c.h.b16 %v1708
        %v3132 = vunpack.c.l.b16 %v1709
        %v3133 = vunpack.c.h.b16 %v1709
        %v3134 = vunpack.c.l.b16 %v1710
        %v3135 = vunpack.c.h.b16 %v1710
        %v3136 = vunpack.c.l.b16 %v1711
        %v3137 = vunpack.c.h.b16 %v1711
        %v3138 = vunpack.c.l.b16 %v1712
        %v3139 = vunpack.c.h.b16 %v1712
        %v3140 = vunpack.c.l.b16 %v1713
        %v3141 = vunpack.c.h.b16 %v1713
        %v3142 = vunpack.c.l.b16 %v1714
        %v3143 = vunpack.c.h.b16 %v1714
        %v3144 = vunpack.c.l.b16 %v1715
        %v3145 = vunpack.c.h.b16 %v1715
        %v3146 = vunpack.c.l.b16 %v1716
        %v3147 = vunpack.c.h.b16 %v1716
        %v3148 = vunpack.c.l.b16 %v1717
        %v3149 = vunpack.c.h.b16 %v1717
        %v3150 = vunpack.c.l.b16 %v1718
        %v3151 = vunpack.c.h.b16 %v1718
        %v3152 = vunpack.c.l.b16 %v1719
        %v3153 = vunpack.c.h.b16 %v1719
        %v3154 = vunpack.c.l.b16 %v1720
        %v3155 = vunpack.c.h.b16 %v1720
        %v3156 = vunpack.c.l.b16 %v1721
        %v3157 = vunpack.c.h.b16 %v1721
        %v3158 = vunpack.c.l.b16 %v1722
        %v3159 = vunpack.c.h.b16 %v1722
        %v3160 = vunpack.c.l.b16 %v1723
        %v3161 = vunpack.c.h.b16 %v1723
        %v3162 = vunpack.c.l.b16 %v1724
        %v3163 = vunpack.c.h.b16 %v1724
        %v3164 = vunpack.c.l.b16 %v1725
        %v3165 = vunpack.c.h.b16 %v1725
        %v3166 = vunpack.c.l.b16 %v1726
        %v3167 = vunpack.c.h.b16 %v1726
        %v3168 = vunpack.c.l.b16 %v1727
        %v3169 = vunpack.c.h.b16 %v1727
        %v3170 = vunpack.c.l.b16 %v1728
        %v3171 = vunpack.c.h.b16 %v1728
        %v3172 = vunpack.c.l.b16 %v1729
        %v3173 = vunpack.c.h.b16 %v1729
        %v3174 = vunpack.c.l.b16 %v1730
        %v3175 = vunpack.c.h.b16 %v1730
        %v3176 = vunpack.c.l.b16 %v1731
        %v3177 = vunpack.c.h.b16 %v1731
        %v3178 = vunpack.c.l.b16 %v1732
        %v3179 = vunpack.c.h.b16 %v1732
        %v3180 = vunpack.c.l.b16 %v1733
        %v3181 = vunpack.c.h.b16 %v1733
        %v3182 = vunpack.c.l.b16 %v1734
        %v3183 = vunpack.c.h.b16 %v1734
        %v3184 = vunpack.c.l.b16 %v1735
        %v3185 = vunpack.c.h.b16 %v1735
        %v3186 = vunpack.c.l.b16 %v1736
        %v3187 = vunpack.c.h.b16 %v1736
        %v3188 = vunpack.c.l.b16 %v1737
        %v3189 = vunpack.c.h.b16 %v1737
        %v3190 = vunpack.c.l.b16 %v1738
        %v3191 = vunpack.c.h.b16 %v1738
        %v3192 = vunpack.c.l.b16 %v1739
        %v3193 = vunpack.c.h.b16 %v1739
        %v3194 = vunpack.c.l.b16 %v1740
        %v3195 = vunpack.c.h.b16 %v1740
        %v3196 = vunpack.c.l.b16 %v1741
        %v3197 = vunpack.c.h.b16 %v1741
        %v3198 = vunpack.c.l.b16 %v1742
        %v3199 = vunpack.c.h.b16 %v1742
        %v3200 = vunpack.c.l.b16 %v1743
        %v3201 = vunpack.c.h.b16 %v1743
        %v3202 = vunpack.c.l.b16 %v1744
        %v3203 = vunpack.c.h.b16 %v1744
        %v3204 = vunpack.c.l.b16 %v1745
        %v3205 = vunpack.c.h.b16 %v1745
        %v3206 = vunpack.c.l.b16 %v1746
        %v3207 = vunpack.c.h.b16 %v1746
        %v3208 = vunpack.c.l.b16 %v1747
        %v3209 = vunpack.c.h.b16 %v1747
        %v3210 = vunpack.c.l.b16 %v1748
        %v3211 = vunpack.c.h.b16 %v1748
        %v3212 = vunpack.c.l.b16 %v1749
        %v3213 = vunpack.c.h.b16 %v1749
        %v3214 = vunpack.c.l.b16 %v1750
        %v3215 = vunpack.c.h.b16 %v1750
        %v3216 = vunpack.c.l.b16 %v1751
        %v3217 = vunpack.c.h.b16 %v1751
        %v3218 = vunpack.c.l.b16 %v1752
        %v3219 = vunpack.c.h.b16 %v1752
        %v3220 = vunpack.c.l.b16 %v1753
        %v3221 = vunpack.c.h.b16 %v1753
        %v3222 = vunpack.c.l.b16 %v1754
        %v3223 = vunpack.c.h.b16 %v1754
        %v3224 = vunpack.c.l.b16 %v1755
        %v3225 = vunpack.c.h.b16 %v1755
        %v3226 = vunpack.c.l.b16 %v1756
        %v3227 = vunpack.c.h.b16 %v1756
        %v3228 = vunpack.c.l.b16 %v1757
        %v3229 = vunpack.c.h.b16 %v1757
        %v3230 = vunpack.c.l.b16 %v1758
        %v3231 = vunpack.c.h.b16 %v1758
        %v3232 = vunpack.c.l.b16 %v1759
        %v3233 = vunpack.c.h.b16 %v1759
        %v3234 = vunpack.c.l.b16 %v1760
        %v3235 = vunpack.c.h.b16 %v1760
        %v3236 = vunpack.c.l.b16 %v1761
        %v3237 = vunpack.c.h.b16 %v1761
        %v3238 = vunpack.c.l.b16 %v1762
        %v3239 = vunpack.c.h.b16 %v1762
        %v3240 = vunpack.c.l.b16 %v1763
        %v3241 = vunpack.c.h.b16 %v1763
        %v3242 = vunpack.c.l.b16 %v1764
        %v3243 = vunpack.c.h.b16 %v1764
        %v3244 = vunpack.c.l.b16 %v1765
        %v3245 = vunpack.c.h.b16 %v1765
        %v3246 = vunpack.c.l.b16 %v1766
        %v3247 = vunpack.c.h.b16 %v1766
        %v3248 = vunpack.c.l.b16 %v1767
        %v3249 = vunpack.c.h.b16 %v1767
        %v3250 = vunpack.c.l.b16 %v1768
        %v3251 = vunpack.c.h.b16 %v1768
        %v3252 = vunpack.c.l.b16 %v1769
        %v3253 = vunpack.c.h.b16 %v1769
        %v3254 = vunpack.c.l.b16 %v1770
        %v3255 = vunpack.c.h.b16 %v1770
        %v3256 = vunpack.c.l.b16 %v1771
        %v3257 = vunpack.c.h.b16 %v1771
        %v3258 = vunpack.c.l.b16 %v1772
        %v3259 = vunpack.c.h.b16 %v1772
        %v3260 = vunpack.c.l.b16 %v1773
        %v3261 = vunpack.c.h.b16 %v1773
        %v3262 = vunpack.c.l.b16 %v1774
        %v3263 = vunpack.c.h.b16 %v1774
        %v3264 = vunpack.c.l.b16 %v1775
        %v3265 = vunpack.c.h.b16 %v1775
        %v3266 = vunpack.c.l.b16 %v1776
        %v3267 = vunpack.c.h.b16 %v1776
        %v3268 = vunpack.c.l.b16 %v1777
        %v3269 = vunpack.c.h.b16 %v1777
        %v3270 = vunpack.c.l.b16 %v1778
        %v3271 = vunpack.c.h.b16 %v1778
        %v3272 = vunpack.c.l.b16 %v1779
        %v3273 = vunpack.c.h.b16 %v1779
        %v3274 = vunpack.c.l.b16 %v1780
        %v3275 = vunpack.c.h.b16 %v1780
        %v3276 = vunpack.c.l.b16 %v1781
        %v3277 = vunpack.c.h.b16 %v1781
        %v3278 = vunpack.c.l.b16 %v1782
        %v3279 = vunpack.c.h.b16 %v1782
        %v3280 = vunpack.c.l.b16 %v1783
        %v3281 = vunpack.c.h.b16 %v1783
        %v3282 = vunpack.c.l.b16 %v1784
        %v3283 = vunpack.c.h.b16 %v1784
        %v3284 = vunpack.c.l.b16 %v1785
        %v3285 = vunpack.c.h.b16 %v1785
        %v3286 = vunpack.c.l.b16 %v1786
        %v3287 = vunpack.c.h.b16 %v1786
        %v3288 = vunpack.c.l.b16 %v1787
        %v3289 = vunpack.c.h.b16 %v1787
        %v3290 = vunpack.c.l.b16 %v1788
        %v3291 = vunpack.c.h.b16 %v1788
        %v3292 = vunpack.c.l.b16 %v1789
        %v3293 = vunpack.c.h.b16 %v1789
        %v3294 = vunpack.c.l.b16 %v1790
        %v3295 = vunpack.c.h.b16 %v1790
        %v3296 = vunpack.c.l.b16 %v1791
        %v3297 = vunpack.c.h.b16 %v1791
        %v3298 = vunpack.c.l.b16 %v1792
        %v3299 = vunpack.c.h.b16 %v1792
        %v3300 = vunpack.c.l.b16 %v1793
        %v3301 = vunpack.c.h.b16 %v1793
        %v3302 = vunpack.c.l.b16 %v1794
        %v3303 = vunpack.c.h.b16 %v1794
        %v3304 = vunpack.c.l.b16 %v1795
        %v3305 = vunpack.c.h.b16 %v1795
        %v3306 = vunpack.c.l.b16 %v1796
        %v3307 = vunpack.c.h.b16 %v1796
        %v3308 = vunpack.c.l.b16 %v1797
        %v3309 = vunpack.c.h.b16 %v1797
        %v3310 = vunpack.c.l.b16 %v1798
        %v3311 = vunpack.c.h.b16 %v1798
        %v3312 = vunpack.c.l.b16 %v1799
        %v3313 = vunpack.c.h.b16 %v1799
        %v3314 = vunpack.c.l.b16 %v1800
        %v3315 = vunpack.c.h.b16 %v1800
        %v3316 = vunpack.c.l.b16 %v1801
        %v3317 = vunpack.c.h.b16 %v1801
        %v3318 = vunpack.c.l.b16 %v1802
        %v3319 = vunpack.c.h.b16 %v1802
        %v3320 = vunpack.c.l.b16 %v1803
        %v3321 = vunpack.c.h.b16 %v1803
        %v3322 = vunpack.c.l.b16 %v1804
        %v3323 = vunpack.c.h.b16 %v1804
        %v3324 = vunpack.c.l.b16 %v1805
        %v3325 = vunpack.c.h.b16 %v1805
        %v3326 = vunpack.c.l.b16 %v1806
        %v3327 = vunpack.c.h.b16 %v1806
        %v3328 = vunpack.c.l.b16 %v1807
        %v3329 = vunpack.c.h.b16 %v1807
        %v3330 = vunpack.c.l.b16 %v1808
        %v3331 = vunpack.c.h.b16 %v1808
        %v3332 = vunpack.c.l.b16 %v1809
        %v3333 = vunpack.c.h.b16 %v1809
        %v3334 = vunpack.c.l.b16 %v1810
        %v3335 = vunpack.c.h.b16 %v1810
        %v3336 = vunpack.c.l.b16 %v1811
        %v3337 = vunpack.c.h.b16 %v1811
        %v3338 = vunpack.c.l.b16 %v1812
        %v3339 = vunpack.c.h.b16 %v1812
        %v3340 = vunpack.c.l.b16 %v1813
        %v3341 = vunpack.c.h.b16 %v1813
        %v3342 = vunpack.c.l.b16 %v1814
        %v3343 = vunpack.c.h.b16 %v1814
        %v3344 = vunpack.c.l.b16 %v1815
        %v3345 = vunpack.c.h.b16 %v1815
        %v3346 = vunpack.c.l.b16 %v1816
        %v3347 = vunpack.c.h.b16 %v1816
        %v3348 = vunpack.c.l.b16 %v1817
        %v3349 = vunpack.c.h.b16 %v1817
        %v3350 = vunpack.c.l.b16 %v1818
        %v3351 = vunpack.c.h.b16 %v1818
        %v3352 = vunpack.c.l.b16 %v1819
        %v3353 = vunpack.c.h.b16 %v1819
        %v3354 = vunpack.c.l.b16 %v1820
        %v3355 = vunpack.c.h.b16 %v1820
        %v3356 = vunpack.c.l.b16 %v1821
        %v3357 = vunpack.c.h.b16 %v1821
        %v3358 = vunpack.c.l.b16 %v1822
        %v3359 = vunpack.c.h.b16 %v1822
        %v3360 = vunpack.c.l.b16 %v1823
        %v3361 = vunpack.c.h.b16 %v1823
        %v3362 = vunpack.c.l.b16 %v1824
        %v3363 = vunpack.c.h.b16 %v1824
        %v3364 = vunpack.c.l.b16 %v1825
        %v3365 = vunpack.c.h.b16 %v1825
        %v3366 = vunpack.c.l.b16 %v1826
        %v3367 = vunpack.c.h.b16 %v1826
        %v3368 = vunpack.c.l.b16 %v1827
        %v3369 = vunpack.c.h.b16 %v1827
        %v3370 = vunpack.c.l.b16 %v1828
        %v3371 = vunpack.c.h.b16 %v1828
        %v3372 = vunpack.c.l.b16 %v1829
        %v3373 = vunpack.c.h.b16 %v1829
        %v3374 = vunpack.c.l.b16 %v1830
        %v3375 = vunpack.c.h.b16 %v1830
        %v3376 = vunpack.c.l.b16 %v1831
        %v3377 = vunpack.c.h.b16 %v1831
        %v3378 = vunpack.c.l.b16 %v1832
        %v3379 = vunpack.c.h.b16 %v1832
        %v3380 = vunpack.c.l.b16 %v1833
        %v3381 = vunpack.c.h.b16 %v1833
        %v3382 = vunpack.c.l.b16 %v1834
        %v3383 = vunpack.c.h.b16 %v1834
        %v3384 = vunpack.c.l.b16 %v1835
        %v3385 = vunpack.c.h.b16 %v1835
        %v3386 = vunpack.c.l.b16 %v1836
        %v3387 = vunpack.c.h.b16 %v1836
        %v3388 = vunpack.c.l.b16 %v1837
        %v3389 = vunpack.c.h.b16 %v1837
        %v3390 = vunpack.c.l.b16 %v1838
        %v3391 = vunpack.c.h.b16 %v1838
        %v3392 = vunpack.c.l.b16 %v1839
        %v3393 = vunpack.c.h.b16 %v1839
        %v3394 = vunpack.c.l.b16 %v1840
        %v3395 = vunpack.c.h.b16 %v1840
        %v3396 = vunpack.c.l.b16 %v1841
        %v3397 = vunpack.c.h.b16 %v1841
        %v3398 = vunpack.c.l.b16 %v1842
        %v3399 = vunpack.c.h.b16 %v1842
        %v3400 = vunpack.c.l.b16 %v1843
        %v3401 = vunpack.c.h.b16 %v1843
        %v3402 = vunpack.c.l.b16 %v1844
        %v3403 = vunpack.c.h.b16 %v1844
        %v3404 = vunpack.c.l.b16 %v1845
        %v3405 = vunpack.c.h.b16 %v1845
        %v3406 = vunpack.c.l.b16 %v1846
        %v3407 = vunpack.c.h.b16 %v1846
        %v3408 = vunpack.c.l.b16 %v1847
        %v3409 = vunpack.c.h.b16 %v1847
        %v3410 = vunpack.c.l.b16 %v1848
        %v3411 = vunpack.c.h.b16 %v1848
        %v3412 = vunpack.c.l.b16 %v1849
        %v3413 = vunpack.c.h.b16 %v1849
        %v3414 = vunpack.c.l.b16 %v1850
        %v3415 = vunpack.c.h.b16 %v1850
        %v3416 = vunpack.c.l.b16 %v1851
        %v3417 = vunpack.c.h.b16 %v1851
        %v3418 = vunpack.c.l.b16 %v1852
        %v3419 = vunpack.c.h.b16 %v1852
        %v3420 = vunpack.c.l.b16 %v1853
        %v3421 = vunpack.c.h.b16 %v1853
        %v3422 = vunpack.c.l.b16 %v1854
        %v3423 = vunpack.c.h.b16 %v1854
        %v3424 = vunpack.c.l.b16 %v1855
        %v3425 = vunpack.c.h.b16 %v1855
        %v3426 = vunpack.c.l.b16 %v1856
        %v3427 = vunpack.c.h.b16 %v1856
        %v3428 = vunpack.c.l.b16 %v1857
        %v3429 = vunpack.c.h.b16 %v1857
        %v3430 = vunpack.c.l.b16 %v1858
        %v3431 = vunpack.c.h.b16 %v1858
        %v3432 = vunpack.c.l.b16 %v1859
        %v3433 = vunpack.c.h.b16 %v1859
        %v3434 = vunpack.c.l.b16 %v1860
        %v3435 = vunpack.c.h.b16 %v1860
        %v3436 = vunpack.c.l.b16 %v1861
        %v3437 = vunpack.c.h.b16 %v1861
        %v3438 = vunpack.c.l.b16 %v1862
        %v3439 = vunpack.c.h.b16 %v1862
        %v3440 = vunpack.c.l.b16 %v1863
        %v3441 = vunpack.c.h.b16 %v1863
        %v3442 = vunpack.c.l.b16 %v1864
        %v3443 = vunpack.c.h.b16 %v1864
        %v3444 = vunpack.c.l.b16 %v1865
        %v3445 = vunpack.c.h.b16 %v1865
        %v3446 = vunpack.c.l.b16 %v1866
        %v3447 = vunpack.c.h.b16 %v1866
        %v3448 = vunpack.c.l.b16 %v1867
        %v3449 = vunpack.c.h.b16 %v1867
        %v3450 = vunpack.c.l.b16 %v1868
        %v3451 = vunpack.c.h.b16 %v1868
        %v3452 = vunpack.c.l.b16 %v1869
        %v3453 = vunpack.c.h.b16 %v1869
        %v3454 = vunpack.c.l.b16 %v1870
        %v3455 = vunpack.c.h.b16 %v1870
        %v3456 = vunpack.c.l.b16 %v1871
        %v3457 = vunpack.c.h.b16 %v1871
        %v3458 = vunpack.c.l.b16 %v1872
        %v3459 = vunpack.c.h.b16 %v1872
        %v3460 = vunpack.c.l.b16 %v1873
        %v3461 = vunpack.c.h.b16 %v1873
        %v3462 = vunpack.c.l.b16 %v1874
        %v3463 = vunpack.c.h.b16 %v1874
        %v3464 = vunpack.c.l.b16 %v1875
        %v3465 = vunpack.c.h.b16 %v1875
        %v3466 = vunpack.c.l.b16 %v1876
        %v3467 = vunpack.c.h.b16 %v1876
        %v3468 = vunpack.c.l.b16 %v1877
        %v3469 = vunpack.c.h.b16 %v1877
        %v3470 = vpack.c.b16 %v2450, %v2446
        %v3471 = vpack.c.b16 %v2451, %v2447
        %v3472 = vpack.c.b16 %v2452, %v2448
        %v3473 = vpack.c.b16 %v2453, %v2449
        %v3474 = vpack.c.b16 %v2458, %v2454
        %v3475 = vpack.c.b16 %v2459, %v2455
        %v3476 = vpack.c.b16 %v2460, %v2456
        %v3477 = vpack.c.b16 %v2461, %v2457
        %v3478 = vpack.c.b16 %v2466, %v2462
        %v3479 = vpack.c.b16 %v2467, %v2463
        %v3480 = vpack.c.b16 %v2468, %v2464
        %v3481 = vpack.c.b16 %v2469, %v2465
        %v3482 = vpack.c.b16 %v2474, %v2470
        %v3483 = vpack.c.b16 %v2475, %v2471
        %v3484 = vpack.c.b16 %v2476, %v2472
        %v3485 = vpack.c.b16 %v2477, %v2473
        %v3486 = vpack.c.b16 %v2482, %v2478
        %v3487 = vpack.c.b16 %v2483, %v2479
        %v3488 = vpack.c.b16 %v2484, %v2480
        %v3489 = vpack.c.b16 %v2485, %v2481
        %v3490 = vpack.c.b16 %v2490, %v2486
        %v3491 = vpack.c.b16 %v2491, %v2487
        %v3492 = vpack.c.b16 %v2492, %v2488
        %v3493 = vpack.c.b16 %v2493, %v2489
        %v3494 = vpack.c.b16 %v2498, %v2494
        %v3495 = vpack.c.b16 %v2499, %v2495
        %v3496 = vpack.c.b16 %v2500, %v2496
        %v3497 = vpack.c.b16 %v2501, %v2497
        %v3498 = vpack.c.b16 %v2506, %v2502
        %v3499 = vpack.c.b16 %v2507, %v2503
        %v3500 = vpack.c.b16 %v2508, %v2504
        %v3501 = vpack.c.b16 %v2509, %v2505
        %v3502 = vpack.c.b16 %v2514, %v2510
        %v3503 = vpack.c.b16 %v2515, %v2511
        %v3504 = vpack.c.b16 %v2516, %v2512
        %v3505 = vpack.c.b16 %v2517, %v2513
        %v3506 = vpack.c.b16 %v2522, %v2518
        %v3507 = vpack.c.b16 %v2523, %v2519
        %v3508 = vpack.c.b16 %v2524, %v2520
        %v3509 = vpack.c.b16 %v2525, %v2521
        %v3510 = vpack.c.b16 %v2530, %v2526
        %v3511 = vpack.c.b16 %v2531, %v2527
        %v3512 = vpack.c.b16 %v2532, %v2528
        %v3513 = vpack.c.b16 %v2533, %v2529
        %v3514 = vpack.c.b16 %v2538, %v2534
        %v3515 = vpack.c.b16 %v2539, %v2535
        %v3516 = vpack.c.b16 %v2540, %v2536
        %v3517 = vpack.c.b16 %v2541, %v2537
        %v3518 = vpack.c.b16 %v2546, %v2542
        %v3519 = vpack.c.b16 %v2547, %v2543
        %v3520 = vpack.c.b16 %v2548, %v2544
        %v3521 = vpack.c.b16 %v2549, %v2545
        %v3522 = vpack.c.b16 %v2554, %v2550
        %v3523 = vpack.c.b16 %v2555, %v2551
        %v3524 = vpack.c.b16 %v2556, %v2552
        %v3525 = vpack.c.b16 %v2557, %v2553
        %v3526 = vpack.c.b16 %v2562, %v2558
        %v3527 = vpack.c.b16 %v2563, %v2559
        %v3528 = vpack.c.b16 %v2564, %v2560
        %v3529 = vpack.c.b16 %v2565, %v2561
        %v3530 = vpack.c.b16 %v2570, %v2566
        %v3531 = vpack.c.b16 %v2571, %v2567
        %v3532 = vpack.c.b16 %v2572, %v2568
        %v3533 = vpack.c.b16 %v2573, %v2569
        %v3534 = vpack.c.b16 %v2578, %v2574
        %v3535 = vpack.c.b16 %v2579, %v2575
        %v3536 = vpack.c.b16 %v2580, %v2576
        %v3537 = vpack.c.b16 %v2581, %v2577
        %v3538 = vpack.c.b16 %v2586, %v2582
        %v3539 = vpack.c.b16 %v2587, %v2583
        %v3540 = vpack.c.b16 %v2588, %v2584
        %v3541 = vpack.c.b16 %v2589, %v2585
        %v3542 = vpack.c.b16 %v2594, %v2590
        %v3543 = vpack.c.b16 %v2595, %v2591
        %v3544 = vpack.c.b16 %v2596, %v2592
        %v3545 = vpack.c.b16 %v2597, %v2593
        %v3546 = vpack.c.b16 %v2602, %v2598
        %v3547 = vpack.c.b16 %v2603, %v2599
        %v3548 = vpack.c.b16 %v2604, %v2600
        %v3549 = vpack.c.b16 %v2605, %v2601
        %v3550 = vpack.c.b16 %v2610, %v2606
        %v3551 = vpack.c.b16 %v2611, %v2607
        %v3552 = vpack.c.b16 %v2612, %v2608
        %v3553 = vpack.c.b16 %v2613, %v2609
        %v3554 = vpack.c.b16 %v2618, %v2614
        %v3555 = vpack.c.b16 %v2619, %v2615
        %v3556 = vpack.c.b16 %v2620, %v2616
        %v3557 = vpack.c.b16 %v2621, %v2617
        %v3558 = vpack.c.b16 %v2626, %v2622
        %v3559 = vpack.c.b16 %v2627, %v2623
        %v3560 = vpack.c.b16 %v2628, %v2624
        %v3561 = vpack.c.b16 %v2629, %v2625
        %v3562 = vpack.c.b16 %v2634, %v2630
        %v3563 = vpack.c.b16 %v2635, %v2631
        %v3564 = vpack.c.b16 %v2636, %v2632
        %v3565 = vpack.c.b16 %v2637, %v2633
        %v3566 = vpack.c.b16 %v2642, %v2638
        %v3567 = vpack.c.b16 %v2643, %v2639
        %v3568 = vpack.c.b16 %v2644, %v2640
        %v3569 = vpack.c.b16 %v2645, %v2641
        %v3570 = vpack.c.b16 %v2650, %v2646
        %v3571 = vpack.c.b16 %v2651, %v2647
        %v3572 = vpack.c.b16 %v2652, %v2648
        %v3573 = vpack.c.b16 %v2653, %v2649
        %v3574 = vpack.c.b16 %v2658, %v2654
        %v3575 = vpack.c.b16 %v2659, %v2655
        %v3576 = vpack.c.b16 %v2660, %v2656
        %v3577 = vpack.c.b16 %v2661, %v2657
        %v3578 = vpack.c.b16 %v2666, %v2662
        %v3579 = vpack.c.b16 %v2667, %v2663
        %v3580 = vpack.c.b16 %v2668, %v2664
        %v3581 = vpack.c.b16 %v2669, %v2665
        %v3582 = vpack.c.b16 %v2674, %v2670
        %v3583 = vpack.c.b16 %v2675, %v2671
        %v3584 = vpack.c.b16 %v2676, %v2672
        %v3585 = vpack.c.b16 %v2677, %v2673
        %v3586 = vpack.c.b16 %v2682, %v2678
        %v3587 = vpack.c.b16 %v2683, %v2679
        %v3588 = vpack.c.b16 %v2684, %v2680
        %v3589 = vpack.c.b16 %v2685, %v2681
        %v3590 = vpack.c.b16 %v2690, %v2686
        %v3591 = vpack.c.b16 %v2691, %v2687
        %v3592 = vpack.c.b16 %v2692, %v2688
        %v3593 = vpack.c.b16 %v2693, %v2689
        %v3594 = vpack.c.b16 %v2698, %v2694
        %v3595 = vpack.c.b16 %v2699, %v2695
        %v3596 = vpack.c.b16 %v2700, %v2696
        %v3597 = vpack.c.b16 %v2701, %v2697
        %v3598 = vpack.c.b16 %v2706, %v2702
        %v3599 = vpack.c.b16 %v2707, %v2703
        %v3600 = vpack.c.b16 %v2708, %v2704
        %v3601 = vpack.c.b16 %v2709, %v2705
        %v3602 = vpack.c.b16 %v2714, %v2710
        %v3603 = vpack.c.b16 %v2715, %v2711
        %v3604 = vpack.c.b16 %v2716, %v2712
        %v3605 = vpack.c.b16 %v2717, %v2713
        %v3606 = vpack.c.b16 %v2722, %v2718
        %v3607 = vpack.c.b16 %v2723, %v2719
        %v3608 = vpack.c.b16 %v2724, %v2720
        %v3609 = vpack.c.b16 %v2725, %v2721
        %v3610 = vpack.c.b16 %v2730, %v2726
        %v3611 = vpack.c.b16 %v2731, %v2727
        %v3612 = vpack.c.b16 %v2732, %v2728
        %v3613 = vpack.c.b16 %v2733, %v2729
        %v3614 = vpack.c.b16 %v2738, %v2734
        %v3615 = vpack.c.b16 %v2739, %v2735
        %v3616 = vpack.c.b16 %v2740, %v2736
        %v3617 = vpack.c.b16 %v2741, %v2737
        %v3618 = vpack.c.b16 %v2746, %v2742
        %v3619 = vpack.c.b16 %v2747, %v2743
        %v3620 = vpack.c.b16 %v2748, %v2744
        %v3621 = vpack.c.b16 %v2749, %v2745
        %v3622 = vpack.c.b16 %v2754, %v2750
        %v3623 = vpack.c.b16 %v2755, %v2751
        %v3624 = vpack.c.b16 %v2756, %v2752
        %v3625 = vpack.c.b16 %v2757, %v2753
        %v3626 = vpack.c.b16 %v2762, %v2758
        %v3627 = vpack.c.b16 %v2763, %v2759
        %v3628 = vpack.c.b16 %v2764, %v2760
        %v3629 = vpack.c.b16 %v2765, %v2761
        %v3630 = vpack.c.b16 %v2770, %v2766
        %v3631 = vpack.c.b16 %v2771, %v2767
        %v3632 = vpack.c.b16 %v2772, %v2768
        %v3633 = vpack.c.b16 %v2773, %v2769
        %v3634 = vpack.c.b16 %v2778, %v2774
        %v3635 = vpack.c.b16 %v2779, %v2775
        %v3636 = vpack.c.b16 %v2780, %v2776
        %v3637 = vpack.c.b16 %v2781, %v2777
        %v3638 = vpack.c.b16 %v2786, %v2782
        %v3639 = vpack.c.b16 %v2787, %v2783
        %v3640 = vpack.c.b16 %v2788, %v2784
        %v3641 = vpack.c.b16 %v2789, %v2785
        %v3642 = vpack.c.b16 %v2794, %v2790
        %v3643 = vpack.c.b16 %v2795, %v2791
        %v3644 = vpack.c.b16 %v2796, %v2792
        %v3645 = vpack.c.b16 %v2797, %v2793
        %v3646 = vpack.c.b16 %v2802, %v2798
        %v3647 = vpack.c.b16 %v2803, %v2799
        %v3648 = vpack.c.b16 %v2804, %v2800
        %v3649 = vpack.c.b16 %v2805, %v2801
        %v3650 = vpack.c.b16 %v2810, %v2806
        %v3651 = vpack.c.b16 %v2811, %v2807
        %v3652 = vpack.c.b16 %v2812, %v2808
        %v3653 = vpack.c.b16 %v2813, %v2809
        %v3654 = vpack.c.b16 %v2818, %v2814
        %v3655 = vpack.c.b16 %v2819, %v2815
        %v3656 = vpack.c.b16 %v2820, %v2816
        %v3657 = vpack.c.b16 %v2821, %v2817
        %v3658 = vpack.c.b16 %v2826, %v2822
        %v3659 = vpack.c.b16 %v2827, %v2823
        %v3660 = vpack.c.b16 %v2828, %v2824
        %v3661 = vpack.c.b16 %v2829, %v2825
        %v3662 = vpack.c.b16 %v2834, %v2830
        %v3663 = vpack.c.b16 %v2835, %v2831
        %v3664 = vpack.c.b16 %v2836, %v2832
        %v3665 = vpack.c.b16 %v2837, %v2833
        %v3666 = vpack.c.b16 %v2842, %v2838
        %v3667 = vpack.c.b16 %v2843, %v2839
        %v3668 = vpack.c.b16 %v2844, %v2840
        %v3669 = vpack.c.b16 %v2845, %v2841
        %v3670 = vpack.c.b16 %v2850, %v2846
        %v3671 = vpack.c.b16 %v2851, %v2847
        %v3672 = vpack.c.b16 %v2852, %v2848
        %v3673 = vpack.c.b16 %v2853, %v2849
        %v3674 = vpack.c.b16 %v2858, %v2854
        %v3675 = vpack.c.b16 %v2859, %v2855
        %v3676 = vpack.c.b16 %v2860, %v2856
        %v3677 = vpack.c.b16 %v2861, %v2857
        %v3678 = vpack.c.b16 %v2866, %v2862
        %v3679 = vpack.c.b16 %v2867, %v2863
        %v3680 = vpack.c.b16 %v2868, %v2864
        %v3681 = vpack.c.b16 %v2869, %v2865
        %v3682 = vpack.c.b16 %v2874, %v2870
        %v3683 = vpack.c.b16 %v2875, %v2871
        %v3684 = vpack.c.b16 %v2876, %v2872
        %v3685 = vpack.c.b16 %v2877, %v2873
        %v3686 = vpack.c.b16 %v2882, %v2878
        %v3687 = vpack.c.b16 %v2883, %v2879
        %v3688 = vpack.c.b16 %v2884, %v2880
        %v3689 = vpack.c.b16 %v2885, %v2881
        %v3690 = vpack.c.b16 %v2890, %v2886
        %v3691 = vpack.c.b16 %v2891, %v2887
        %v3692 = vpack.c.b16 %v2892, %v2888
        %v3693 = vpack.c.b16 %v2893, %v2889
        %v3694 = vpack.c.b16 %v2898, %v2894
        %v3695 = vpack.c.b16 %v2899, %v2895
        %v3696 = vpack.c.b16 %v2900, %v2896
        %v3697 = vpack.c.b16 %v2901, %v2897
        %v3698 = vpack.c.b16 %v2906, %v2902
        %v3699 = vpack.c.b16 %v2907, %v2903
        %v3700 = vpack.c.b16 %v2908, %v2904
        %v3701 = vpack.c.b16 %v2909, %v2905
        %v3702 = vpack.c.b16 %v2914, %v2910
        %v3703 = vpack.c.b16 %v2915, %v2911
        %v3704 = vpack.c.b16 %v2916, %v2912
        %v3705 = vpack.c.b16 %v2917, %v2913
        %v3706 = vpack.c.b16 %v2922, %v2918
        %v3707 = vpack.c.b16 %v2923, %v2919
        %v3708 = vpack.c.b16 %v2924, %v2920
        %v3709 = vpack.c.b16 %v2925, %v2921
        %v3710 = vpack.c.b16 %v2930, %v2926
        %v3711 = vpack.c.b16 %v2931, %v2927
        %v3712 = vpack.c.b16 %v2932, %v2928
        %v3713 = vpack.c.b16 %v2933, %v2929
        %v3714 = vpack.c.b16 %v2938, %v2934
        %v3715 = vpack.c.b16 %v2939, %v2935
        %v3716 = vpack.c.b16 %v2940, %v2936
        %v3717 = vpack.c.b16 %v2941, %v2937
        %v3718 = vpack.c.b16 %v2946, %v2942
        %v3719 = vpack.c.b16 %v2947, %v2943
        %v3720 = vpack.c.b16 %v2948, %v2944
        %v3721 = vpack.c.b16 %v2949, %v2945
        %v3722 = vpack.c.b16 %v2954, %v2950
        %v3723 = vpack.c.b16 %v2955, %v2951
        %v3724 = vpack.c.b16 %v2956, %v2952
        %v3725 = vpack.c.b16 %v2957, %v2953
        %v3726 = vpack.c.b16 %v2962, %v2958
        %v3727 = vpack.c.b16 %v2963, %v2959
        %v3728 = vpack.c.b16 %v2964, %v2960
        %v3729 = vpack.c.b16 %v2965, %v2961
        %v3730 = vpack.c.b16 %v2970, %v2966
        %v3731 = vpack.c.b16 %v2971, %v2967
        %v3732 = vpack.c.b16 %v2972, %v2968
        %v3733 = vpack.c.b16 %v2973, %v2969
        %v3734 = vpack.c.b16 %v2978, %v2974
        %v3735 = vpack.c.b16 %v2979, %v2975
        %v3736 = vpack.c.b16 %v2980, %v2976
        %v3737 = vpack.c.b16 %v2981, %v2977
        %v3738 = vpack.c.b16 %v2986, %v2982
        %v3739 = vpack.c.b16 %v2987, %v2983
        %v3740 = vpack.c.b16 %v2988, %v2984
        %v3741 = vpack.c.b16 %v2989, %v2985
        %v3742 = vpack.c.b16 %v2994, %v2990
        %v3743 = vpack.c.b16 %v2995, %v2991
        %v3744 = vpack.c.b16 %v2996, %v2992
        %v3745 = vpack.c.b16 %v2997, %v2993
        %v3746 = vpack.c.b16 %v3002, %v2998
        %v3747 = vpack.c.b16 %v3003, %v2999
        %v3748 = vpack.c.b16 %v3004, %v3000
        %v3749 = vpack.c.b16 %v3005, %v3001
        %v3750 = vpack.c.b16 %v3010, %v3006
        %v3751 = vpack.c.b16 %v3011, %v3007
        %v3752 = vpack.c.b16 %v3012, %v3008
        %v3753 = vpack.c.b16 %v3013, %v3009
        %v3754 = vpack.c.b16 %v3018, %v3014
        %v3755 = vpack.c.b16 %v3019, %v3015
        %v3756 = vpack.c.b16 %v3020, %v3016
        %v3757 = vpack.c.b16 %v3021, %v3017
        %v3758 = vpack.c.b16 %v3026, %v3022
        %v3759 = vpack.c.b16 %v3027, %v3023
        %v3760 = vpack.c.b16 %v3028, %v3024
        %v3761 = vpack.c.b16 %v3029, %v3025
        %v3762 = vpack.c.b16 %v3034, %v3030
        %v3763 = vpack.c.b16 %v3035, %v3031
        %v3764 = vpack.c.b16 %v3036, %v3032
        %v3765 = vpack.c.b16 %v3037, %v3033
        %v3766 = vpack.c.b16 %v3042, %v3038
        %v3767 = vpack.c.b16 %v3043, %v3039
        %v3768 = vpack.c.b16 %v3044, %v3040
        %v3769 = vpack.c.b16 %v3045, %v3041
        %v3770 = vpack.c.b16 %v3050, %v3046
        %v3771 = vpack.c.b16 %v3051, %v3047
        %v3772 = vpack.c.b16 %v3052, %v3048
        %v3773 = vpack.c.b16 %v3053, %v3049
        %v3774 = vpack.c.b16 %v3058, %v3054
        %v3775 = vpack.c.b16 %v3059, %v3055
        %v3776 = vpack.c.b16 %v3060, %v3056
        %v3777 = vpack.c.b16 %v3061, %v3057
        %v3778 = vpack.c.b16 %v3066, %v3062
        %v3779 = vpack.c.b16 %v3067, %v3063
        %v3780 = vpack.c.b16 %v3068, %v3064
        %v3781 = vpack.c.b16 %v3069, %v3065
        %v3782 = vpack.c.b16 %v3074, %v3070
        %v3783 = vpack.c.b16 %v3075, %v3071
        %v3784 = vpack.c.b16 %v3076, %v3072
        %v3785 = vpack.c.b16 %v3077, %v3073
        %v3786 = vpack.c.b16 %v3082, %v3078
        %v3787 = vpack.c.b16 %v3083, %v3079
        %v3788 = vpack.c.b16 %v3084, %v3080
        %v3789 = vpack.c.b16 %v3085, %v3081
        %v3790 = vpack.c.b16 %v3090, %v3086
        %v3791 = vpack.c.b16 %v3091, %v3087
        %v3792 = vpack.c.b16 %v3092, %v3088
        %v3793 = vpack.c.b16 %v3093, %v3089
        %v3794 = vpack.c.b16 %v3098, %v3094
        %v3795 = vpack.c.b16 %v3099, %v3095
        %v3796 = vpack.c.b16 %v3100, %v3096
        %v3797 = vpack.c.b16 %v3101, %v3097
        %v3798 = vpack.c.b16 %v3106, %v3102
        %v3799 = vpack.c.b16 %v3107, %v3103
        %v3800 = vpack.c.b16 %v3108, %v3104
        %v3801 = vpack.c.b16 %v3109, %v3105
        %v3802 = vpack.c.b16 %v3114, %v3110
        %v3803 = vpack.c.b16 %v3115, %v3111
        %v3804 = vpack.c.b16 %v3116, %v3112
        %v3805 = vpack.c.b16 %v3117, %v3113
        %v3806 = vpack.c.b16 %v3122, %v3118
        %v3807 = vpack.c.b16 %v3123, %v3119
        %v3808 = vpack.c.b16 %v3124, %v3120
        %v3809 = vpack.c.b16 %v3125, %v3121
        %v3810 = vpack.c.b16 %v3130, %v3126
        %v3811 = vpack.c.b16 %v3131, %v3127
        %v3812 = vpack.c.b16 %v3132, %v3128
        %v3813 = vpack.c.b16 %v3133, %v3129
        %v3814 = vpack.c.b16 %v3138, %v3134
        %v3815 = vpack.c.b16 %v3139, %v3135
        %v3816 = vpack.c.b16 %v3140, %v3136
        %v3817 = vpack.c.b16 %v3141, %v3137
        %v3818 = vpack.c.b16 %v3146, %v3142
        %v3819 = vpack.c.b16 %v3147, %v3143
        %v3820 = vpack.c.b16 %v3148, %v3144
        %v3821 = vpack.c.b16 %v3149, %v3145
        %v3822 = vpack.c.b16 %v3154, %v3150
        %v3823 = vpack.c.b16 %v3155, %v3151
        %v3824 = vpack.c.b16 %v3156, %v3152
        %v3825 = vpack.c.b16 %v3157, %v3153
        %v3826 = vpack.c.b16 %v3162, %v3158
        %v3827 = vpack.c.b16 %v3163, %v3159
        %v3828 = vpack.c.b16 %v3164, %v3160
        %v3829 = vpack.c.b16 %v3165, %v3161
        %v3830 = vpack.c.b16 %v3170, %v3166
        %v3831 = vpack.c.b16 %v3171, %v3167
        %v3832 = vpack.c.b16 %v3172, %v3168
        %v3833 = vpack.c.b16 %v3173, %v3169
        %v3834 = vpack.c.b16 %v3178, %v3174
        %v3835 = vpack.c.b16 %v3179, %v3175
        %v3836 = vpack.c.b16 %v3180, %v3176
        %v3837 = vpack.c.b16 %v3181, %v3177
        %v3838 = vpack.c.b16 %v3186, %v3182
        %v3839 = vpack.c.b16 %v3187, %v3183
        %v3840 = vpack.c.b16 %v3188, %v3184
        %v3841 = vpack.c.b16 %v3189, %v3185
        %v3842 = vpack.c.b16 %v3194, %v3190
        %v3843 = vpack.c.b16 %v3195, %v3191
        %v3844 = vpack.c.b16 %v3196, %v3192
        %v3845 = vpack.c.b16 %v3197, %v3193
        %v3846 = vpack.c.b16 %v3202, %v3198
        %v3847 = vpack.c.b16 %v3203, %v3199
        %v3848 = vpack.c.b16 %v3204, %v3200
        %v3849 = vpack.c.b16 %v3205, %v3201
        %v3850 = vpack.c.b16 %v3210, %v3206
        %v3851 = vpack.c.b16 %v3211, %v3207
        %v3852 = vpack.c.b16 %v3212, %v3208
        %v3853 = vpack.c.b16 %v3213, %v3209
        %v3854 = vpack.c.b16 %v3218, %v3214
        %v3855 = vpack.c.b16 %v3219, %v3215
        %v3856 = vpack.c.b16 %v3220, %v3216
        %v3857 = vpack.c.b16 %v3221, %v3217
        %v3858 = vpack.c.b16 %v3226, %v3222
        %v3859 = vpack.c.b16 %v3227, %v3223
        %v3860 = vpack.c.b16 %v3228, %v3224
        %v3861 = vpack.c.b16 %v3229, %v3225
        %v3862 = vpack.c.b16 %v3234, %v3230
        %v3863 = vpack.c.b16 %v3235, %v3231
        %v3864 = vpack.c.b16 %v3236, %v3232
        %v3865 = vpack.c.b16 %v3237, %v3233
        %v3866 = vpack.c.b16 %v3242, %v3238
        %v3867 = vpack.c.b16 %v3243, %v3239
        %v3868 = vpack.c.b16 %v3244, %v3240
        %v3869 = vpack.c.b16 %v3245, %v3241
        %v3870 = vpack.c.b16 %v3250, %v3246
        %v3871 = vpack.c.b16 %v3251, %v3247
        %v3872 = vpack.c.b16 %v3252, %v3248
        %v3873 = vpack.c.b16 %v3253, %v3249
        %v3874 = vpack.c.b16 %v3258, %v3254
        %v3875 = vpack.c.b16 %v3259, %v3255
        %v3876 = vpack.c.b16 %v3260, %v3256
        %v3877 = vpack.c.b16 %v3261, %v3257
        %v3878 = vpack.c.b16 %v3266, %v3262
        %v3879 = vpack.c.b16 %v3267, %v3263
        %v3880 = vpack.c.b16 %v3268, %v3264
        %v3881 = vpack.c.b16 %v3269, %v3265
        %v3882 = vpack.c.b16 %v3274, %v3270
        %v3883 = vpack.c.b16 %v3275, %v3271
        %v3884 = vpack.c.b16 %v3276, %v3272
        %v3885 = vpack.c.b16 %v3277, %v3273
        %v3886 = vpack.c.b16 %v3282, %v3278
        %v3887 = vpack.c.b16 %v3283, %v3279
        %v3888 = vpack.c.b16 %v3284, %v3280
        %v3889 = vpack.c.b16 %v3285, %v3281
        %v3890 = vpack.c.b16 %v3290, %v3286
        %v3891 = vpack.c.b16 %v3291, %v3287
        %v3892 = vpack.c.b16 %v3292, %v3288
        %v3893 = vpack.c.b16 %v3293, %v3289
        %v3894 = vpack.c.b16 %v3298, %v3294
        %v3895 = vpack.c.b16 %v3299, %v3295
        %v3896 = vpack.c.b16 %v3300, %v3296
        %v3897 = vpack.c.b16 %v3301, %v3297
        %v3898 = vpack.c.b16 %v3306, %v3302
        %v3899 = vpack.c.b16 %v3307, %v3303
        %v3900 = vpack.c.b16 %v3308, %v3304
        %v3901 = vpack.c.b16 %v3309, %v3305
        %v3902 = vpack.c.b16 %v3314, %v3310
        %v3903 = vpack.c.b16 %v3315, %v3311
        %v3904 = vpack.c.b16 %v3316, %v3312
        %v3905 = vpack.c.b16 %v3317, %v3313
        %v3906 = vpack.c.b16 %v3322, %v3318
        %v3907 = vpack.c.b16 %v3323, %v3319
        %v3908 = vpack.c.b16 %v3324, %v3320
        %v3909 = vpack.c.b16 %v3325, %v3321
        %v3910 = vpack.c.b16 %v3330, %v3326
        %v3911 = vpack.c.b16 %v3331, %v3327
        %v3912 = vpack.c.b16 %v3332, %v3328
        %v3913 = vpack.c.b16 %v3333, %v3329
        %v3914 = vpack.c.b16 %v3338, %v3334
        %v3915 = vpack.c.b16 %v3339, %v3335
        %v3916 = vpack.c.b16 %v3340, %v3336
        %v3917 = vpack.c.b16 %v3341, %v3337
        %v3918 = vpack.c.b16 %v3346, %v3342
        %v3919 = vpack.c.b16 %v3347, %v3343
        %v3920 = vpack.c.b16 %v3348, %v3344
        %v3921 = vpack.c.b16 %v3349, %v3345
        %v3922 = vpack.c.b16 %v3354, %v3350
        %v3923 = vpack.c.b16 %v3355, %v3351
        %v3924 = vpack.c.b16 %v3356, %v3352
        %v3925 = vpack.c.b16 %v3357, %v3353
        %v3926 = vpack.c.b16 %v3362, %v3358
        %v3927 = vpack.c.b16 %v3363, %v3359
        %v3928 = vpack.c.b16 %v3364, %v3360
        %v3929 = vpack.c.b16 %v3365, %v3361
        %v3930 = vpack.c.b16 %v3370, %v3366
        %v3931 = vpack.c.b16 %v3371, %v3367
        %v3932 = vpack.c.b16 %v3372, %v3368
        %v3933 = vpack.c.b16 %v3373, %v3369
        %v3934 = vpack.c.b16 %v3378, %v3374
        %v3935 = vpack.c.b16 %v3379, %v3375
        %v3936 = vpack.c.b16 %v3380, %v3376
        %v3937 = vpack.c.b16 %v3381, %v3377
        %v3938 = vpack.c.b16 %v3386, %v3382
        %v3939 = vpack.c.b16 %v3387, %v3383
        %v3940 = vpack.c.b16 %v3388, %v3384
        %v3941 = vpack.c.b16 %v3389, %v3385
        %v3942 = vpack.c.b16 %v3394, %v3390
        %v3943 = vpack.c.b16 %v3395, %v3391
        %v3944 = vpack.c.b16 %v3396, %v3392
        %v3945 = vpack.c.b16 %v3397, %v3393
        %v3946 = vpack.c.b16 %v3402, %v3398
        %v3947 = vpack.c.b16 %v3403, %v3399
        %v3948 = vpack.c.b16 %v3404, %v3400
        %v3949 = vpack.c.b16 %v3405, %v3401
        %v3950 = vpack.c.b16 %v3410, %v3406
        %v3951 = vpack.c.b16 %v3411, %v3407
        %v3952 = vpack.c.b16 %v3412, %v3408
        %v3953 = vpack.c.b16 %v3413, %v3409
        %v3954 = vpack.c.b16 %v3418, %v3414
        %v3955 = vpack.c.b16 %v3419, %v3415
        %v3956 = vpack.c.b16 %v3420, %v3416
        %v3957 = vpack.c.b16 %v3421, %v3417
        %v3958 = vpack.c.b16 %v3426, %v3422
        %v3959 = vpack.c.b16 %v3427, %v3423
        %v3960 = vpack.c.b16 %v3428, %v3424
        %v3961 = vpack.c.b16 %v3429, %v3425
        %v3962 = vpack.c.b16 %v3434, %v3430
        %v3963 = vpack.c.b16 %v3435, %v3431
        %v3964 = vpack.c.b16 %v3436, %v3432
        %v3965 = vpack.c.b16 %v3437, %v3433
        %v3966 = vpack.c.b16 %v3442, %v3438
        %v3967 = vpack.c.b16 %v3443, %v3439
        %v3968 = vpack.c.b16 %v3444, %v3440
        %v3969 = vpack.c.b16 %v3445, %v3441
        %v3970 = vpack.c.b16 %v3450, %v3446
        %v3971 = vpack.c.b16 %v3451, %v3447
        %v3972 = vpack.c.b16 %v3452, %v3448
        %v3973 = vpack.c.b16 %v3453, %v3449
        %v3974 = vpack.c.b16 %v3458, %v3454
        %v3975 = vpack.c.b16 %v3459, %v3455
        %v3976 = vpack.c.b16 %v3460, %v3456
        %v3977 = vpack.c.b16 %v3461, %v3457
        %v3978 = vpack.c.b16 %v3466, %v3462
        %v3979 = vpack.c.b16 %v3467, %v3463
        %v3980 = vpack.c.b16 %v3468, %v3464
        %v3981 = vpack.c.b16 %v3469, %v3465
        %4494 = vmatprep.subr.bf16.mxu0 %v3471
        %4495 = vmatpush1.bf16.msra.mxu0 %v3470
        %4496 = vmatprep.subr.bf16.mxu0 %v3475
        %4497 = vmatpush1.bf16.msra.mxu0 %v3474
        %4498 = vmatprep.subr.bf16.mxu0 %v3479
        %4499 = vmatpush1.bf16.msra.mxu0 %v3478
        %4500 = vmatprep.subr.bf16.mxu0 %v3483
        %4501 = vmatpush1.bf16.msra.mxu0 %v3482
        %4502 = vmatprep.subr.bf16.mxu0 %v3487
        %4503 = vmatpush1.bf16.msra.mxu0 %v3486
        %4504 = vmatprep.subr.bf16.mxu0 %v3491
        %4505 = vmatpush1.bf16.msra.mxu0 %v3490
        %4506 = vmatprep.subr.bf16.mxu0 %v3495
        %4507 = vmatpush1.bf16.msra.mxu0 %v3494
        %4508 = vmatprep.subr.bf16.mxu0 %v3499
        %4509 = vmatpush1.bf16.msra.mxu0 %v3498
        %4510 = vmatprep.subr.bf16.mxu0 %v3503
        %4511 = vmatpush1.bf16.msra.mxu0 %v3502
        %4512 = vmatprep.subr.bf16.mxu0 %v3507
        %4513 = vmatpush1.bf16.msra.mxu0 %v3506
        %4514 = vmatprep.subr.bf16.mxu0 %v3511
        %4515 = vmatpush1.bf16.msra.mxu0 %v3510
        %4516 = vmatprep.subr.bf16.mxu0 %v3515
        %4517 = vmatpush1.bf16.msra.mxu0 %v3514
        %4518 = vmatprep.subr.bf16.mxu0 %v3519
        %4519 = vmatpush1.bf16.msra.mxu0 %v3518
        %4520 = vmatprep.subr.bf16.mxu0 %v3523
        %4521 = vmatpush1.bf16.msra.mxu0 %v3522
        %4522 = vmatprep.subr.bf16.mxu0 %v3527
        %4523 = vmatpush1.bf16.msra.mxu0 %v3526
        %4524 = vmatprep.subr.bf16.mxu0 %v3531
        %4525 = vmatpush1.bf16.msra.mxu0 %v3530
        %4526 = vmatprep.mubr.bf16.mxu0 %v1903
        %4527 = vmatmul.mubr.bf16.gmra.mrb[0].mxu0 %v1902
        %v4528 = vpop.f32.mrb[0].mxu0
        %v4529 = vadd.f32 0.0, %v4528
        %v4530 = vpop.f32.mrb[0].mxu0
        %v4531 = vadd.f32 0.0, %v4530
        %v4532 = vpop.f32.mrb[0].mxu0
        %v4533 = vpop.f32.mrb[0].mxu0
        %4534 = vdwg.mxu0
        %4535 = vmatprep.subr.bf16.mxu0 %v3535
        %4536 = vmatpush1.bf16.msra.mxu0 %v3534
        %4537 = vmatprep.subr.bf16.mxu0 %v3539
        %4538 = vmatpush1.bf16.msra.mxu0 %v3538
        %4539 = vmatprep.subr.bf16.mxu0 %v3543
        %4540 = vmatpush1.bf16.msra.mxu0 %v3542
        %4541 = vmatprep.subr.bf16.mxu0 %v3547
        %4542 = vmatpush1.bf16.msra.mxu0 %v3546
        %4543 = vmatprep.subr.bf16.mxu0 %v3551
        %4544 = vmatpush1.bf16.msra.mxu0 %v3550
        %4545 = vmatprep.subr.bf16.mxu0 %v3555
        %4546 = vmatpush1.bf16.msra.mxu0 %v3554
        %4547 = vmatprep.subr.bf16.mxu0 %v3559
        %4548 = vmatpush1.bf16.msra.mxu0 %v3558
        %4549 = vmatprep.subr.bf16.mxu0 %v3563
        %4550 = vmatpush1.bf16.msra.mxu0 %v3562
        %4551 = vmatprep.subr.bf16.mxu0 %v3567
        %4552 = vmatpush1.bf16.msra.mxu0 %v3566
        %4553 = vmatprep.subr.bf16.mxu0 %v3571
        %4554 = vmatpush1.bf16.msra.mxu0 %v3570
        %4555 = vmatprep.subr.bf16.mxu0 %v3575
        %4556 = vmatpush1.bf16.msra.mxu0 %v3574
        %4557 = vmatprep.subr.bf16.mxu0 %v3579
        %4558 = vmatpush1.bf16.msra.mxu0 %v3578
        %4559 = vmatprep.subr.bf16.mxu0 %v3583
        %4560 = vmatpush1.bf16.msra.mxu0 %v3582
        %4561 = vmatprep.subr.bf16.mxu0 %v3587
        %4562 = vmatpush1.bf16.msra.mxu0 %v3586
        %4563 = vmatprep.subr.bf16.mxu0 %v3591
        %4564 = vmatpush1.bf16.msra.mxu0 %v3590
        %4565 = vmatprep.subr.bf16.mxu0 %v3595
        %4566 = vmatpush1.bf16.msra.mxu0 %v3594
        %4567 = vmatprep.mubr.bf16.mxu0 %v1905
        %4568 = vmatmul.mubr.bf16.gmra.mrb[0].mxu0 %v1904
        %v4569 = vpop.f32.mrb[0].mxu0
        %v4570 = vadd.f32 %v4529, %v4569
        %v4571 = vpop.f32.mrb[0].mxu0
        %v4572 = vadd.f32 %v4531, %v4571
        %v4573 = vpop.f32.mrb[0].mxu0
        %v4574 = vpop.f32.mrb[0].mxu0
        %4575 = vdwg.mxu0
        %4576 = vmatprep.subr.bf16.mxu0 %v3599
        %4577 = vmatpush1.bf16.msra.mxu0 %v3598
        %4578 = vmatprep.subr.bf16.mxu0 %v3603
        %4579 = vmatpush1.bf16.msra.mxu0 %v3602
        %4580 = vmatprep.subr.bf16.mxu0 %v3607
        %4581 = vmatpush1.bf16.msra.mxu0 %v3606
        %4582 = vmatprep.subr.bf16.mxu0 %v3611
        %4583 = vmatpush1.bf16.msra.mxu0 %v3610
        %4584 = vmatprep.subr.bf16.mxu0 %v3615
        %4585 = vmatpush1.bf16.msra.mxu0 %v3614
        %4586 = vmatprep.subr.bf16.mxu0 %v3619
        %4587 = vmatpush1.bf16.msra.mxu0 %v3618
        %4588 = vmatprep.subr.bf16.mxu0 %v3623
        %4589 = vmatpush1.bf16.msra.mxu0 %v3622
        %4590 = vmatprep.subr.bf16.mxu0 %v3627
        %4591 = vmatpush1.bf16.msra.mxu0 %v3626
        %4592 = vmatprep.subr.bf16.mxu0 %v3631
        %4593 = vmatpush1.bf16.msra.mxu0 %v3630
        %4594 = vmatprep.subr.bf16.mxu0 %v3635
        %4595 = vmatpush1.bf16.msra.mxu0 %v3634
        %4596 = vmatprep.subr.bf16.mxu0 %v3639
        %4597 = vmatpush1.bf16.msra.mxu0 %v3638
        %4598 = vmatprep.subr.bf16.mxu0 %v3643
        %4599 = vmatpush1.bf16.msra.mxu0 %v3642
        %4600 = vmatprep.subr.bf16.mxu0 %v3647
        %4601 = vmatpush1.bf16.msra.mxu0 %v3646
        %4602 = vmatprep.subr.bf16.mxu0 %v3651
        %4603 = vmatpush1.bf16.msra.mxu0 %v3650
        %4604 = vmatprep.subr.bf16.mxu0 %v3655
        %4605 = vmatpush1.bf16.msra.mxu0 %v3654
        %4606 = vmatprep.subr.bf16.mxu0 %v3659
        %4607 = vmatpush1.bf16.msra.mxu0 %v3658
        %4608 = vmatprep.mubr.bf16.mxu0 %v1907
        %4609 = vmatmul.mubr.bf16.gmra.mrb[0].mxu0 %v1906
        %v4610 = vpop.f32.mrb[0].mxu0
        %v4611 = vadd.f32 %v4570, %v4610
        %v4612 = vpop.f32.mrb[0].mxu0
        %v4613 = vadd.f32 %v4572, %v4612
        %v4614 = vpop.f32.mrb[0].mxu0
        %v4615 = vpop.f32.mrb[0].mxu0
        %4616 = vdwg.mxu0
        %4617 = vmatprep.subr.bf16.mxu0 %v3663
        %4618 = vmatpush1.bf16.msra.mxu0 %v3662
        %4619 = vmatprep.subr.bf16.mxu0 %v3667
        %4620 = vmatpush1.bf16.msra.mxu0 %v3666
        %4621 = vmatprep.subr.bf16.mxu0 %v3671
        %4622 = vmatpush1.bf16.msra.mxu0 %v3670
        %4623 = vmatprep.subr.bf16.mxu0 %v3675
        %4624 = vmatpush1.bf16.msra.mxu0 %v3674
        %4625 = vmatprep.subr.bf16.mxu0 %v3679
        %4626 = vmatpush1.bf16.msra.mxu0 %v3678
        %4627 = vmatprep.subr.bf16.mxu0 %v3683
        %4628 = vmatpush1.bf16.msra.mxu0 %v3682
        %4629 = vmatprep.subr.bf16.mxu0 %v3687
        %4630 = vmatpush1.bf16.msra.mxu0 %v3686
        %4631 = vmatprep.subr.bf16.mxu0 %v3691
        %4632 = vmatpush1.bf16.msra.mxu0 %v3690
        %4633 = vmatprep.subr.bf16.mxu0 %v3695
        %4634 = vmatpush1.bf16.msra.mxu0 %v3694
        %4635 = vmatprep.subr.bf16.mxu0 %v3699
        %4636 = vmatpush1.bf16.msra.mxu0 %v3698
        %4637 = vmatprep.subr.bf16.mxu0 %v3703
        %4638 = vmatpush1.bf16.msra.mxu0 %v3702
        %4639 = vmatprep.subr.bf16.mxu0 %v3707
        %4640 = vmatpush1.bf16.msra.mxu0 %v3706
        %4641 = vmatprep.subr.bf16.mxu0 %v3711
        %4642 = vmatpush1.bf16.msra.mxu0 %v3710
        %4643 = vmatprep.subr.bf16.mxu0 %v3715
        %4644 = vmatpush1.bf16.msra.mxu0 %v3714
        %4645 = vmatprep.subr.bf16.mxu0 %v3719
        %4646 = vmatpush1.bf16.msra.mxu0 %v3718
        %4647 = vmatprep.subr.bf16.mxu0 %v3723
        %4648 = vmatpush1.bf16.msra.mxu0 %v3722
        %4649 = vmatprep.mubr.bf16.mxu0 %v1909
        %4650 = vmatmul.mubr.bf16.gmra.mrb[0].mxu0 %v1908
        %v4651 = vpop.f32.mrb[0].mxu0
        %v4652 = vadd.f32 %v4611, %v4651
        %v4653 = vpop.f32.mrb[0].mxu0
        %v4654 = vadd.f32 %v4613, %v4653
        %v4655 = vpop.f32.mrb[0].mxu0
        %v4656 = vpop.f32.mrb[0].mxu0
        %4657 = vdwg.mxu0
        %4658 = vmatprep.subr.bf16.mxu0 %v3727
        %4659 = vmatpush1.bf16.msra.mxu0 %v3726
        %4660 = vmatprep.subr.bf16.mxu0 %v3731
        %4661 = vmatpush1.bf16.msra.mxu0 %v3730
        %4662 = vmatprep.subr.bf16.mxu0 %v3735
        %4663 = vmatpush1.bf16.msra.mxu0 %v3734
        %4664 = vmatprep.subr.bf16.mxu0 %v3739
        %4665 = vmatpush1.bf16.msra.mxu0 %v3738
        %4666 = vmatprep.subr.bf16.mxu0 %v3743
        %4667 = vmatpush1.bf16.msra.mxu0 %v3742
        %4668 = vmatprep.subr.bf16.mxu0 %v3747
        %4669 = vmatpush1.bf16.msra.mxu0 %v3746
        %4670 = vmatprep.subr.bf16.mxu0 %v3751
        %4671 = vmatpush1.bf16.msra.mxu0 %v3750
        %4672 = vmatprep.subr.bf16.mxu0 %v3755
        %4673 = vmatpush1.bf16.msra.mxu0 %v3754
        %4674 = vmatprep.subr.bf16.mxu0 %v3759
        %4675 = vmatpush1.bf16.msra.mxu0 %v3758
        %4676 = vmatprep.subr.bf16.mxu0 %v3763
        %4677 = vmatpush1.bf16.msra.mxu0 %v3762
        %4678 = vmatprep.subr.bf16.mxu0 %v3767
        %4679 = vmatpush1.bf16.msra.mxu0 %v3766
        %4680 = vmatprep.subr.bf16.mxu0 %v3771
        %4681 = vmatpush1.bf16.msra.mxu0 %v3770
        %4682 = vmatprep.subr.bf16.mxu0 %v3775
        %4683 = vmatpush1.bf16.msra.mxu0 %v3774
        %4684 = vmatprep.subr.bf16.mxu0 %v3779
        %4685 = vmatpush1.bf16.msra.mxu0 %v3778
        %4686 = vmatprep.subr.bf16.mxu0 %v3783
        %4687 = vmatpush1.bf16.msra.mxu0 %v3782
        %4688 = vmatprep.subr.bf16.mxu0 %v3787
        %4689 = vmatpush1.bf16.msra.mxu0 %v3786
        %4690 = vmatprep.mubr.bf16.mxu0 %v1911
        %4691 = vmatmul.mubr.bf16.gmra.mrb[0].mxu0 %v1910
        %v4692 = vpop.f32.mrb[0].mxu0
        %v4693 = vadd.f32 %v4652, %v4692
        %v4694 = vpop.f32.mrb[0].mxu0
        %v4695 = vadd.f32 %v4654, %v4694
        %v4696 = vpop.f32.mrb[0].mxu0
        %v4697 = vpop.f32.mrb[0].mxu0
        %4698 = vdwg.mxu0
        %4699 = vmatprep.subr.bf16.mxu0 %v3791
        %4700 = vmatpush1.bf16.msra.mxu0 %v3790
        %4701 = vmatprep.subr.bf16.mxu0 %v3795
        %4702 = vmatpush1.bf16.msra.mxu0 %v3794
        %4703 = vmatprep.subr.bf16.mxu0 %v3799
        %4704 = vmatpush1.bf16.msra.mxu0 %v3798
        %4705 = vmatprep.subr.bf16.mxu0 %v3803
        %4706 = vmatpush1.bf16.msra.mxu0 %v3802
        %4707 = vmatprep.subr.bf16.mxu0 %v3807
        %4708 = vmatpush1.bf16.msra.mxu0 %v3806
        %4709 = vmatprep.subr.bf16.mxu0 %v3811
        %4710 = vmatpush1.bf16.msra.mxu0 %v3810
        %4711 = vmatprep.subr.bf16.mxu0 %v3815
        %4712 = vmatpush1.bf16.msra.mxu0 %v3814
        %4713 = vmatprep.subr.bf16.mxu0 %v3819
        %4714 = vmatpush1.bf16.msra.mxu0 %v3818
        %4715 = vmatprep.subr.bf16.mxu0 %v3823
        %4716 = vmatpush1.bf16.msra.mxu0 %v3822
        %4717 = vmatprep.subr.bf16.mxu0 %v3827
        %4718 = vmatpush1.bf16.msra.mxu0 %v3826
        %4719 = vmatprep.subr.bf16.mxu0 %v3831
        %4720 = vmatpush1.bf16.msra.mxu0 %v3830
        %4721 = vmatprep.subr.bf16.mxu0 %v3835
        %4722 = vmatpush1.bf16.msra.mxu0 %v3834
        %4723 = vmatprep.subr.bf16.mxu0 %v3839
        %4724 = vmatpush1.bf16.msra.mxu0 %v3838
        %4725 = vmatprep.subr.bf16.mxu0 %v3843
        %4726 = vmatpush1.bf16.msra.mxu0 %v3842
        %4727 = vmatprep.subr.bf16.mxu0 %v3847
        %4728 = vmatpush1.bf16.msra.mxu0 %v3846
        %4729 = vmatprep.subr.bf16.mxu0 %v3851
        %4730 = vmatpush1.bf16.msra.mxu0 %v3850
        %4731 = vmatprep.mubr.bf16.mxu0 %v1913
        %4732 = vmatmul.mubr.bf16.gmra.mrb[0].mxu0 %v1912
        %v4733 = vpop.f32.mrb[0].mxu0
        %v4734 = vadd.f32 %v4693, %v4733
        %v4735 = vpop.f32.mrb[0].mxu0
        %v4736 = vadd.f32 %v4695, %v4735
        %v4737 = vpop.f32.mrb[0].mxu0
        %v4738 = vpop.f32.mrb[0].mxu0
        %4739 = vdwg.mxu0
        %4740 = vmatprep.subr.bf16.mxu0 %v3855
        %4741 = vmatpush1.bf16.msra.mxu0 %v3854
        %4742 = vmatprep.subr.bf16.mxu0 %v3859
        %4743 = vmatpush1.bf16.msra.mxu0 %v3858
        %4744 = vmatprep.subr.bf16.mxu0 %v3863
        %4745 = vmatpush1.bf16.msra.mxu0 %v3862
        %4746 = vmatprep.subr.bf16.mxu0 %v3867
        %4747 = vmatpush1.bf16.msra.mxu0 %v3866
        %4748 = vmatprep.subr.bf16.mxu0 %v3871
        %4749 = vmatpush1.bf16.msra.mxu0 %v3870
        %4750 = vmatprep.subr.bf16.mxu0 %v3875
        %4751 = vmatpush1.bf16.msra.mxu0 %v3874
        %4752 = vmatprep.subr.bf16.mxu0 %v3879
        %4753 = vmatpush1.bf16.msra.mxu0 %v3878
        %4754 = vmatprep.subr.bf16.mxu0 %v3883
        %4755 = vmatpush1.bf16.msra.mxu0 %v3882
        %4756 = vmatprep.subr.bf16.mxu0 %v3887
        %4757 = vmatpush1.bf16.msra.mxu0 %v3886
        %4758 = vmatprep.subr.bf16.mxu0 %v3891
        %4759 = vmatpush1.bf16.msra.mxu0 %v3890
        %4760 = vmatprep.subr.bf16.mxu0 %v3895
        %4761 = vmatpush1.bf16.msra.mxu0 %v3894
        %4762 = vmatprep.subr.bf16.mxu0 %v3899
        %4763 = vmatpush1.bf16.msra.mxu0 %v3898
        %4764 = vmatprep.subr.bf16.mxu0 %v3903
        %4765 = vmatpush1.bf16.msra.mxu0 %v3902
        %4766 = vmatprep.subr.bf16.mxu0 %v3907
        %4767 = vmatpush1.bf16.msra.mxu0 %v3906
        %4768 = vmatprep.subr.bf16.mxu0 %v3911
        %4769 = vmatpush1.bf16.msra.mxu0 %v3910
        %4770 = vmatprep.subr.bf16.mxu0 %v3915
        %4771 = vmatpush1.bf16.msra.mxu0 %v3914
        %4772 = vmatprep.mubr.bf16.mxu0 %v1915
        %4773 = vmatmul.mubr.bf16.gmra.mrb[0].mxu0 %v1914
        %v4774 = vpop.f32.mrb[0].mxu0
        %v4775 = vadd.f32 %v4734, %v4774
        %v4776 = vpop.f32.mrb[0].mxu0
        %v4777 = vadd.f32 %v4736, %v4776
        %v4778 = vpop.f32.mrb[0].mxu0
        %v4779 = vpop.f32.mrb[0].mxu0
        %4780 = vdwg.mxu0
        %4781 = vmatprep.subr.bf16.mxu0 %v3919
        %4782 = vmatpush1.bf16.msra.mxu0 %v3918
        %4783 = vmatprep.subr.bf16.mxu0 %v3923
        %4784 = vmatpush1.bf16.msra.mxu0 %v3922
        %4785 = vmatprep.subr.bf16.mxu0 %v3927
        %4786 = vmatpush1.bf16.msra.mxu0 %v3926
        %4787 = vmatprep.subr.bf16.mxu0 %v3931
        %4788 = vmatpush1.bf16.msra.mxu0 %v3930
        %4789 = vmatprep.subr.bf16.mxu0 %v3935
        %4790 = vmatpush1.bf16.msra.mxu0 %v3934
        %4791 = vmatprep.subr.bf16.mxu0 %v3939
        %4792 = vmatpush1.bf16.msra.mxu0 %v3938
        %4793 = vmatprep.subr.bf16.mxu0 %v3943
        %4794 = vmatpush1.bf16.msra.mxu0 %v3942
        %4795 = vmatprep.subr.bf16.mxu0 %v3947
        %4796 = vmatpush1.bf16.msra.mxu0 %v3946
        %4797 = vmatprep.subr.bf16.mxu0 %v3951
        %4798 = vmatpush1.bf16.msra.mxu0 %v3950
        %4799 = vmatprep.subr.bf16.mxu0 %v3955
        %4800 = vmatpush1.bf16.msra.mxu0 %v3954
        %4801 = vmatprep.subr.bf16.mxu0 %v3959
        %4802 = vmatpush1.bf16.msra.mxu0 %v3958
        %4803 = vmatprep.subr.bf16.mxu0 %v3963
        %4804 = vmatpush1.bf16.msra.mxu0 %v3962
        %4805 = vmatprep.subr.bf16.mxu0 %v3967
        %4806 = vmatpush1.bf16.msra.mxu0 %v3966
        %4807 = vmatprep.subr.bf16.mxu0 %v3971
        %4808 = vmatpush1.bf16.msra.mxu0 %v3970
        %4809 = vmatprep.subr.bf16.mxu0 %v3975
        %4810 = vmatpush1.bf16.msra.mxu0 %v3974
        %4811 = vmatprep.subr.bf16.mxu0 %v3979
        %4812 = vmatpush1.bf16.msra.mxu0 %v3978
        %4813 = vmatprep.mubr.bf16.mxu0 %v1917
        %4814 = vmatmul.mubr.bf16.gmra.mrb[0].mxu0 %v1916
        %v4815 = vpop.f32.mrb[0].mxu0
        %v4816 = vadd.f32 %v4775, %v4815
        %v4817 = vpop.f32.mrb[0].mxu0
        %v4818 = vadd.f32 %v4777, %v4817
        %v4819 = vpop.f32.mrb[0].mxu0
        %v4820 = vpop.f32.mrb[0].mxu0
        %4821 = vdwg.mxu0
        %4822 = vmatprep.subr.bf16.mxu0 %v3473
        %4823 = vmatpush1.bf16.msra.mxu0 %v3472
        %4824 = vmatprep.subr.bf16.mxu0 %v3477
        %4825 = vmatpush1.bf16.msra.mxu0 %v3476
        %4826 = vmatprep.subr.bf16.mxu0 %v3481
        %4827 = vmatpush1.bf16.msra.mxu0 %v3480
        %4828 = vmatprep.subr.bf16.mxu0 %v3485
        %4829 = vmatpush1.bf16.msra.mxu0 %v3484
        %4830 = vmatprep.subr.bf16.mxu0 %v3489
        %4831 = vmatpush1.bf16.msra.mxu0 %v3488
        %4832 = vmatprep.subr.bf16.mxu0 %v3493
        %4833 = vmatpush1.bf16.msra.mxu0 %v3492
        %4834 = vmatprep.subr.bf16.mxu0 %v3497
        %4835 = vmatpush1.bf16.msra.mxu0 %v3496
        %4836 = vmatprep.subr.bf16.mxu0 %v3501
        %4837 = vmatpush1.bf16.msra.mxu0 %v3500
        %4838 = vmatprep.subr.bf16.mxu0 %v3505
        %4839 = vmatpush1.bf16.msra.mxu0 %v3504
        %4840 = vmatprep.subr.bf16.mxu0 %v3509
        %4841 = vmatpush1.bf16.msra.mxu0 %v3508
        %4842 = vmatprep.subr.bf16.mxu0 %v3513
        %4843 = vmatpush1.bf16.msra.mxu0 %v3512
        %4844 = vmatprep.subr.bf16.mxu0 %v3517
        %4845 = vmatpush1.bf16.msra.mxu0 %v3516
        %4846 = vmatprep.subr.bf16.mxu0 %v3521
        %4847 = vmatpush1.bf16.msra.mxu0 %v3520
        %4848 = vmatprep.subr.bf16.mxu0 %v3525
        %4849 = vmatpush1.bf16.msra.mxu0 %v3524
        %4850 = vmatprep.subr.bf16.mxu0 %v3529
        %4851 = vmatpush1.bf16.msra.mxu0 %v3528
        %4852 = vmatprep.subr.bf16.mxu0 %v3533
        %4853 = vmatpush1.bf16.msra.mxu0 %v3532
        %4854 = vmatprep.mubr.bf16.mxu0 %v1903
        %4855 = vmatmul.mubr.bf16.gmra.mrb[0].mxu0 %v1902
        %v4856 = vpop.f32.mrb[0].mxu0
        %v4857 = vadd.f32 0.0, %v4856
        %v4858 = vpop.f32.mrb[0].mxu0
        %v4859 = vadd.f32 0.0, %v4858
        %v4860 = vpop.f32.mrb[0].mxu0
        %v4861 = vpop.f32.mrb[0].mxu0
        %4862 = vdwg.mxu0
        %4863 = vmatprep.subr.bf16.mxu0 %v3537
        %4864 = vmatpush1.bf16.msra.mxu0 %v3536
        %4865 = vmatprep.subr.bf16.mxu0 %v3541
        %4866 = vmatpush1.bf16.msra.mxu0 %v3540
        %4867 = vmatprep.subr.bf16.mxu0 %v3545
        %4868 = vmatpush1.bf16.msra.mxu0 %v3544
        %4869 = vmatprep.subr.bf16.mxu0 %v3549
        %4870 = vmatpush1.bf16.msra.mxu0 %v3548
        %4871 = vmatprep.subr.bf16.mxu0 %v3553
        %4872 = vmatpush1.bf16.msra.mxu0 %v3552
        %4873 = vmatprep.subr.bf16.mxu0 %v3557
        %4874 = vmatpush1.bf16.msra.mxu0 %v3556
        %4875 = vmatprep.subr.bf16.mxu0 %v3561
        %4876 = vmatpush1.bf16.msra.mxu0 %v3560
        %4877 = vmatprep.subr.bf16.mxu0 %v3565
        %4878 = vmatpush1.bf16.msra.mxu0 %v3564
        %4879 = vmatprep.subr.bf16.mxu0 %v3569
        %4880 = vmatpush1.bf16.msra.mxu0 %v3568
        %4881 = vmatprep.subr.bf16.mxu0 %v3573
        %4882 = vmatpush1.bf16.msra.mxu0 %v3572
        %4883 = vmatprep.subr.bf16.mxu0 %v3577
        %4884 = vmatpush1.bf16.msra.mxu0 %v3576
        %4885 = vmatprep.subr.bf16.mxu0 %v3581
        %4886 = vmatpush1.bf16.msra.mxu0 %v3580
        %4887 = vmatprep.subr.bf16.mxu0 %v3585
        %4888 = vmatpush1.bf16.msra.mxu0 %v3584
        %4889 = vmatprep.subr.bf16.mxu0 %v3589
        %4890 = vmatpush1.bf16.msra.mxu0 %v3588
        %4891 = vmatprep.subr.bf16.mxu0 %v3593
        %4892 = vmatpush1.bf16.msra.mxu0 %v3592
        %4893 = vmatprep.subr.bf16.mxu0 %v3597
        %4894 = vmatpush1.bf16.msra.mxu0 %v3596
        %4895 = vmatprep.mubr.bf16.mxu0 %v1905
        %4896 = vmatmul.mubr.bf16.gmra.mrb[0].mxu0 %v1904
        %v4897 = vpop.f32.mrb[0].mxu0
        %v4898 = vadd.f32 %v4857, %v4897
        %v4899 = vpop.f32.mrb[0].mxu0
        %v4900 = vadd.f32 %v4859, %v4899
        %v4901 = vpop.f32.mrb[0].mxu0
        %v4902 = vpop.f32.mrb[0].mxu0
        %4903 = vdwg.mxu0
        %4904 = vmatprep.subr.bf16.mxu0 %v3601
        %4905 = vmatpush1.bf16.msra.mxu0 %v3600
        %4906 = vmatprep.subr.bf16.mxu0 %v3605
        %4907 = vmatpush1.bf16.msra.mxu0 %v3604
        %4908 = vmatprep.subr.bf16.mxu0 %v3609
        %4909 = vmatpush1.bf16.msra.mxu0 %v3608
        %4910 = vmatprep.subr.bf16.mxu0 %v3613
        %4911 = vmatpush1.bf16.msra.mxu0 %v3612
        %4912 = vmatprep.subr.bf16.mxu0 %v3617
        %4913 = vmatpush1.bf16.msra.mxu0 %v3616
        %4914 = vmatprep.subr.bf16.mxu0 %v3621
        %4915 = vmatpush1.bf16.msra.mxu0 %v3620
        %4916 = vmatprep.subr.bf16.mxu0 %v3625
        %4917 = vmatpush1.bf16.msra.mxu0 %v3624
        %4918 = vmatprep.subr.bf16.mxu0 %v3629
        %4919 = vmatpush1.bf16.msra.mxu0 %v3628
        %4920 = vmatprep.subr.bf16.mxu0 %v3633
        %4921 = vmatpush1.bf16.msra.mxu0 %v3632
        %4922 = vmatprep.subr.bf16.mxu0 %v3637
        %4923 = vmatpush1.bf16.msra.mxu0 %v3636
        %4924 = vmatprep.subr.bf16.mxu0 %v3641
        %4925 = vmatpush1.bf16.msra.mxu0 %v3640
        %4926 = vmatprep.subr.bf16.mxu0 %v3645
        %4927 = vmatpush1.bf16.msra.mxu0 %v3644
        %4928 = vmatprep.subr.bf16.mxu0 %v3649
        %4929 = vmatpush1.bf16.msra.mxu0 %v3648
        %4930 = vmatprep.subr.bf16.mxu0 %v3653
        %4931 = vmatpush1.bf16.msra.mxu0 %v3652
        %4932 = vmatprep.subr.bf16.mxu0 %v3657
        %4933 = vmatpush1.bf16.msra.mxu0 %v3656
        %4934 = vmatprep.subr.bf16.mxu0 %v3661
        %4935 = vmatpush1.bf16.msra.mxu0 %v3660
        %4936 = vmatprep.mubr.bf16.mxu0 %v1907
        %4937 = vmatmul.mubr.bf16.gmra.mrb[0].mxu0 %v1906
        %v4938 = vpop.f32.mrb[0].mxu0
        %v4939 = vadd.f32 %v4898, %v4938
        %v4940 = vpop.f32.mrb[0].mxu0
        %v4941 = vadd.f32 %v4900, %v4940
        %v4942 = vpop.f32.mrb[0].mxu0
        %v4943 = vpop.f32.mrb[0].mxu0
        %4944 = vdwg.mxu0
        %4945 = vmatprep.subr.bf16.mxu0 %v3665
        %4946 = vmatpush1.bf16.msra.mxu0 %v3664
        %4947 = vmatprep.subr.bf16.mxu0 %v3669
        %4948 = vmatpush1.bf16.msra.mxu0 %v3668
        %4949 = vmatprep.subr.bf16.mxu0 %v3673
        %4950 = vmatpush1.bf16.msra.mxu0 %v3672
        %4951 = vmatprep.subr.bf16.mxu0 %v3677
        %4952 = vmatpush1.bf16.msra.mxu0 %v3676
        %4953 = vmatprep.subr.bf16.mxu0 %v3681
        %4954 = vmatpush1.bf16.msra.mxu0 %v3680
        %4955 = vmatprep.subr.bf16.mxu0 %v3685
        %4956 = vmatpush1.bf16.msra.mxu0 %v3684
        %4957 = vmatprep.subr.bf16.mxu0 %v3689
        %4958 = vmatpush1.bf16.msra.mxu0 %v3688
        %4959 = vmatprep.subr.bf16.mxu0 %v3693
        %4960 = vmatpush1.bf16.msra.mxu0 %v3692
        %4961 = vmatprep.subr.bf16.mxu0 %v3697
        %4962 = vmatpush1.bf16.msra.mxu0 %v3696
        %4963 = vmatprep.subr.bf16.mxu0 %v3701
        %4964 = vmatpush1.bf16.msra.mxu0 %v3700
        %4965 = vmatprep.subr.bf16.mxu0 %v3705
        %4966 = vmatpush1.bf16.msra.mxu0 %v3704
        %4967 = vmatprep.subr.bf16.mxu0 %v3709
        %4968 = vmatpush1.bf16.msra.mxu0 %v3708
        %4969 = vmatprep.subr.bf16.mxu0 %v3713
        %4970 = vmatpush1.bf16.msra.mxu0 %v3712
        %4971 = vmatprep.subr.bf16.mxu0 %v3717
        %4972 = vmatpush1.bf16.msra.mxu0 %v3716
        %4973 = vmatprep.subr.bf16.mxu0 %v3721
        %4974 = vmatpush1.bf16.msra.mxu0 %v3720
        %4975 = vmatprep.subr.bf16.mxu0 %v3725
        %4976 = vmatpush1.bf16.msra.mxu0 %v3724
        %4977 = vmatprep.mubr.bf16.mxu0 %v1909
        %4978 = vmatmul.mubr.bf16.gmra.mrb[0].mxu0 %v1908
        %v4979 = vpop.f32.mrb[0].mxu0
        %v4980 = vadd.f32 %v4939, %v4979
        %v4981 = vpop.f32.mrb[0].mxu0
        %v4982 = vadd.f32 %v4941, %v4981
        %v4983 = vpop.f32.mrb[0].mxu0
        %v4984 = vpop.f32.mrb[0].mxu0
        %4985 = vdwg.mxu0
        %4986 = vmatprep.subr.bf16.mxu0 %v3729
        %4987 = vmatpush1.bf16.msra.mxu0 %v3728
        %4988 = vmatprep.subr.bf16.mxu0 %v3733
        %4989 = vmatpush1.bf16.msra.mxu0 %v3732
        %4990 = vmatprep.subr.bf16.mxu0 %v3737
        %4991 = vmatpush1.bf16.msra.mxu0 %v3736
        %4992 = vmatprep.subr.bf16.mxu0 %v3741
        %4993 = vmatpush1.bf16.msra.mxu0 %v3740
        %4994 = vmatprep.subr.bf16.mxu0 %v3745
        %4995 = vmatpush1.bf16.msra.mxu0 %v3744
        %4996 = vmatprep.subr.bf16.mxu0 %v3749
        %4997 = vmatpush1.bf16.msra.mxu0 %v3748
        %4998 = vmatprep.subr.bf16.mxu0 %v3753
        %4999 = vmatpush1.bf16.msra.mxu0 %v3752
        %5000 = vmatprep.subr.bf16.mxu0 %v3757
        %5001 = vmatpush1.bf16.msra.mxu0 %v3756
        %5002 = vmatprep.subr.bf16.mxu0 %v3761
        %5003 = vmatpush1.bf16.msra.mxu0 %v3760
        %5004 = vmatprep.subr.bf16.mxu0 %v3765
        %5005 = vmatpush1.bf16.msra.mxu0 %v3764
        %5006 = vmatprep.subr.bf16.mxu0 %v3769
        %5007 = vmatpush1.bf16.msra.mxu0 %v3768
        %5008 = vmatprep.subr.bf16.mxu0 %v3773
        %5009 = vmatpush1.bf16.msra.mxu0 %v3772
        %5010 = vmatprep.subr.bf16.mxu0 %v3777
        %5011 = vmatpush1.bf16.msra.mxu0 %v3776
        %5012 = vmatprep.subr.bf16.mxu0 %v3781
        %5013 = vmatpush1.bf16.msra.mxu0 %v3780
        %5014 = vmatprep.subr.bf16.mxu0 %v3785
        %5015 = vmatpush1.bf16.msra.mxu0 %v3784
        %5016 = vmatprep.subr.bf16.mxu0 %v3789
        %5017 = vmatpush1.bf16.msra.mxu0 %v3788
        %5018 = vmatprep.mubr.bf16.mxu0 %v1911
        %5019 = vmatmul.mubr.bf16.gmra.mrb[0].mxu0 %v1910
        %v5020 = vpop.f32.mrb[0].mxu0
        %v5021 = vadd.f32 %v4980, %v5020
        %v5022 = vpop.f32.mrb[0].mxu0
        %v5023 = vadd.f32 %v4982, %v5022
        %v5024 = vpop.f32.mrb[0].mxu0
        %v5025 = vpop.f32.mrb[0].mxu0
        %5026 = vdwg.mxu0
        %5027 = vmatprep.subr.bf16.mxu0 %v3793
        %5028 = vmatpush1.bf16.msra.mxu0 %v3792
        %5029 = vmatprep.subr.bf16.mxu0 %v3797
        %5030 = vmatpush1.bf16.msra.mxu0 %v3796
        %5031 = vmatprep.subr.bf16.mxu0 %v3801
        %5032 = vmatpush1.bf16.msra.mxu0 %v3800
        %5033 = vmatprep.subr.bf16.mxu0 %v3805
        %5034 = vmatpush1.bf16.msra.mxu0 %v3804
        %5035 = vmatprep.subr.bf16.mxu0 %v3809
        %5036 = vmatpush1.bf16.msra.mxu0 %v3808
        %5037 = vmatprep.subr.bf16.mxu0 %v3813
        %5038 = vmatpush1.bf16.msra.mxu0 %v3812
        %5039 = vmatprep.subr.bf16.mxu0 %v3817
        %5040 = vmatpush1.bf16.msra.mxu0 %v3816
        %5041 = vmatprep.subr.bf16.mxu0 %v3821
        %5042 = vmatpush1.bf16.msra.mxu0 %v3820
        %5043 = vmatprep.subr.bf16.mxu0 %v3825
        %5044 = vmatpush1.bf16.msra.mxu0 %v3824
        %5045 = vmatprep.subr.bf16.mxu0 %v3829
        %5046 = vmatpush1.bf16.msra.mxu0 %v3828
        %5047 = vmatprep.subr.bf16.mxu0 %v3833
        %5048 = vmatpush1.bf16.msra.mxu0 %v3832
        %5049 = vmatprep.subr.bf16.mxu0 %v3837
        %5050 = vmatpush1.bf16.msra.mxu0 %v3836
        %5051 = vmatprep.subr.bf16.mxu0 %v3841
        %5052 = vmatpush1.bf16.msra.mxu0 %v3840
        %5053 = vmatprep.subr.bf16.mxu0 %v3845
        %5054 = vmatpush1.bf16.msra.mxu0 %v3844
        %5055 = vmatprep.subr.bf16.mxu0 %v3849
        %5056 = vmatpush1.bf16.msra.mxu0 %v3848
        %5057 = vmatprep.subr.bf16.mxu0 %v3853
        %5058 = vmatpush1.bf16.msra.mxu0 %v3852
        %5059 = vmatprep.mubr.bf16.mxu0 %v1913
        %5060 = vmatmul.mubr.bf16.gmra.mrb[0].mxu0 %v1912
        %v5061 = vpop.f32.mrb[0].mxu0
        %v5062 = vadd.f32 %v5021, %v5061
        %v5063 = vpop.f32.mrb[0].mxu0
        %v5064 = vadd.f32 %v5023, %v5063
        %v5065 = vpop.f32.mrb[0].mxu0
        %v5066 = vpop.f32.mrb[0].mxu0
        %5067 = vdwg.mxu0
        %5068 = vmatprep.subr.bf16.mxu0 %v3857
        %5069 = vmatpush1.bf16.msra.mxu0 %v3856
        %5070 = vmatprep.subr.bf16.mxu0 %v3861
        %5071 = vmatpush1.bf16.msra.mxu0 %v3860
        %5072 = vmatprep.subr.bf16.mxu0 %v3865
        %5073 = vmatpush1.bf16.msra.mxu0 %v3864
        %5074 = vmatprep.subr.bf16.mxu0 %v3869
        %5075 = vmatpush1.bf16.msra.mxu0 %v3868
        %5076 = vmatprep.subr.bf16.mxu0 %v3873
        %5077 = vmatpush1.bf16.msra.mxu0 %v3872
        %5078 = vmatprep.subr.bf16.mxu0 %v3877
        %5079 = vmatpush1.bf16.msra.mxu0 %v3876
        %5080 = vmatprep.subr.bf16.mxu0 %v3881
        %5081 = vmatpush1.bf16.msra.mxu0 %v3880
        %5082 = vmatprep.subr.bf16.mxu0 %v3885
        %5083 = vmatpush1.bf16.msra.mxu0 %v3884
        %5084 = vmatprep.subr.bf16.mxu0 %v3889
        %5085 = vmatpush1.bf16.msra.mxu0 %v3888
        %5086 = vmatprep.subr.bf16.mxu0 %v3893
        %5087 = vmatpush1.bf16.msra.mxu0 %v3892
        %5088 = vmatprep.subr.bf16.mxu0 %v3897
        %5089 = vmatpush1.bf16.msra.mxu0 %v3896
        %5090 = vmatprep.subr.bf16.mxu0 %v3901
        %5091 = vmatpush1.bf16.msra.mxu0 %v3900
        %5092 = vmatprep.subr.bf16.mxu0 %v3905
        %5093 = vmatpush1.bf16.msra.mxu0 %v3904
        %5094 = vmatprep.subr.bf16.mxu0 %v3909
        %5095 = vmatpush1.bf16.msra.mxu0 %v3908
        %5096 = vmatprep.subr.bf16.mxu0 %v3913
        %5097 = vmatpush1.bf16.msra.mxu0 %v3912
        %5098 = vmatprep.subr.bf16.mxu0 %v3917
        %5099 = vmatpush1.bf16.msra.mxu0 %v3916
        %5100 = vmatprep.mubr.bf16.mxu0 %v1915
        %5101 = vmatmul.mubr.bf16.gmra.mrb[0].mxu0 %v1914
        %v5102 = vpop.f32.mrb[0].mxu0
        %v5103 = vadd.f32 %v5062, %v5102
        %v5104 = vpop.f32.mrb[0].mxu0
        %v5105 = vadd.f32 %v5064, %v5104
        %v5106 = vpop.f32.mrb[0].mxu0
        %v5107 = vpop.f32.mrb[0].mxu0
        %5108 = vdwg.mxu0
        %5109 = vmatprep.subr.bf16.mxu0 %v3921
        %5110 = vmatpush1.bf16.msra.mxu0 %v3920
        %5111 = vmatprep.subr.bf16.mxu0 %v3925
        %5112 = vmatpush1.bf16.msra.mxu0 %v3924
        %5113 = vmatprep.subr.bf16.mxu0 %v3929
        %5114 = vmatpush1.bf16.msra.mxu0 %v3928
        %5115 = vmatprep.subr.bf16.mxu0 %v3933
        %5116 = vmatpush1.bf16.msra.mxu0 %v3932
        %5117 = vmatprep.subr.bf16.mxu0 %v3937
        %5118 = vmatpush1.bf16.msra.mxu0 %v3936
        %5119 = vmatprep.subr.bf16.mxu0 %v3941
        %5120 = vmatpush1.bf16.msra.mxu0 %v3940
        %5121 = vmatprep.subr.bf16.mxu0 %v3945
        %5122 = vmatpush1.bf16.msra.mxu0 %v3944
        %5123 = vmatprep.subr.bf16.mxu0 %v3949
        %5124 = vmatpush1.bf16.msra.mxu0 %v3948
        %5125 = vmatprep.subr.bf16.mxu0 %v3953
        %5126 = vmatpush1.bf16.msra.mxu0 %v3952
        %5127 = vmatprep.subr.bf16.mxu0 %v3957
        %5128 = vmatpush1.bf16.msra.mxu0 %v3956
        %5129 = vmatprep.subr.bf16.mxu0 %v3961
        %5130 = vmatpush1.bf16.msra.mxu0 %v3960
        %5131 = vmatprep.subr.bf16.mxu0 %v3965
        %5132 = vmatpush1.bf16.msra.mxu0 %v3964
        %5133 = vmatprep.subr.bf16.mxu0 %v3969
        %5134 = vmatpush1.bf16.msra.mxu0 %v3968
        %5135 = vmatprep.subr.bf16.mxu0 %v3973
        %5136 = vmatpush1.bf16.msra.mxu0 %v3972
        %5137 = vmatprep.subr.bf16.mxu0 %v3977
        %5138 = vmatpush1.bf16.msra.mxu0 %v3976
        %5139 = vmatprep.subr.bf16.mxu0 %v3981
        %5140 = vmatpush1.bf16.msra.mxu0 %v3980
        %5141 = vmatprep.mubr.bf16.mxu0 %v1917
        %5142 = vmatmul.mubr.bf16.gmra.mrb[0].mxu0 %v1916
        %v5143 = vpop.f32.mrb[0].mxu0
        %v5144 = vadd.f32 %v5103, %v5143
        %v5145 = vpop.f32.mrb[0].mxu0
        %v5146 = vadd.f32 %v5105, %v5145
        %v5147 = vpop.f32.mrb[0].mxu0
        %v5148 = vpop.f32.mrb[0].mxu0
        %5149 = vdwg.mxu0
        %v5150 = vadd.f32 %v1354, %v4816
        %v5151 = vadd.f32 %v1355, %v4818
        %v5152 = vadd.f32 %v1356, %v5144
        %v5153 = vadd.f32 %v1357, %v5146
        %5154 = vst [vmem:[#allocation2] sm:$0xff] %v5150
        %5155 = vst [vmem:[#allocation2 + $0x8] sm:$0xff] %v5151
        %5156 = vst [vmem:[#allocation2 + $0x10] sm:$0xff] %v5152
        %5157 = vst [vmem:[#allocation2 + $0x18] sm:$0xff] %v5153
        %p5158 = scmp.eq.s32.totalorder %s26, 3
        // Predicated region
        $region89: #{encoder_forward.1} parent=55 // pred_check
          %p5159 = pneg %p5158
        $region90: #{encoder_forward.1} parent=55 // pred_check_branch
          %5161 = sbr.rel (%p5159) target = $region92
        $region91: #{encoder_forward.1} parent=55 // pred_region
          %v5162 = vld [vmem:[#allocation2] sm:$0xff]
          %v5163 = vld [vmem:[#allocation2 + $0x8] sm:$0xff]
          %v5164 = vld [vmem:[#allocation2 + $0x10] sm:$0xff]
          %v5165 = vld [vmem:[#allocation2 + $0x18] sm:$0xff]
          %v5166 = vld [vmem:[#allocation12] sm:$0xf]
          %v5168 = vlaneseq
          %v5169 = vshrl.u32 %v5168, 7
          %v5170 = vsub.s32 0, %v5169
          %v5171 = vrot.slane %v5166, %v5170
          %v5172 = vlaneseq
          %v5173 = vshrl.u32 %v5172, 7
          %v5174 = vsub.s32 1, %v5173
          %v5175 = vrot.slane %v5166, %v5174
          %v5176 = vlaneseq
          %v5177 = vshrl.u32 %v5176, 7
          %v5178 = vsub.s32 2, %v5177
          %v5179 = vrot.slane %v5166, %v5178
          %v5180 = vlaneseq
          %v5181 = vshrl.u32 %v5180, 7
          %v5182 = vsub.s32 3, %v5181
          %v5183 = vrot.slane %v5166, %v5182
          %v5188 = vadd.f32 %v5162, %v5171
          %v5189 = vadd.f32 %v5163, %v5175
          %v5190 = vadd.f32 %v5164, %v5179
          %v5191 = vadd.f32 %v5165, %v5183
          %vm5192 = vcmp.ge.f32.partialorder %v5188, 0.0
          %vm5193 = vcmp.ge.f32.partialorder %v5189, 0.0
          %vm5194 = vcmp.ge.f32.partialorder %v5190, 0.0
          %vm5195 = vcmp.ge.f32.partialorder %v5191, 0.0
          %v5196 = vmul.f32 %v5188, 0.2
          %v5197 = vmul.f32 %v5189, 0.2
          %v5198 = vmul.f32 %v5190, 0.2
          %v5199 = vmul.f32 %v5191, 0.2
          %v5200 = vsel %vm5192, %v5188, %v5196
          %v5201 = vsel %vm5193, %v5189, %v5197
          %v5202 = vsel %vm5194, %v5190, %v5198
          %v5203 = vsel %vm5195, %v5191, %v5199
          %v5204 = vpack.c.bf16 %v5200, %v5200
          %v5205 = vpack.c.bf16 %v5201, %v5201
          %v5206 = vpack.c.bf16 %v5202, %v5202
          %v5207 = vpack.c.bf16 %v5203, %v5203
          %v5208 = vld [vmem:[#allocation13] sm:$0xf]
          %v5209 = vld [vmem:[#allocation13 + $0x4] sm:$0xf]
          %v5210 = vld [vmem:[#allocation13 + $0x8] sm:$0xf]
          %v5211 = vld [vmem:[#allocation13 + $0xc] sm:$0xf]
          %v5212 = vld [vmem:[#allocation13 + $0x10] sm:$0xf]
          %v5213 = vld [vmem:[#allocation13 + $0x14] sm:$0xf]
          %v5214 = vld [vmem:[#allocation13 + $0x18] sm:$0xf]
          %v5215 = vld [vmem:[#allocation13 + $0x1c] sm:$0xf]
          %v5216 = vld [vmem:[#allocation13 + $0x20] sm:$0xf]
          %v5217 = vld [vmem:[#allocation13 + $0x24] sm:$0xf]
          %v5218 = vld [vmem:[#allocation13 + $0x28] sm:$0xf]
          %v5219 = vld [vmem:[#allocation13 + $0x2c] sm:$0xf]
          %v5220 = vld [vmem:[#allocation13 + $0x30] sm:$0xf]
          %v5221 = vld [vmem:[#allocation13 + $0x34] sm:$0xf]
          %v5222 = vld [vmem:[#allocation13 + $0x38] sm:$0xf]
          %v5223 = vld [vmem:[#allocation13 + $0x3c] sm:$0xf]
          %v5224 = vld [vmem:[#allocation13 + $0x40] sm:$0xf]
          %v5225 = vld [vmem:[#allocation13 + $0x44] sm:$0xf]
          %v5226 = vld [vmem:[#allocation13 + $0x48] sm:$0xf]
          %v5227 = vld [vmem:[#allocation13 + $0x4c] sm:$0xf]
          %v5228 = vld [vmem:[#allocation13 + $0x50] sm:$0xf]
          %v5229 = vld [vmem:[#allocation13 + $0x54] sm:$0xf]
          %v5230 = vld [vmem:[#allocation13 + $0x58] sm:$0xf]
          %v5231 = vld [vmem:[#allocation13 + $0x5c] sm:$0xf]
          %v5232 = vld [vmem:[#allocation13 + $0x60] sm:$0xf]
          %v5233 = vld [vmem:[#allocation13 + $0x64] sm:$0xf]
          %v5234 = vld [vmem:[#allocation13 + $0x68] sm:$0xf]
          %v5235 = vld [vmem:[#allocation13 + $0x6c] sm:$0xf]
          %v5236 = vld [vmem:[#allocation13 + $0x70] sm:$0xf]
          %v5237 = vld [vmem:[#allocation13 + $0x74] sm:$0xf]
          %v5238 = vld [vmem:[#allocation13 + $0x78] sm:$0xf]
          %v5239 = vld [vmem:[#allocation13 + $0x7c] sm:$0xf]
          %v5240 = vld [vmem:[#allocation13 + $0x80] sm:$0xf]
          %v5241 = vld [vmem:[#allocation13 + $0x84] sm:$0xf]
          %v5242 = vld [vmem:[#allocation13 + $0x88] sm:$0xf]
          %v5243 = vld [vmem:[#allocation13 + $0x8c] sm:$0xf]
          %v5244 = vld [vmem:[#allocation13 + $0x90] sm:$0xf]
          %v5245 = vld [vmem:[#allocation13 + $0x94] sm:$0xf]
          %v5246 = vld [vmem:[#allocation13 + $0x98] sm:$0xf]
          %v5247 = vld [vmem:[#allocation13 + $0x9c] sm:$0xf]
          %v5248 = vld [vmem:[#allocation13 + $0xa0] sm:$0xf]
          %v5249 = vld [vmem:[#allocation13 + $0xa4] sm:$0xf]
          %v5250 = vld [vmem:[#allocation13 + $0xa8] sm:$0xf]
          %v5251 = vld [vmem:[#allocation13 + $0xac] sm:$0xf]
          %v5252 = vld [vmem:[#allocation13 + $0xb0] sm:$0xf]
          %v5253 = vld [vmem:[#allocation13 + $0xb4] sm:$0xf]
          %v5254 = vld [vmem:[#allocation13 + $0xb8] sm:$0xf]
          %v5255 = vld [vmem:[#allocation13 + $0xbc] sm:$0xf]
          %v5256 = vld [vmem:[#allocation13 + $0xc0] sm:$0xf]
          %v5257 = vld [vmem:[#allocation13 + $0xc4] sm:$0xf]
          %v5258 = vld [vmem:[#allocation13 + $0xc8] sm:$0xf]
          %v5259 = vld [vmem:[#allocation13 + $0xcc] sm:$0xf]
          %v5260 = vld [vmem:[#allocation13 + $0xd0] sm:$0xf]
          %v5261 = vld [vmem:[#allocation13 + $0xd4] sm:$0xf]
          %v5262 = vld [vmem:[#allocation13 + $0xd8] sm:$0xf]
          %v5263 = vld [vmem:[#allocation13 + $0xdc] sm:$0xf]
          %v5264 = vld [vmem:[#allocation13 + $0xe0] sm:$0xf]
          %v5265 = vld [vmem:[#allocation13 + $0xe4] sm:$0xf]
          %v5266 = vld [vmem:[#allocation13 + $0xe8] sm:$0xf]
          %v5267 = vld [vmem:[#allocation13 + $0xec] sm:$0xf]
          %v5268 = vld [vmem:[#allocation13 + $0xf0] sm:$0xf]
          %v5269 = vld [vmem:[#allocation13 + $0xf4] sm:$0xf]
          %v5270 = vld [vmem:[#allocation13 + $0xf8] sm:$0xf]
          %v5271 = vld [vmem:[#allocation13 + $0xfc] sm:$0xf]
          %v5272 = vld [vmem:[#allocation15] sm:$0x1]
          %v5274 = vlaneseq
          %v5275 = vshrl.u32 %v5274, 7
          %v5276 = vsub.s32 0, %v5275
          %v5277 = vrot.slane %v5272, %v5276
          %v5343 = vunpack.c.l.b16 %v5208
          %v5344 = vunpack.c.l.b16 %v5209
          %v5345 = vunpack.c.l.b16 %v5210
          %v5346 = vunpack.c.l.b16 %v5211
          %v5347 = vunpack.c.l.b16 %v5212
          %v5348 = vunpack.c.l.b16 %v5213
          %v5349 = vunpack.c.l.b16 %v5214
          %v5350 = vunpack.c.l.b16 %v5215
          %v5351 = vunpack.c.l.b16 %v5216
          %v5352 = vunpack.c.l.b16 %v5217
          %v5353 = vunpack.c.l.b16 %v5218
          %v5354 = vunpack.c.l.b16 %v5219
          %v5355 = vunpack.c.l.b16 %v5220
          %v5356 = vunpack.c.l.b16 %v5221
          %v5357 = vunpack.c.l.b16 %v5222
          %v5358 = vunpack.c.l.b16 %v5223
          %v5359 = vunpack.c.l.b16 %v5224
          %v5360 = vunpack.c.l.b16 %v5225
          %v5361 = vunpack.c.l.b16 %v5226
          %v5362 = vunpack.c.l.b16 %v5227
          %v5363 = vunpack.c.l.b16 %v5228
          %v5364 = vunpack.c.l.b16 %v5229
          %v5365 = vunpack.c.l.b16 %v5230
          %v5366 = vunpack.c.l.b16 %v5231
          %v5367 = vunpack.c.l.b16 %v5232
          %v5368 = vunpack.c.l.b16 %v5233
          %v5369 = vunpack.c.l.b16 %v5234
          %v5370 = vunpack.c.l.b16 %v5235
          %v5371 = vunpack.c.l.b16 %v5236
          %v5372 = vunpack.c.l.b16 %v5237
          %v5373 = vunpack.c.l.b16 %v5238
          %v5374 = vunpack.c.l.b16 %v5239
          %v5375 = vunpack.c.l.b16 %v5240
          %v5376 = vunpack.c.l.b16 %v5241
          %v5377 = vunpack.c.l.b16 %v5242
          %v5378 = vunpack.c.l.b16 %v5243
          %v5379 = vunpack.c.l.b16 %v5244
          %v5380 = vunpack.c.l.b16 %v5245
          %v5381 = vunpack.c.l.b16 %v5246
          %v5382 = vunpack.c.l.b16 %v5247
          %v5383 = vunpack.c.l.b16 %v5248
          %v5384 = vunpack.c.l.b16 %v5249
          %v5385 = vunpack.c.l.b16 %v5250
          %v5386 = vunpack.c.l.b16 %v5251
          %v5387 = vunpack.c.l.b16 %v5252
          %v5388 = vunpack.c.l.b16 %v5253
          %v5389 = vunpack.c.l.b16 %v5254
          %v5390 = vunpack.c.l.b16 %v5255
          %v5391 = vunpack.c.l.b16 %v5256
          %v5392 = vunpack.c.l.b16 %v5257
          %v5393 = vunpack.c.l.b16 %v5258
          %v5394 = vunpack.c.l.b16 %v5259
          %v5395 = vunpack.c.l.b16 %v5260
          %v5396 = vunpack.c.l.b16 %v5261
          %v5397 = vunpack.c.l.b16 %v5262
          %v5398 = vunpack.c.l.b16 %v5263
          %v5399 = vunpack.c.l.b16 %v5264
          %v5400 = vunpack.c.l.b16 %v5265
          %v5401 = vunpack.c.l.b16 %v5266
          %v5402 = vunpack.c.l.b16 %v5267
          %v5403 = vunpack.c.l.b16 %v5268
          %v5404 = vunpack.c.l.b16 %v5269
          %v5405 = vunpack.c.l.b16 %v5270
          %v5406 = vunpack.c.l.b16 %v5271
          %v5407 = vpack.c.b16 %v5344, %v5343
          %v5408 = vpack.c.b16 %v5346, %v5345
          %v5409 = vpack.c.b16 %v5348, %v5347
          %v5410 = vpack.c.b16 %v5350, %v5349
          %v5411 = vpack.c.b16 %v5352, %v5351
          %v5412 = vpack.c.b16 %v5354, %v5353
          %v5413 = vpack.c.b16 %v5356, %v5355
          %v5414 = vpack.c.b16 %v5358, %v5357
          %v5415 = vpack.c.b16 %v5360, %v5359
          %v5416 = vpack.c.b16 %v5362, %v5361
          %v5417 = vpack.c.b16 %v5364, %v5363
          %v5418 = vpack.c.b16 %v5366, %v5365
          %v5419 = vpack.c.b16 %v5368, %v5367
          %v5420 = vpack.c.b16 %v5370, %v5369
          %v5421 = vpack.c.b16 %v5372, %v5371
          %v5422 = vpack.c.b16 %v5374, %v5373
          %v5423 = vpack.c.b16 %v5376, %v5375
          %v5424 = vpack.c.b16 %v5378, %v5377
          %v5425 = vpack.c.b16 %v5380, %v5379
          %v5426 = vpack.c.b16 %v5382, %v5381
          %v5427 = vpack.c.b16 %v5384, %v5383
          %v5428 = vpack.c.b16 %v5386, %v5385
          %v5429 = vpack.c.b16 %v5388, %v5387
          %v5430 = vpack.c.b16 %v5390, %v5389
          %v5431 = vpack.c.b16 %v5392, %v5391
          %v5432 = vpack.c.b16 %v5394, %v5393
          %v5433 = vpack.c.b16 %v5396, %v5395
          %v5434 = vpack.c.b16 %v5398, %v5397
          %v5435 = vpack.c.b16 %v5400, %v5399
          %v5436 = vpack.c.b16 %v5402, %v5401
          %v5437 = vpack.c.b16 %v5404, %v5403
          %v5438 = vpack.c.b16 %v5406, %v5405
          %5471 = vmatprep.subr.bf16.mxu0 0
          %5472 = vmatpush1.bf16.msra.mxu0 %v5407
          %5473 = vmatprep.subr.bf16.mxu0 0
          %5474 = vmatpush1.bf16.msra.mxu0 %v5408
          %5475 = vmatprep.subr.bf16.mxu0 0
          %5476 = vmatpush1.bf16.msra.mxu0 %v5409
          %5477 = vmatprep.subr.bf16.mxu0 0
          %5478 = vmatpush1.bf16.msra.mxu0 %v5410
          %5479 = vmatprep.subr.bf16.mxu0 0
          %5480 = vmatpush1.bf16.msra.mxu0 %v5411
          %5481 = vmatprep.subr.bf16.mxu0 0
          %5482 = vmatpush1.bf16.msra.mxu0 %v5412
          %5483 = vmatprep.subr.bf16.mxu0 0
          %5484 = vmatpush1.bf16.msra.mxu0 %v5413
          %5485 = vmatprep.subr.bf16.mxu0 0
          %5486 = vmatpush1.bf16.msra.mxu0 %v5414
          %5487 = vmatprep.subr.bf16.mxu0 0
          %5488 = vmatpush1.bf16.msra.mxu0 %v5415
          %5489 = vmatprep.subr.bf16.mxu0 0
          %5490 = vmatpush1.bf16.msra.mxu0 %v5416
          %5491 = vmatprep.subr.bf16.mxu0 0
          %5492 = vmatpush1.bf16.msra.mxu0 %v5417
          %5493 = vmatprep.subr.bf16.mxu0 0
          %5494 = vmatpush1.bf16.msra.mxu0 %v5418
          %5495 = vmatprep.subr.bf16.mxu0 0
          %5496 = vmatpush1.bf16.msra.mxu0 %v5419
          %5497 = vmatprep.subr.bf16.mxu0 0
          %5498 = vmatpush1.bf16.msra.mxu0 %v5420
          %5499 = vmatprep.subr.bf16.mxu0 0
          %5500 = vmatpush1.bf16.msra.mxu0 %v5421
          %5501 = vmatprep.subr.bf16.mxu0 0
          %5502 = vmatpush1.bf16.msra.mxu0 %v5422
          %5503 = vmatprep.mubr.bf16.mxu0 %v5205
          %5504 = vmatmul.mubr.bf16.gmra.mrb[0].mxu0 %v5204
          %v5505 = vpop.f32.mrb[0].mxu0
          %v5506 = vadd.f32 %v5277, %v5505
          %v5507 = vpop.f32.mrb[0].mxu0
          %v5508 = vpop.f32.mrb[0].mxu0
          %v5509 = vpop.f32.mrb[0].mxu0
          %5510 = vdwg.mxu0
          %5511 = vmatprep.subr.bf16.mxu0 0
          %5512 = vmatpush1.bf16.msra.mxu0 %v5423
          %5513 = vmatprep.subr.bf16.mxu0 0
          %5514 = vmatpush1.bf16.msra.mxu0 %v5424
          %5515 = vmatprep.subr.bf16.mxu0 0
          %5516 = vmatpush1.bf16.msra.mxu0 %v5425
          %5517 = vmatprep.subr.bf16.mxu0 0
          %5518 = vmatpush1.bf16.msra.mxu0 %v5426
          %5519 = vmatprep.subr.bf16.mxu0 0
          %5520 = vmatpush1.bf16.msra.mxu0 %v5427
          %5521 = vmatprep.subr.bf16.mxu0 0
          %5522 = vmatpush1.bf16.msra.mxu0 %v5428
          %5523 = vmatprep.subr.bf16.mxu0 0
          %5524 = vmatpush1.bf16.msra.mxu0 %v5429
          %5525 = vmatprep.subr.bf16.mxu0 0
          %5526 = vmatpush1.bf16.msra.mxu0 %v5430
          %5527 = vmatprep.subr.bf16.mxu0 0
          %5528 = vmatpush1.bf16.msra.mxu0 %v5431
          %5529 = vmatprep.subr.bf16.mxu0 0
          %5530 = vmatpush1.bf16.msra.mxu0 %v5432
          %5531 = vmatprep.subr.bf16.mxu0 0
          %5532 = vmatpush1.bf16.msra.mxu0 %v5433
          %5533 = vmatprep.subr.bf16.mxu0 0
          %5534 = vmatpush1.bf16.msra.mxu0 %v5434
          %5535 = vmatprep.subr.bf16.mxu0 0
          %5536 = vmatpush1.bf16.msra.mxu0 %v5435
          %5537 = vmatprep.subr.bf16.mxu0 0
          %5538 = vmatpush1.bf16.msra.mxu0 %v5436
          %5539 = vmatprep.subr.bf16.mxu0 0
          %5540 = vmatpush1.bf16.msra.mxu0 %v5437
          %5541 = vmatprep.subr.bf16.mxu0 0
          %5542 = vmatpush1.bf16.msra.mxu0 %v5438
          %5543 = vmatprep.mubr.bf16.mxu0 %v5207
          %5544 = vmatmul.mubr.bf16.gmra.mrb[0].mxu0 %v5206
          %v5545 = vpop.f32.mrb[0].mxu0
          %v5546 = vadd.f32 %v5506, %v5545
          %v5547 = vpop.f32.mrb[0].mxu0
          %v5548 = vpop.f32.mrb[0].mxu0
          %v5549 = vpop.f32.mrb[0].mxu0
          %5550 = vdwg.mxu0
          %5551 = vst [vmem:[%s9] sm:$0xff] %v5546
        $region92: #{encoder_forward.1} parent=55 // pred_fallthru
          _
        // Predicated region
        $region93: #{encoder_forward.1} parent=55 // pred_check
          %p5552 = pneg %p233
        $region94: #{encoder_forward.1} parent=55 // pred_check_branch
          %5554 = sbr.rel (%p5552) target = $region96
        $region95: #{encoder_forward.1} parent=55 // pred_region
          _
        $region96: #{encoder_forward.1} parent=55 // pred_fallthru
          _
        // Predicated region
        $region97: #{encoder_forward.1} parent=55 // pred_check
          %p5555 = pneg %p233
        $region98: #{encoder_forward.1} parent=55 // pred_check_branch
          %5557 = sbr.rel (%p5555) target = $region100
        $region99: #{encoder_forward.1} parent=55 // pred_region
          _
        $region100: #{encoder_forward.1} parent=55 // pred_fallthru
          _
      $region56: #{encoder_forward.1} parent=5 // pred_fallthru
        _
      %p5558 = scmp.le.s32.totalorder 2, %s21
      // Predicated region
      $region101: #{encoder_forward.1} parent=5 // pred_check
        %p5559 = pneg %p5558
      $region102: #{encoder_forward.1} parent=5 // pred_check_branch
        %5561 = sbr.rel (%p5559) target = $region104
      $region103: #{encoder_forward.1} parent=5 // pred_region
        %s5562 = ssub.s32 %s21, 2
      $region104: #{encoder_forward.1} parent=5 // pred_fallthru
        _
    $region6: #{encoder_forward.1} parent=1 // loop_footer
      %s25 = sadd.s32 1, %s21
    $region7: #{encoder_forward.1} parent=1 // loop_footer_branch
      %20 = sbr.rel target = $region3
    $region8: #{encoder_forward.1} parent=1 // loop_exit
      _
    %5563 = vsyncpa [#allocation6], 1
    %s5564 = scalar_lea.sflag [#allocation6], 1
    %5565 = vsyncpa %s5564, 1
    %5566 = vsyncpa [#allocation8], 1
    %5567 = vsyncpa [#allocation11], 1
    %s5568 = scalar_lea.sflag [#allocation11], 1
    %5569 = vsyncpa %s5568, 1
    %5570 = vsyncpa [#allocation14], 1

</llo_original>
